<compile_context>
chip_gen: v5e
topology: v5e:2x2
jax: 0.10.0
libtpu: 0.0.40
codegen_flags: <defaults>
</compile_context>

<pallas_src>
import jax
import jax.numpy as jnp
from jax.experimental import pallas as pl
from jax.experimental.pallas import tpu as pltpu


# -----------------------------------------------------------------------------
# Kernel: one grid step handles TB batch elements; everything fits in VMEM.
# -----------------------------------------------------------------------------
def intent_kernel(feats_ref,            # (TB, S, H)   bf16 (or f32)
                  tail_in_ref,          # (TB, H)      pre-concatenated tail input
                  w1T_ref, b1_ref,      # (H, d_a) bf16, (1, d_a) f32
                  w2T_ref, b2_ref,      # (H, d_a) bf16, (1, d_a) f32
                  attw_ref, attb_ref,   # (1, d_a) f32, (1, 1) f32
                  l1T_ref, l1b_ref,     # (H, 128) bf16, (1, 128) f32
                  l2T_ref, l2b_ref,     # (128, T_pad) bf16, (1, T_pad) f32
                  logp_ref):            # (TB, T_pad)  f32 out (lane-dense)
    feats = feats_ref[...]                               # (TB, S, H)
    TB, S, H = feats.shape

    # tail = W2( cat(feats[:,0,:H/2], feats[:,-1,H/2:]) ); concat hoisted to wrapper.
    tail = (jnp.dot(tail_in_ref[...], w2T_ref[...],
                    preferred_element_type=jnp.float32)
            + b2_ref[...])                                # (TB, d_a) f32

    # fc = W1(feats): one (TB*S, H) x (H, d_a) MXU matmul, f32 accumulation.
    # NOTE: the reshape is a pure layout no-op when S is a multiple of the
    # sublane pack (8 for f32, 16 for bf16); otherwise it is still correct.
    fc = (jnp.dot(feats.reshape(TB * S, H), w1T_ref[...],
                  preferred_element_type=jnp.float32)
          + b1_ref[...])                                  # (TB*S, d_a) f32
    d_a = fc.shape[-1]

    # attention: Linear_1( tanh(fc + tail) ) -> score per sequence position.
    # Lane reduce stays on the VPU/XLU (free slot) -- do not turn into an MXU matvec.
    z = jnp.tanh(fc.reshape(TB, S, d_a) + tail[:, None, :])           # (TB, S, d_a) f32
    scores = (jnp.sum(z * attw_ref[...], axis=-1, keepdims=True)
              + attb_ref[...])                                        # (TB, S, 1) f32

    # LogSoftmax over the sequence dim (torch dim=1 on (B, S, 1)).
    smax = jnp.max(scores, axis=1, keepdims=True)
    lse = jnp.log(jnp.sum(jnp.exp(scores - smax), axis=1, keepdims=True)) + smax
    a = scores - lse                                                   # (TB, S, 1) log-probs

    # m = tanh( feats^T @ a ) == tanh( sum_s a[.,s] * feats[.,s,:] )  (sublane reduce).
    m = jnp.tanh(jnp.sum(feats.astype(jnp.float32) * a, axis=1))       # (TB, H) f32

    # hidden2label: Linear(H,128) -> Dropout(identity, eval) -> ReLU -> Linear(128,T).
    h = jnp.maximum(
        jnp.dot(m.astype(l1T_ref.dtype), l1T_ref[...],
                preferred_element_type=jnp.float32) + l1b_ref[...],
        0.0)                                                           # (TB, 128) f32
    logits = (jnp.dot(h.astype(l2T_ref.dtype), l2T_ref[...],
                      preferred_element_type=jnp.float32)
              + l2b_ref[...])                                          # (TB, T_pad) f32

    # LogSoftmax over the target dim; padded lanes carry a -1e30 bias so they
    # contribute exp(.) == 0 and are sliced off in the wrapper.
    lmax = jnp.max(logits, axis=-1, keepdims=True)
    lse2 = jnp.log(jnp.sum(jnp.exp(logits - lmax), axis=-1, keepdims=True)) + lmax
    logp_ref[...] = logits - lse2


# -----------------------------------------------------------------------------
# Hardware-aware tiling helpers (all run at Python/trace time).
# -----------------------------------------------------------------------------
def _tpu_vmem_and_cores():
    """Best-effort per-TensorCore VMEM capacity and TensorCores per chip."""
    try:
        vmem_cap = int(pltpu.get_tpu_info().vmem_capacity_bytes)
    except Exception:
        vmem_cap = 0
    if vmem_cap <= 0:
        vmem_cap = 64 * 2**20          # conservative default = v7x per-TC VMEM
    cores = 1
    try:
        kind = jax.devices()[0].device_kind.lower()
        if "v7" in kind:               # v7x megacore: 2 TensorCores per chip
            cores = 2
    except Exception:
        cores = 1
    if cores >= 2:
        vmem_cap = min(vmem_cap, 64 * 2**20)   # v7x: 64 MiB physical per TC
    return vmem_cap, cores


def _choose_block_batch(B, S, H, d_a, T_pad, x_bytes, w_bytes,
                        vmem_budget, num_cores):
    """Largest TB (divisor of B; multiple of 8 unless TB == B) whose tiles fit
    the VMEM budget.  On 2-TC chips prefer an even grid length >= 2 so the
    batch shards across both TensorCores; single-TC chips take one big step."""
    # Resident weights/biases (worst case: double-buffered fallback path).
    weight_bytes = 2 * ((2 * H * d_a + H * 128 + 128 * T_pad) * w_bytes
                        + (3 * d_a + 1 + 128 + T_pad) * 4)
    # Per-batch-row bytes: double-buffered feats + tail_in input tiles,
    # double-buffered f32 output tile, and ~4 live f32 (S, d_a) body
    # intermediates (fc / z / p / scores) plus small per-row vectors.
    per_row = (2 * (S * H + H) * x_bytes
               + 2 * T_pad * 4
               + 4 * S * d_a * 4
               + 4 * (H + 128 + T_pad) * 4)
    tb_cap = max(1, (vmem_budget - weight_bytes) // per_row)

    divisors = [d for d in range(B, 0, -1) if B % d == 0]
    ok = [d for d in divisors if d <= tb_cap and (d % 8 == 0 or d == B)]
    if not ok:
        # Budget estimate is conservative; fall back to the smallest block that
        # still satisfies the (8, 128) constraint on the (TB, ...) dims.
        small = [d for d in reversed(divisors) if d % 8 == 0]
        return small[0] if small else B

    tb = ok[0]
    if num_cores >= 2:
        even = [d for d in ok if (B // d) >= 2 and (B // d) % 2 == 0]
        if even:
            tb = even[0]
    return tb


# -----------------------------------------------------------------------------
# Wrapper
# -----------------------------------------------------------------------------
def make_intent_forward(use_bf16=True, single_buffer_weights=True):
    """Builds the jitted forward pass."""
    vmem_cap, num_cores = _tpu_vmem_and_cores()
    vmem_limit = int(min(0.75 * vmem_cap, 96 * 2**20))
    vmem_budget = int(0.85 * vmem_limit)
    x_dtype = jnp.bfloat16 if use_bf16 else jnp.float32
    x_bytes = 2 if use_bf16 else 4

    @jax.jit
    def intent_forward(feats, params):
        """feats: (B, S, H) float32. Returns (argmax (B,) int32, logprobs (B, T))."""
        B, S, H = feats.shape
        w1, b1, w2, b2, aw, ab, l1, l1b, l2, l2b = params
        d_a = w1.shape[0]
        T = l2.shape[0]
        T_pad = ((T + 127) // 128) * 128
        half = H // 2

        TB = _choose_block_batch(B, S, H, d_a, T_pad, x_bytes, x_bytes,
                                 vmem_budget, num_cores)

        # Hoist the lane-offset concat out of the kernel (plain XLA op).
        tail_in = jnp.concatenate([feats[:, 0, :half], feats[:, -1, half:]],
                                  axis=1)                              # (B, H)

        # MXU operands -> bf16 (f32 accumulation in-kernel); biases stay f32.
        # attw stays f32: it lives on the VPU elementwise path and is 512 bytes.
        feats_x = feats.astype(x_dtype)
        tail_x = tail_in.astype(x_dtype)
        w1T = w1.T.astype(x_dtype)                 # (H, d_a)
        w2T = w2.T.astype(x_dtype)                 # (H, d_a)
        l1T = l1.T.astype(x_dtype)                 # (H, 128)
        # Lane-dense label dim: zero-pad L2 columns, bias padded lanes to -1e30.
        l2T = jnp.pad(l2.T, ((0, 0), (0, T_pad - T))).astype(x_dtype)  # (128, T_pad)
        b1r, b2r = b1.reshape(1, d_a), b2.reshape(1, d_a)
        awr, abr = aw.reshape(1, d_a), ab.reshape(1, 1)
        l1br = l1b.reshape(1, 128)
        l2br = jnp.concatenate(
            [l2b, jnp.full((T_pad - T,), -1e30, l2b.dtype)]).reshape(1, T_pad)

        def _const_spec(shape):
            nd = len(shape)
            if single_buffer_weights:
                # Block index never changes across the grid -> single resident buffer.
                return pl.BlockSpec(shape, lambda b: (0,) * nd,
                                    pipeline_mode=pl.Buffered(1))
            return pl.BlockSpec(shape, lambda b: (0,) * nd)

        flops = int(2 * B * S * H * d_a      # fc = W1(feats)
                    + 2 * B * H * d_a        # tail = W2(tail_in)
                    + 2 * B * S * d_a        # attention scores
                    + 2 * B * S * H          # m = feats^T @ a
                    + 2 * B * H * 128        # hidden2label L1
                    + 2 * B * 128 * T_pad)   # hidden2label L2
        transcendentals = int(B * S * d_a + B * H + B * S + B * T_pad)
        bytes_accessed = int(x_bytes * (B * S * H + B * H
                                        + 2 * H * d_a + H * 128 + 128 * T_pad)
                             + 4 * (3 * d_a + 1 + 128 + T_pad)
                             + 4 * B * T_pad)

        logp_pad = pl.pallas_call(
            intent_kernel,
            out_shape=jax.ShapeDtypeStruct((B, T_pad), jnp.float32),
            grid_spec=pltpu.PrefetchScalarGridSpec(
                num_scalar_prefetch=0,
                grid=(B // TB,),
                in_specs=[
                    pl.BlockSpec((TB, S, H), lambda b: (b, 0, 0)),   # feats (batch block)
                    pl.BlockSpec((TB, H), lambda b: (b, 0)),         # tail concat (batch block)
                    _const_spec((H, d_a)), _const_spec((1, d_a)),    # W1
                    _const_spec((H, d_a)), _const_spec((1, d_a)),    # W2
                    _const_spec((1, d_a)), _const_spec((1, 1)),      # attention Linear(d_a, 1)
                    _const_spec((H, 128)), _const_spec((1, 128)),    # hidden2label L1
                    _const_spec((128, T_pad)), _const_spec((1, T_pad)),  # hidden2label L2 (padded)
                ],
                out_specs=pl.BlockSpec((TB, T_pad), lambda b: (b, 0)),
            ),
            compiler_params=pltpu.CompilerParams(
                dimension_semantics=("parallel",),
                vmem_limit_bytes=vmem_limit),
            cost_estimate=pl.CostEstimate(flops=flops,
                                          transcendentals=transcendentals,
                                          bytes_accessed=bytes_accessed),
        )(feats_x, tail_x, w1T, b1r, w2T, b2r, awr, abr, l1T, l1br, l2T, l2br)

        logp = logp_pad[:, :T]
        # argmax hoisted out of the kernel; jnp.argmax returns the first maximal
        # index, matching torch.argmax tie-breaking.
        return jnp.argmax(logp, axis=1).astype(jnp.int32), logp

    return intent_forward


# -----------------------------------------------------------------------------
# Pure-JAX reference (mirrors the PyTorch code) for a correctness check.
# -----------------------------------------------------------------------------
def intent_reference(feats, params):
    w1, b1, w2, b2, aw, ab, l1, l1b, l2, l2b = params
    B, S, H = feats.shape
    half = H // 2
    tail = jnp.concatenate([feats[:, 0, :half], feats[:, -1, half:]], axis=1)  # (B,H)
    tail = tail @ w2.T + b2                                                    # (B,d_a)
    fc = feats @ w1.T + b1                                                     # (B,S,d_a)
    z = jnp.tanh(fc + tail[:, None, :])
    scores = z @ aw.T + ab                                                     # (B,S,1)
    a = jax.nn.log_softmax(scores, axis=1)
    m = jnp.tanh(jnp.einsum("bsh,bsk->bhk", feats, a))[..., 0]                 # (B,H)
    h = jnp.maximum(m @ l1.T + l1b, 0.0)        # Dropout is identity in eval
    logits = h @ l2.T + l2b
    logp = jax.nn.log_softmax(logits, axis=1)
    return jnp.argmax(logp, axis=1).astype(jnp.int32), logp


def make_params(key, hidden_size, target_size, d_a=128):
    ks = jax.random.split(key, 10)
    s = 0.1
    w1 = s * jax.random.normal(ks[0], (d_a, hidden_size), jnp.float32)
    b1 = s * jax.random.normal(ks[1], (d_a,), jnp.float32)
    w2 = s * jax.random.normal(ks[2], (d_a, hidden_size), jnp.float32)
    b2 = s * jax.random.normal(ks[3], (d_a,), jnp.float32)
    aw = s * jax.random.normal(ks[4], (1, d_a), jnp.float32)
    ab = s * jax.random.normal(ks[5], (1,), jnp.float32)
    l1 = s * jax.random.normal(ks[6], (128, hidden_size), jnp.float32)
    l1b = s * jax.random.normal(ks[7], (128,), jnp.float32)
    l2 = s * jax.random.normal(ks[8], (target_size, 128), jnp.float32)
    l2b = s * jax.random.normal(ks[9], (target_size,), jnp.float32)
    return (w1, b1, w2, b2, aw, ab, l1, l1b, l2, l2b)


def _argmax_matches(idx, ref_idx, ref_logp, tie_gap):
    """Exact argmax match, or mismatches only where the reference top-2 gap is
    below tie_gap (precision-induced tie)."""
    mism = idx != ref_idx
    if not bool(jnp.any(mism)):
        return True
    top2 = jnp.sort(ref_logp, axis=1)[:, -2:]
    gap = top2[:, 1] - top2[:, 0]
    return bool(jnp.all(gap[mism] < tie_gap))


if __name__ == "__main__":
    # Small shapes; S=16 so the bf16 (TB*S, H) reshape stays a layout no-op.
    B, S, H, T = 32, 16, 32, 8

    key = jax.random.PRNGKey(0)
    k_feats, k_params = jax.random.split(key)
    feats = jax.random.normal(k_feats, (B, S, H), jnp.float32)
    params = make_params(k_params, hidden_size=H, target_size=T)

    def _run(use_bf16):
        try:
            fwd = make_intent_forward(use_bf16=use_bf16, single_buffer_weights=True)
            out = fwd(feats, params)
            jax.block_until_ready(out)
            return out
        except Exception:
            # This JAX build rejected pipeline_mode=pl.Buffered(1) on the constant
            # weight BlockSpecs; retry with default double buffering.  A genuine
            # kernel bug fails here too, so real failures still surface.
            fwd = make_intent_forward(use_bf16=use_bf16, single_buffer_weights=False)
            out = fwd(feats, params)
            jax.block_until_ready(out)
            return out

    # f32 path: tight check of kernel structure vs the reference.
    idx32, logp32 = _run(use_bf16=False)
    # bf16 path (production config): looser tolerance for bf16 MXU operands.
    idx16, logp16 = _run(use_bf16=True)

    ref_idx, ref_logp = intent_reference(feats, params)

    assert jnp.allclose(logp32, ref_logp, atol=1e-4, rtol=1e-4), "f32 logprob mismatch"
    assert _argmax_matches(idx32, ref_idx, ref_logp, 1e-3), "f32 argmax mismatch"

    assert float(jnp.max(jnp.abs(logp16 - ref_logp))) < 3e-2, "bf16 logprob mismatch"
    assert _argmax_matches(idx16, ref_idx, ref_logp, 1e-1), \
        "bf16 argmax mismatch beyond tie tolerance"

    print("KERNEL_OK")
</pallas_src>

<mosaic_0001>
module attributes {stable_mosaic.version = 11 : i64} {
  func.func @intent_kernel(%arg0: i32, %arg1: memref<32x16x32xf32, #tpu.memory_space<vmem>>, %arg2: memref<32x32xf32, #tpu.memory_space<vmem>>, %arg3: memref<32x128xf32, #tpu.memory_space<vmem>>, %arg4: memref<1x128xf32, #tpu.memory_space<vmem>>, %arg5: memref<32x128xf32, #tpu.memory_space<vmem>>, %arg6: memref<1x128xf32, #tpu.memory_space<vmem>>, %arg7: memref<1x128xf32, #tpu.memory_space<vmem>>, %arg8: memref<1x1xf32, #tpu.memory_space<vmem>>, %arg9: memref<32x128xf32, #tpu.memory_space<vmem>>, %arg10: memref<1x128xf32, #tpu.memory_space<vmem>>, %arg11: memref<128x128xf32, #tpu.memory_space<vmem>>, %arg12: memref<1x128xf32, #tpu.memory_space<vmem>>, %arg13: memref<32x128xf32, #tpu.memory_space<vmem>>) attributes {dimension_semantics = [#tpu.dimension_semantics<parallel>], iteration_bounds = array<i64: 1>, scalar_prefetch = 0 : i64, scratch_operands = 0 : i64, tpu.core_type = #tpu.core_type<tc>, window_params = [{transform_indices = @transform_0, window_bounds = array<i64: 32, 16, 32>}, {transform_indices = @transform_1, window_bounds = array<i64: 32, 32>}, {pipeline_mode = #tpu.pipeline_mode<synchronous>, transform_indices = @transform_2, window_bounds = array<i64: 32, 128>}, {pipeline_mode = #tpu.pipeline_mode<synchronous>, transform_indices = @transform_3, window_bounds = array<i64: 1, 128>}, {pipeline_mode = #tpu.pipeline_mode<synchronous>, transform_indices = @transform_4, window_bounds = array<i64: 32, 128>}, {pipeline_mode = #tpu.pipeline_mode<synchronous>, transform_indices = @transform_5, window_bounds = array<i64: 1, 128>}, {pipeline_mode = #tpu.pipeline_mode<synchronous>, transform_indices = @transform_6, window_bounds = array<i64: 1, 128>}, {pipeline_mode = #tpu.pipeline_mode<synchronous>, transform_indices = @transform_7, window_bounds = array<i64: 1, 1>}, {pipeline_mode = #tpu.pipeline_mode<synchronous>, transform_indices = @transform_8, window_bounds = array<i64: 32, 128>}, {pipeline_mode = #tpu.pipeline_mode<synchronous>, transform_indices = @transform_9, window_bounds = array<i64: 1, 128>}, {pipeline_mode = #tpu.pipeline_mode<synchronous>, transform_indices = @transform_10, window_bounds = array<i64: 128, 128>}, {pipeline_mode = #tpu.pipeline_mode<synchronous>, transform_indices = @transform_11, window_bounds = array<i64: 1, 128>}, {transform_indices = @transform_12, window_bounds = array<i64: 32, 128>}]} {
    %c0 = arith.constant 0 : index
    %c0_0 = arith.constant 0 : index
    %c0_1 = arith.constant 0 : index
    %0 = vector.load %arg1[%c0, %c0_0, %c0_1] : memref<32x16x32xf32, #tpu.memory_space<vmem>>, vector<32x16x32xf32>
    %c0_2 = arith.constant 0 : index
    %c0_3 = arith.constant 0 : index
    %1 = vector.load %arg2[%c0_2, %c0_3] : memref<32x32xf32, #tpu.memory_space<vmem>>, vector<32x32xf32>
    %c0_4 = arith.constant 0 : index
    %c0_5 = arith.constant 0 : index
    %2 = vector.load %arg5[%c0_4, %c0_5] : memref<32x128xf32, #tpu.memory_space<vmem>>, vector<32x128xf32>
    %cst = arith.constant dense<0.000000e+00> : vector<32x128xf32>
    %3 = tpu.matmul %1, %2, %cst {dimension_numbers = #tpu.dot_dimension_numbers<[1], [0], [0], [1], [0, 0, 1, 1], [], []>} : vector<32x32xf32>, vector<32x128xf32>, vector<32x128xf32> -> vector<32x128xf32>
    %c0_6 = arith.constant 0 : index
    %c0_7 = arith.constant 0 : index
    %4 = vector.load %arg6[%c0_6, %c0_7] : memref<1x128xf32, #tpu.memory_space<vmem>>, vector<1x128xf32>
    %5 = vector.broadcast %4 : vector<1x128xf32> to vector<32x128xf32>
    %6 = arith.addf %3, %5 : vector<32x128xf32>
    %7 = vector.shape_cast %0 : vector<32x16x32xf32> to vector<512x32xf32>
    %c0_8 = arith.constant 0 : index
    %c0_9 = arith.constant 0 : index
    %8 = vector.load %arg3[%c0_8, %c0_9] : memref<32x128xf32, #tpu.memory_space<vmem>>, vector<32x128xf32>
    %cst_10 = arith.constant dense<0.000000e+00> : vector<512x128xf32>
    %9 = tpu.matmul %7, %8, %cst_10 {dimension_numbers = #tpu.dot_dimension_numbers<[1], [0], [0], [1], [0, 0, 1, 1], [], []>} : vector<512x32xf32>, vector<32x128xf32>, vector<512x128xf32> -> vector<512x128xf32>
    %c0_11 = arith.constant 0 : index
    %c0_12 = arith.constant 0 : index
    %10 = vector.load %arg4[%c0_11, %c0_12] : memref<1x128xf32, #tpu.memory_space<vmem>>, vector<1x128xf32>
    %11 = vector.broadcast %10 : vector<1x128xf32> to vector<512x128xf32>
    %12 = arith.addf %9, %11 : vector<512x128xf32>
    %13 = vector.shape_cast %12 : vector<512x128xf32> to vector<32x16x128xf32>
    %14 = vector.shape_cast %6 : vector<32x128xf32> to vector<32x1x128xf32>
    %15 = vector.broadcast %14 : vector<32x1x128xf32> to vector<32x16x128xf32>
    %16 = arith.addf %13, %15 : vector<32x16x128xf32>
    %17 = math.tanh %16 : vector<32x16x128xf32>
    %c0_13 = arith.constant 0 : index
    %c0_14 = arith.constant 0 : index
    %18 = vector.load %arg7[%c0_13, %c0_14] : memref<1x128xf32, #tpu.memory_space<vmem>>, vector<1x128xf32>
    %19 = vector.shape_cast %18 : vector<1x128xf32> to vector<1x1x128xf32>
    %20 = vector.broadcast %19 : vector<1x1x128xf32> to vector<32x16x128xf32>
    %21 = arith.mulf %17, %20 : vector<32x16x128xf32>
    %cst_15 = arith.constant dense<0.000000e+00> : vector<32x16xf32>
    %22 = vector.multi_reduction <add>, %21, %cst_15 [2] : vector<32x16x128xf32> to vector<32x16xf32>
    %23 = vector.shape_cast %22 : vector<32x16xf32> to vector<32x16x1xf32>
    %c0_16 = arith.constant 0 : index
    %c0_17 = arith.constant 0 : index
    %24 = vector.load %arg8[%c0_16, %c0_17] : memref<1x1xf32, #tpu.memory_space<vmem>>, vector<1x1xf32>
    %25 = vector.shape_cast %24 : vector<1x1xf32> to vector<1x1x1xf32>
    %26 = vector.broadcast %25 : vector<1x1x1xf32> to vector<32x16x1xf32>
    %27 = arith.addf %23, %26 : vector<32x16x1xf32>
    %cst_18 = arith.constant dense<0xFF800000> : vector<32x1xf32>
    %28 = vector.multi_reduction <maximumf>, %27, %cst_18 [1] : vector<32x16x1xf32> to vector<32x1xf32>
    %29 = vector.shape_cast %28 : vector<32x1xf32> to vector<32x1x1xf32>
    %30 = vector.broadcast %29 : vector<32x1x1xf32> to vector<32x16x1xf32>
    %31 = arith.subf %27, %30 : vector<32x16x1xf32>
    %32 = math.exp %31 : vector<32x16x1xf32>
    %cst_19 = arith.constant dense<0.000000e+00> : vector<32x1xf32>
    %33 = vector.multi_reduction <add>, %32, %cst_19 [1] : vector<32x16x1xf32> to vector<32x1xf32>
    %34 = vector.shape_cast %33 : vector<32x1xf32> to vector<32x1x1xf32>
    %35 = math.log %34 : vector<32x1x1xf32>
    %36 = arith.addf %35, %29 : vector<32x1x1xf32>
    %37 = vector.broadcast %36 : vector<32x1x1xf32> to vector<32x16x1xf32>
    %38 = arith.subf %27, %37 : vector<32x16x1xf32>
    %39 = vector.broadcast %38 : vector<32x16x1xf32> to vector<32x16x32xf32>
    %40 = arith.mulf %0, %39 : vector<32x16x32xf32>
    %cst_20 = arith.constant dense<0.000000e+00> : vector<32x32xf32>
    %41 = vector.multi_reduction <add>, %40, %cst_20 [1] : vector<32x16x32xf32> to vector<32x32xf32>
    %42 = math.tanh %41 : vector<32x32xf32>
    %c0_21 = arith.constant 0 : index
    %c0_22 = arith.constant 0 : index
    %43 = vector.load %arg9[%c0_21, %c0_22] : memref<32x128xf32, #tpu.memory_space<vmem>>, vector<32x128xf32>
    %cst_23 = arith.constant dense<0.000000e+00> : vector<32x128xf32>
    %44 = tpu.matmul %42, %43, %cst_23 {dimension_numbers = #tpu.dot_dimension_numbers<[1], [0], [0], [1], [0, 0, 1, 1], [], []>} : vector<32x32xf32>, vector<32x128xf32>, vector<32x128xf32> -> vector<32x128xf32>
    %c0_24 = arith.constant 0 : index
    %c0_25 = arith.constant 0 : index
    %45 = vector.load %arg10[%c0_24, %c0_25] : memref<1x128xf32, #tpu.memory_space<vmem>>, vector<1x128xf32>
    %46 = vector.broadcast %45 : vector<1x128xf32> to vector<32x128xf32>
    %47 = arith.addf %44, %46 : vector<32x128xf32>
    %cst_26 = arith.constant 0.000000e+00 : f32
    %48 = vector.broadcast %cst_26 : f32 to vector<32x128xf32>
    %49 = arith.maximumf %47, %48 : vector<32x128xf32>
    %c0_27 = arith.constant 0 : index
    %c0_28 = arith.constant 0 : index
    %50 = vector.load %arg11[%c0_27, %c0_28] : memref<128x128xf32, #tpu.memory_space<vmem>>, vector<128x128xf32>
    %cst_29 = arith.constant dense<0.000000e+00> : vector<32x128xf32>
    %51 = tpu.matmul %49, %50, %cst_29 {dimension_numbers = #tpu.dot_dimension_numbers<[1], [0], [0], [1], [0, 0, 1, 1], [], []>} : vector<32x128xf32>, vector<128x128xf32>, vector<32x128xf32> -> vector<32x128xf32>
    %c0_30 = arith.constant 0 : index
    %c0_31 = arith.constant 0 : index
    %52 = vector.load %arg12[%c0_30, %c0_31] : memref<1x128xf32, #tpu.memory_space<vmem>>, vector<1x128xf32>
    %53 = vector.broadcast %52 : vector<1x128xf32> to vector<32x128xf32>
    %54 = arith.addf %51, %53 : vector<32x128xf32>
    %cst_32 = arith.constant dense<0xFF800000> : vector<32xf32>
    %55 = vector.multi_reduction <maximumf>, %54, %cst_32 [1] : vector<32x128xf32> to vector<32xf32>
    %56 = vector.shape_cast %55 : vector<32xf32> to vector<32x1xf32>
    %57 = vector.broadcast %56 : vector<32x1xf32> to vector<32x128xf32>
    %58 = arith.subf %54, %57 : vector<32x128xf32>
    %59 = math.exp %58 : vector<32x128xf32>
    %cst_33 = arith.constant dense<0.000000e+00> : vector<32xf32>
    %60 = vector.multi_reduction <add>, %59, %cst_33 [1] : vector<32x128xf32> to vector<32xf32>
    %61 = vector.shape_cast %60 : vector<32xf32> to vector<32x1xf32>
    %62 = math.log %61 : vector<32x1xf32>
    %63 = arith.addf %62, %56 : vector<32x1xf32>
    %64 = vector.broadcast %63 : vector<32x1xf32> to vector<32x128xf32>
    %65 = arith.subf %54, %64 : vector<32x128xf32>
    %c0_34 = arith.constant 0 : index
    %c0_35 = arith.constant 0 : index
    %66 = vector.load %arg13[%c0_34, %c0_35] : memref<32x128xf32, #tpu.memory_space<vmem>>, vector<32x128xf32>
    tpu.vector_store %arg13[%c0_34, %c0_35], %65 {strides = array<i32>} : memref<32x128xf32, #tpu.memory_space<vmem>>, vector<32x128xf32>,
    return
  }
  func.func @transform_0(%arg0: i32) -> (i32, i32, i32) {
    %c0_i32 = arith.constant 0 : i32
    %c0_i32_0 = arith.constant 0 : i32
    %c0_i32_1 = arith.constant 0 : i32
    return %arg0, %c0_i32, %c0_i32_0 : i32, i32, i32
  }
  func.func @transform_1(%arg0: i32) -> (i32, i32) {
    %c0_i32 = arith.constant 0 : i32
    %c0_i32_0 = arith.constant 0 : i32
    return %arg0, %c0_i32 : i32, i32
  }
  func.func @transform_2(%arg0: i32) -> (i32, i32) {
    %c0_i32 = arith.constant 0 : i32
    %c0_i32_0 = arith.constant 0 : i32
    %c0_i32_1 = arith.constant 0 : i32
    return %c0_i32, %c0_i32_0 : i32, i32
  }
  func.func @transform_3(%arg0: i32) -> (i32, i32) {
    %c0_i32 = arith.constant 0 : i32
    %c0_i32_0 = arith.constant 0 : i32
    %c0_i32_1 = arith.constant 0 : i32
    return %c0_i32, %c0_i32_0 : i32, i32
  }
  func.func @transform_4(%arg0: i32) -> (i32, i32) {
    %c0_i32 = arith.constant 0 : i32
    %c0_i32_0 = arith.constant 0 : i32
    %c0_i32_1 = arith.constant 0 : i32
    return %c0_i32, %c0_i32_0 : i32, i32
  }
  func.func @transform_5(%arg0: i32) -> (i32, i32) {
    %c0_i32 = arith.constant 0 : i32
    %c0_i32_0 = arith.constant 0 : i32
    %c0_i32_1 = arith.constant 0 : i32
    return %c0_i32, %c0_i32_0 : i32, i32
  }
  func.func @transform_6(%arg0: i32) -> (i32, i32) {
    %c0_i32 = arith.constant 0 : i32
    %c0_i32_0 = arith.constant 0 : i32
    %c0_i32_1 = arith.constant 0 : i32
    return %c0_i32, %c0_i32_0 : i32, i32
  }
  func.func @transform_7(%arg0: i32) -> (i32, i32) {
    %c0_i32 = arith.constant 0 : i32
    %c0_i32_0 = arith.constant 0 : i32
    %c0_i32_1 = arith.constant 0 : i32
    return %c0_i32, %c0_i32_0 : i32, i32
  }
  func.func @transform_8(%arg0: i32) -> (i32, i32) {
    %c0_i32 = arith.constant 0 : i32
    %c0_i32_0 = arith.constant 0 : i32
    %c0_i32_1 = arith.constant 0 : i32
    return %c0_i32, %c0_i32_0 : i32, i32
  }
  func.func @transform_9(%arg0: i32) -> (i32, i32) {
    %c0_i32 = arith.constant 0 : i32
    %c0_i32_0 = arith.constant 0 : i32
    %c0_i32_1 = arith.constant 0 : i32
    return %c0_i32, %c0_i32_0 : i32, i32
  }
  func.func @transform_10(%arg0: i32) -> (i32, i32) {
    %c0_i32 = arith.constant 0 : i32
    %c0_i32_0 = arith.constant 0 : i32
    %c0_i32_1 = arith.constant 0 : i32
    return %c0_i32, %c0_i32_0 : i32, i32
  }
  func.func @transform_11(%arg0: i32) -> (i32, i32) {
    %c0_i32 = arith.constant 0 : i32
    %c0_i32_0 = arith.constant 0 : i32
    %c0_i32_1 = arith.constant 0 : i32
    return %c0_i32, %c0_i32_0 : i32, i32
  }
  func.func @transform_12(%arg0: i32) -> (i32, i32) {
    %c0_i32 = arith.constant 0 : i32
    %c0_i32_0 = arith.constant 0 : i32
    return %arg0, %c0_i32 : i32, i32
  }
}

module attributes {stable_mosaic.version = 11 : i64} {
  func.func @intent_kernel(%arg0: i32, %arg1: memref<32x16x32xf32, #tpu.memory_space<vmem>>, %arg2: memref<32x32xf32, #tpu.memory_space<vmem>>, %arg3: memref<32x128xf32, #tpu.memory_space<vmem>>, %arg4: memref<1x128xf32, #tpu.memory_space<vmem>>, %arg5: memref<32x128xf32, #tpu.memory_space<vmem>>, %arg6: memref<1x128xf32, #tpu.memory_space<vmem>>, %arg7: memref<1x128xf32, #tpu.memory_space<vmem>>, %arg8: memref<1x1xf32, #tpu.memory_space<vmem>>, %arg9: memref<32x128xf32, #tpu.memory_space<vmem>>, %arg10: memref<1x128xf32, #tpu.memory_space<vmem>>, %arg11: memref<128x128xf32, #tpu.memory_space<vmem>>, %arg12: memref<1x128xf32, #tpu.memory_space<vmem>>, %arg13: memref<32x128xf32, #tpu.memory_space<vmem>>) attributes {dimension_semantics = [#tpu.dimension_semantics<parallel>], iteration_bounds = array<i64: 1>, scalar_prefetch = 0 : i64, scratch_operands = 0 : i64, tpu.core_type = #tpu.core_type<tc>, window_params = [{transform_indices = @transform_0, window_bounds = array<i64: 32, 16, 32>}, {transform_indices = @transform_1, window_bounds = array<i64: 32, 32>}, {pipeline_mode = #tpu.pipeline_mode<synchronous>, transform_indices = @transform_2, window_bounds = array<i64: 32, 128>}, {pipeline_mode = #tpu.pipeline_mode<synchronous>, transform_indices = @transform_3, window_bounds = array<i64: 1, 128>}, {pipeline_mode = #tpu.pipeline_mode<synchronous>, transform_indices = @transform_4, window_bounds = array<i64: 32, 128>}, {pipeline_mode = #tpu.pipeline_mode<synchronous>, transform_indices = @transform_5, window_bounds = array<i64: 1, 128>}, {pipeline_mode = #tpu.pipeline_mode<synchronous>, transform_indices = @transform_6, window_bounds = array<i64: 1, 128>}, {pipeline_mode = #tpu.pipeline_mode<synchronous>, transform_indices = @transform_7, window_bounds = array<i64: 1, 1>}, {pipeline_mode = #tpu.pipeline_mode<synchronous>, transform_indices = @transform_8, window_bounds = array<i64: 32, 128>}, {pipeline_mode = #tpu.pipeline_mode<synchronous>, transform_indices = @transform_9, window_bounds = array<i64: 1, 128>}, {pipeline_mode = #tpu.pipeline_mode<synchronous>, transform_indices = @transform_10, window_bounds = array<i64: 128, 128>}, {pipeline_mode = #tpu.pipeline_mode<synchronous>, transform_indices = @transform_11, window_bounds = array<i64: 1, 128>}, {transform_indices = @transform_12, window_bounds = array<i64: 32, 128>}]} {
    %c0 = arith.constant 0 : index
    %c0_0 = arith.constant 0 : index
    %c0_1 = arith.constant 0 : index
    %0 = vector.load %arg1[%c0, %c0_0, %c0_1] : memref<32x16x32xf32, #tpu.memory_space<vmem>>, vector<32x16x32xf32>
    %c0_2 = arith.constant 0 : index
    %c0_3 = arith.constant 0 : index
    %1 = vector.load %arg2[%c0_2, %c0_3] : memref<32x32xf32, #tpu.memory_space<vmem>>, vector<32x32xf32>
    %c0_4 = arith.constant 0 : index
    %c0_5 = arith.constant 0 : index
    %2 = vector.load %arg5[%c0_4, %c0_5] : memref<32x128xf32, #tpu.memory_space<vmem>>, vector<32x128xf32>
    %cst = arith.constant dense<0.000000e+00> : vector<32x128xf32>
    %3 = tpu.matmul %1, %2, %cst {dimension_numbers = #tpu.dot_dimension_numbers<[1], [0], [0], [1], [0, 0, 1, 1], [], []>} : vector<32x32xf32>, vector<32x128xf32>, vector<32x128xf32> -> vector<32x128xf32>
    %c0_6 = arith.constant 0 : index
    %c0_7 = arith.constant 0 : index
    %4 = vector.load %arg6[%c0_6, %c0_7] : memref<1x128xf32, #tpu.memory_space<vmem>>, vector<1x128xf32>
    %5 = vector.broadcast %4 : vector<1x128xf32> to vector<32x128xf32>
    %6 = arith.addf %3, %5 : vector<32x128xf32>
    %7 = vector.shape_cast %0 : vector<32x16x32xf32> to vector<512x32xf32>
    %c0_8 = arith.constant 0 : index
    %c0_9 = arith.constant 0 : index
    %8 = vector.load %arg3[%c0_8, %c0_9] : memref<32x128xf32, #tpu.memory_space<vmem>>, vector<32x128xf32>
    %cst_10 = arith.constant dense<0.000000e+00> : vector<512x128xf32>
    %9 = tpu.matmul %7, %8, %cst_10 {dimension_numbers = #tpu.dot_dimension_numbers<[1], [0], [0], [1], [0, 0, 1, 1], [], []>} : vector<512x32xf32>, vector<32x128xf32>, vector<512x128xf32> -> vector<512x128xf32>
    %c0_11 = arith.constant 0 : index
    %c0_12 = arith.constant 0 : index
    %10 = vector.load %arg4[%c0_11, %c0_12] : memref<1x128xf32, #tpu.memory_space<vmem>>, vector<1x128xf32>
    %11 = vector.broadcast %10 : vector<1x128xf32> to vector<512x128xf32>
    %12 = arith.addf %9, %11 : vector<512x128xf32>
    %13 = vector.shape_cast %12 : vector<512x128xf32> to vector<32x16x128xf32>
    %14 = vector.shape_cast %6 : vector<32x128xf32> to vector<32x1x128xf32>
    %15 = vector.broadcast %14 : vector<32x1x128xf32> to vector<32x16x128xf32>
    %16 = arith.addf %13, %15 : vector<32x16x128xf32>
    %17 = math.tanh %16 : vector<32x16x128xf32>
    %c0_13 = arith.constant 0 : index
    %c0_14 = arith.constant 0 : index
    %18 = vector.load %arg7[%c0_13, %c0_14] : memref<1x128xf32, #tpu.memory_space<vmem>>, vector<1x128xf32>
    %19 = vector.shape_cast %18 : vector<1x128xf32> to vector<1x1x128xf32>
    %20 = vector.broadcast %19 : vector<1x1x128xf32> to vector<32x16x128xf32>
    %21 = arith.mulf %17, %20 : vector<32x16x128xf32>
    %cst_15 = arith.constant dense<0.000000e+00> : vector<32x16xf32>
    %22 = vector.multi_reduction <add>, %21, %cst_15 [2] : vector<32x16x128xf32> to vector<32x16xf32>
    %23 = vector.shape_cast %22 : vector<32x16xf32> to vector<32x16x1xf32>
    %c0_16 = arith.constant 0 : index
    %c0_17 = arith.constant 0 : index
    %24 = vector.load %arg8[%c0_16, %c0_17] : memref<1x1xf32, #tpu.memory_space<vmem>>, vector<1x1xf32>
    %25 = vector.shape_cast %24 : vector<1x1xf32> to vector<1x1x1xf32>
    %26 = vector.broadcast %25 : vector<1x1x1xf32> to vector<32x16x1xf32>
    %27 = arith.addf %23, %26 : vector<32x16x1xf32>
    %cst_18 = arith.constant dense<0xFF800000> : vector<32x1xf32>
    %28 = vector.multi_reduction <maximumf>, %27, %cst_18 [1] : vector<32x16x1xf32> to vector<32x1xf32>
    %29 = vector.shape_cast %28 : vector<32x1xf32> to vector<32x1x1xf32>
    %30 = vector.broadcast %29 : vector<32x1x1xf32> to vector<32x16x1xf32>
    %31 = arith.subf %27, %30 : vector<32x16x1xf32>
    %32 = math.exp %31 : vector<32x16x1xf32>
    %cst_19 = arith.constant dense<0.000000e+00> : vector<32x1xf32>
    %33 = vector.multi_reduction <add>, %32, %cst_19 [1] : vector<32x16x1xf32> to vector<32x1xf32>
    %34 = vector.shape_cast %33 : vector<32x1xf32> to vector<32x1x1xf32>
    %35 = math.log %34 : vector<32x1x1xf32>
    %36 = arith.addf %35, %29 : vector<32x1x1xf32>
    %37 = vector.broadcast %36 : vector<32x1x1xf32> to vector<32x16x1xf32>
    %38 = arith.subf %27, %37 : vector<32x16x1xf32>
    %39 = vector.broadcast %38 : vector<32x16x1xf32> to vector<32x16x32xf32>
    %40 = arith.mulf %0, %39 : vector<32x16x32xf32>
    %cst_20 = arith.constant dense<0.000000e+00> : vector<32x32xf32>
    %41 = vector.multi_reduction <add>, %40, %cst_20 [1] : vector<32x16x32xf32> to vector<32x32xf32>
    %42 = math.tanh %41 : vector<32x32xf32>
    %c0_21 = arith.constant 0 : index
    %c0_22 = arith.constant 0 : index
    %43 = vector.load %arg9[%c0_21, %c0_22] : memref<32x128xf32, #tpu.memory_space<vmem>>, vector<32x128xf32>
    %cst_23 = arith.constant dense<0.000000e+00> : vector<32x128xf32>
    %44 = tpu.matmul %42, %43, %cst_23 {dimension_numbers = #tpu.dot_dimension_numbers<[1], [0], [0], [1], [0, 0, 1, 1], [], []>} : vector<32x32xf32>, vector<32x128xf32>, vector<32x128xf32> -> vector<32x128xf32>
    %c0_24 = arith.constant 0 : index
    %c0_25 = arith.constant 0 : index
    %45 = vector.load %arg10[%c0_24, %c0_25] : memref<1x128xf32, #tpu.memory_space<vmem>>, vector<1x128xf32>
    %46 = vector.broadcast %45 : vector<1x128xf32> to vector<32x128xf32>
    %47 = arith.addf %44, %46 : vector<32x128xf32>
    %cst_26 = arith.constant 0.000000e+00 : f32
    %48 = vector.broadcast %cst_26 : f32 to vector<32x128xf32>
    %49 = arith.maximumf %47, %48 : vector<32x128xf32>
    %c0_27 = arith.constant 0 : index
    %c0_28 = arith.constant 0 : index
    %50 = vector.load %arg11[%c0_27, %c0_28] : memref<128x128xf32, #tpu.memory_space<vmem>>, vector<128x128xf32>
    %cst_29 = arith.constant dense<0.000000e+00> : vector<32x128xf32>
    %51 = tpu.matmul %49, %50, %cst_29 {dimension_numbers = #tpu.dot_dimension_numbers<[1], [0], [0], [1], [0, 0, 1, 1], [], []>} : vector<32x128xf32>, vector<128x128xf32>, vector<32x128xf32> -> vector<32x128xf32>
    %c0_30 = arith.constant 0 : index
    %c0_31 = arith.constant 0 : index
    %52 = vector.load %arg12[%c0_30, %c0_31] : memref<1x128xf32, #tpu.memory_space<vmem>>, vector<1x128xf32>
    %53 = vector.broadcast %52 : vector<1x128xf32> to vector<32x128xf32>
    %54 = arith.addf %51, %53 : vector<32x128xf32>
    %cst_32 = arith.constant dense<0xFF800000> : vector<32xf32>
    %55 = vector.multi_reduction <maximumf>, %54, %cst_32 [1] : vector<32x128xf32> to vector<32xf32>
    %56 = vector.shape_cast %55 : vector<32xf32> to vector<32x1xf32>
    %57 = vector.broadcast %56 : vector<32x1xf32> to vector<32x128xf32>
    %58 = arith.subf %54, %57 : vector<32x128xf32>
    %59 = math.exp %58 : vector<32x128xf32>
    %cst_33 = arith.constant dense<0.000000e+00> : vector<32xf32>
    %60 = vector.multi_reduction <add>, %59, %cst_33 [1] : vector<32x128xf32> to vector<32xf32>
    %61 = vector.shape_cast %60 : vector<32xf32> to vector<32x1xf32>
    %62 = math.log %61 : vector<32x1xf32>
    %63 = arith.addf %62, %56 : vector<32x1xf32>
    %64 = vector.broadcast %63 : vector<32x1xf32> to vector<32x128xf32>
    %65 = arith.subf %54, %64 : vector<32x128xf32>
    %c0_34 = arith.constant 0 : index
    %c0_35 = arith.constant 0 : index
    %66 = vector.load %arg13[%c0_34, %c0_35] : memref<32x128xf32, #tpu.memory_space<vmem>>, vector<32x128xf32>
    tpu.vector_store %arg13[%c0_34, %c0_35], %65 {strides = array<i32>} : memref<32x128xf32, #tpu.memory_space<vmem>>, vector<32x128xf32>,
    return
  }
  func.func @transform_0(%arg0: i32) -> (i32, i32, i32) {
    %c0_i32 = arith.constant 0 : i32
    %c0_i32_0 = arith.constant 0 : i32
    %c0_i32_1 = arith.constant 0 : i32
    return %arg0, %c0_i32, %c0_i32_0 : i32, i32, i32
  }
  func.func @transform_1(%arg0: i32) -> (i32, i32) {
    %c0_i32 = arith.constant 0 : i32
    %c0_i32_0 = arith.constant 0 : i32
    return %arg0, %c0_i32 : i32, i32
  }
  func.func @transform_2(%arg0: i32) -> (i32, i32) {
    %c0_i32 = arith.constant 0 : i32
    %c0_i32_0 = arith.constant 0 : i32
    %c0_i32_1 = arith.constant 0 : i32
    return %c0_i32, %c0_i32_0 : i32, i32
  }
  func.func @transform_3(%arg0: i32) -> (i32, i32) {
    %c0_i32 = arith.constant 0 : i32
    %c0_i32_0 = arith.constant 0 : i32
    %c0_i32_1 = arith.constant 0 : i32
    return %c0_i32, %c0_i32_0 : i32, i32
  }
  func.func @transform_4(%arg0: i32) -> (i32, i32) {
    %c0_i32 = arith.constant 0 : i32
    %c0_i32_0 = arith.constant 0 : i32
    %c0_i32_1 = arith.constant 0 : i32
    return %c0_i32, %c0_i32_0 : i32, i32
  }
  func.func @transform_5(%arg0: i32) -> (i32, i32) {
    %c0_i32 = arith.constant 0 : i32
    %c0_i32_0 = arith.constant 0 : i32
    %c0_i32_1 = arith.constant 0 : i32
    return %c0_i32, %c0_i32_0 : i32, i32
  }
  func.func @transform_6(%arg0: i32) -> (i32, i32) {
    %c0_i32 = arith.constant 0 : i32
    %c0_i32_0 = arith.constant 0 : i32
    %c0_i32_1 = arith.constant 0 : i32
    return %c0_i32, %c0_i32_0 : i32, i32
  }
  func.func @transform_7(%arg0: i32) -> (i32, i32) {
    %c0_i32 = arith.constant 0 : i32
    %c0_i32_0 = arith.constant 0 : i32
    %c0_i32_1 = arith.constant 0 : i32
    return %c0_i32, %c0_i32_0 : i32, i32
  }
  func.func @transform_8(%arg0: i32) -> (i32, i32) {
    %c0_i32 = arith.constant 0 : i32
    %c0_i32_0 = arith.constant 0 : i32
    %c0_i32_1 = arith.constant 0 : i32
    return %c0_i32, %c0_i32_0 : i32, i32
  }
  func.func @transform_9(%arg0: i32) -> (i32, i32) {
    %c0_i32 = arith.constant 0 : i32
    %c0_i32_0 = arith.constant 0 : i32
    %c0_i32_1 = arith.constant 0 : i32
    return %c0_i32, %c0_i32_0 : i32, i32
  }
  func.func @transform_10(%arg0: i32) -> (i32, i32) {
    %c0_i32 = arith.constant 0 : i32
    %c0_i32_0 = arith.constant 0 : i32
    %c0_i32_1 = arith.constant 0 : i32
    return %c0_i32, %c0_i32_0 : i32, i32
  }
  func.func @transform_11(%arg0: i32) -> (i32, i32) {
    %c0_i32 = arith.constant 0 : i32
    %c0_i32_0 = arith.constant 0 : i32
    %c0_i32_1 = arith.constant 0 : i32
    return %c0_i32, %c0_i32_0 : i32, i32
  }
  func.func @transform_12(%arg0: i32) -> (i32, i32) {
    %c0_i32 = arith.constant 0 : i32
    %c0_i32_0 = arith.constant 0 : i32
    return %arg0, %c0_i32 : i32, i32
  }
}

</mosaic_0001>

<llo_original>
// kernel: intent_forward.1
$region0: #{intent_forward.1}
  #allocation0 [shape = 'u32[]', space=smem, size = 0x4, offset = 0x4, fixed_abs, tag = 'smem constant byte address 0x4 - core index']
  #allocation1 [shape = 'u32[72,128]{1,0:T(1,128)}', space=vmem, size = 0x9000, scoped, tag = 'internal scratch']
  #allocation2 [shape = 'f32[1,1]{1,0:T(1,128)S(1)}', space=vmem, size = 0x200, scoped, tag = 'scoped memory for intent_forward.1']
  %s0 = inlined_call_operand.vmem [shape: f32[32,16,32], index: 0, kind: input, shape index: {}]
  %s1 = inlined_call_operand.vmem [shape: f32[32,32], index: 1, kind: input, shape index: {}]
  %s2 = inlined_call_operand.vmem [shape: f32[32,128], index: 2, kind: input, shape index: {}]
  %s3 = inlined_call_operand.vmem [shape: f32[1,128], index: 3, kind: input, shape index: {}]
  %s4 = inlined_call_operand.vmem [shape: f32[32,128], index: 4, kind: input, shape index: {}]
  %s5 = inlined_call_operand.vmem [shape: f32[1,128], index: 5, kind: input, shape index: {}]
  %s6 = inlined_call_operand.vmem [shape: f32[1,128], index: 6, kind: input, shape index: {}]
  %s7 = inlined_call_operand.<no memory space> [shape: f32[1,1], index: 7, kind: input, shape index: {}]
  %s8 = inlined_call_operand.vmem [shape: f32[32,128], index: 8, kind: input, shape index: {}]
  %s9 = inlined_call_operand.vmem [shape: f32[1,128], index: 9, kind: input, shape index: {}]
  %s10 = inlined_call_operand.vmem [shape: f32[128,128], index: 10, kind: input, shape index: {}]
  %s11 = inlined_call_operand.vmem [shape: f32[1,128], index: 11, kind: input, shape index: {}]
  %s12 = inlined_call_operand.vmem [shape: f32[32,128], index: 12, kind: output, shape index: {}]
  %s13 = sld [smem:[#allocation0]]
  $region58: #{intent_forward.1} parent=0
    _
  %s15 = ssub.s32 1, %s13
  %s16 = scalar_select 0, %s15, %s13
  %v17 = vstv %s7
  %18 = vst [vmem:[#allocation2] sm:$0x1] %v17
  // Predicated region
  $region2: #{intent_forward.1} parent=0 // pred_check
    _
  $region3: #{intent_forward.1} parent=0 // pred_check_branch
    %20 = sbr.rel (0) target = $region5
  $region4: #{intent_forward.1} parent=0 // pred_region
    _
  $region5: #{intent_forward.1} parent=0 // pred_fallthru
    _
  // Predicated region
  $region6: #{intent_forward.1} parent=0 // pred_check
    _
  $region7: #{intent_forward.1} parent=0 // pred_check_branch
    %22 = sbr.rel (0) target = $region9
  $region8: #{intent_forward.1} parent=0 // pred_region
    _
  $region9: #{intent_forward.1} parent=0 // pred_fallthru
    _
  // Predicated region
  $region10: #{intent_forward.1} parent=0 // pred_check
    _
  $region11: #{intent_forward.1} parent=0 // pred_check_branch
    %24 = sbr.rel (0) target = $region13
  $region12: #{intent_forward.1} parent=0 // pred_region
    _
  $region13: #{intent_forward.1} parent=0 // pred_fallthru
    _
  // Predicated region
  $region14: #{intent_forward.1} parent=0 // pred_check
    _
  $region15: #{intent_forward.1} parent=0 // pred_check_branch
    %26 = sbr.rel (0) target = $region17
  $region16: #{intent_forward.1} parent=0 // pred_region
    _
  $region17: #{intent_forward.1} parent=0 // pred_fallthru
    _
  // Predicated region
  $region18: #{intent_forward.1} parent=0 // pred_check
    _
  $region19: #{intent_forward.1} parent=0 // pred_check_branch
    %28 = sbr.rel (0) target = $region21
  $region20: #{intent_forward.1} parent=0 // pred_region
    _
  $region21: #{intent_forward.1} parent=0 // pred_fallthru
    _
  // Predicated region
  $region22: #{intent_forward.1} parent=0 // pred_check
    _
  $region23: #{intent_forward.1} parent=0 // pred_check_branch
    %30 = sbr.rel (0) target = $region25
  $region24: #{intent_forward.1} parent=0 // pred_region
    _
  $region25: #{intent_forward.1} parent=0 // pred_fallthru
    _
  // Predicated region
  $region26: #{intent_forward.1} parent=0 // pred_check
    _
  $region27: #{intent_forward.1} parent=0 // pred_check_branch
    %32 = sbr.rel (0) target = $region29
  $region28: #{intent_forward.1} parent=0 // pred_region
    _
  $region29: #{intent_forward.1} parent=0 // pred_fallthru
    _
  // Predicated region
  $region30: #{intent_forward.1} parent=0 // pred_check
    _
  $region31: #{intent_forward.1} parent=0 // pred_check_branch
    %34 = sbr.rel (0) target = $region33
  $region32: #{intent_forward.1} parent=0 // pred_region
    _
  $region33: #{intent_forward.1} parent=0 // pred_fallthru
    _
  // Predicated region
  $region34: #{intent_forward.1} parent=0 // pred_check
    _
  $region35: #{intent_forward.1} parent=0 // pred_check_branch
    %36 = sbr.rel (0) target = $region37
  $region36: #{intent_forward.1} parent=0 // pred_region
    _
  $region37: #{intent_forward.1} parent=0 // pred_fallthru
    _
  // Predicated region
  $region38: #{intent_forward.1} parent=0 // pred_check
    _
  $region39: #{intent_forward.1} parent=0 // pred_check_branch
    %38 = sbr.rel (0) target = $region41
  $region40: #{intent_forward.1} parent=0 // pred_region
    _
  $region41: #{intent_forward.1} parent=0 // pred_fallthru
    _
  // Predicated region
  $region42: #{intent_forward.1} parent=0 // pred_check
    _
  $region43: #{intent_forward.1} parent=0 // pred_check_branch
    %40 = sbr.rel (0) target = $region45
  $region44: #{intent_forward.1} parent=0 // pred_region
    _
  $region45: #{intent_forward.1} parent=0 // pred_fallthru
    _
  // Predicated region
  $region46: #{intent_forward.1} parent=0 // pred_check
    _
  $region47: #{intent_forward.1} parent=0 // pred_check_branch
    %42 = sbr.rel (0) target = $region49
  $region48: #{intent_forward.1} parent=0 // pred_region
    _
  $region49: #{intent_forward.1} parent=0 // pred_fallthru
    _
  %v43 = vld [vmem:[%s0] sm:$0xff]
  %v44 = vld [vmem:[%s0 + $0x8] sm:$0xff]
  %v45 = vld [vmem:[%s0 + $0x10] sm:$0xff]
  %v46 = vld [vmem:[%s0 + $0x18] sm:$0xff]
  %v47 = vld [vmem:[%s0 + $0x20] sm:$0xff]
  %v48 = vld [vmem:[%s0 + $0x28] sm:$0xff]
  %v49 = vld [vmem:[%s0 + $0x30] sm:$0xff]
  %v50 = vld [vmem:[%s0 + $0x38] sm:$0xff]
  %v51 = vld [vmem:[%s0 + $0x40] sm:$0xff]
  %v52 = vld [vmem:[%s0 + $0x48] sm:$0xff]
  %v53 = vld [vmem:[%s0 + $0x50] sm:$0xff]
  %v54 = vld [vmem:[%s0 + $0x58] sm:$0xff]
  %v55 = vld [vmem:[%s0 + $0x60] sm:$0xff]
  %v56 = vld [vmem:[%s0 + $0x68] sm:$0xff]
  %v57 = vld [vmem:[%s0 + $0x70] sm:$0xff]
  %v58 = vld [vmem:[%s0 + $0x78] sm:$0xff]
  %v59 = vld [vmem:[%s0 + $0x80] sm:$0xff]
  %v60 = vld [vmem:[%s0 + $0x88] sm:$0xff]
  %v61 = vld [vmem:[%s0 + $0x90] sm:$0xff]
  %v62 = vld [vmem:[%s0 + $0x98] sm:$0xff]
  %v63 = vld [vmem:[%s0 + $0xa0] sm:$0xff]
  %v64 = vld [vmem:[%s0 + $0xa8] sm:$0xff]
  %v65 = vld [vmem:[%s0 + $0xb0] sm:$0xff]
  %v66 = vld [vmem:[%s0 + $0xb8] sm:$0xff]
  %v67 = vld [vmem:[%s0 + $0xc0] sm:$0xff]
  %v68 = vld [vmem:[%s0 + $0xc8] sm:$0xff]
  %v69 = vld [vmem:[%s0 + $0xd0] sm:$0xff]
  %v70 = vld [vmem:[%s0 + $0xd8] sm:$0xff]
  %v71 = vld [vmem:[%s0 + $0xe0] sm:$0xff]
  %v72 = vld [vmem:[%s0 + $0xe8] sm:$0xff]
  %v73 = vld [vmem:[%s0 + $0xf0] sm:$0xff]
  %v74 = vld [vmem:[%s0 + $0xf8] sm:$0xff]
  %v75 = vld [vmem:[%s0 + $0x100] sm:$0xff]
  %v76 = vld [vmem:[%s0 + $0x108] sm:$0xff]
  %v77 = vld [vmem:[%s0 + $0x110] sm:$0xff]
  %v78 = vld [vmem:[%s0 + $0x118] sm:$0xff]
  %v79 = vld [vmem:[%s0 + $0x120] sm:$0xff]
  %v80 = vld [vmem:[%s0 + $0x128] sm:$0xff]
  %v81 = vld [vmem:[%s0 + $0x130] sm:$0xff]
  %v82 = vld [vmem:[%s0 + $0x138] sm:$0xff]
  %v83 = vld [vmem:[%s0 + $0x140] sm:$0xff]
  %v84 = vld [vmem:[%s0 + $0x148] sm:$0xff]
  %v85 = vld [vmem:[%s0 + $0x150] sm:$0xff]
  %v86 = vld [vmem:[%s0 + $0x158] sm:$0xff]
  %v87 = vld [vmem:[%s0 + $0x160] sm:$0xff]
  %v88 = vld [vmem:[%s0 + $0x168] sm:$0xff]
  %v89 = vld [vmem:[%s0 + $0x170] sm:$0xff]
  %v90 = vld [vmem:[%s0 + $0x178] sm:$0xff]
  %v91 = vld [vmem:[%s0 + $0x180] sm:$0xff]
  %v92 = vld [vmem:[%s0 + $0x188] sm:$0xff]
  %v93 = vld [vmem:[%s0 + $0x190] sm:$0xff]
  %v94 = vld [vmem:[%s0 + $0x198] sm:$0xff]
  %v95 = vld [vmem:[%s0 + $0x1a0] sm:$0xff]
  %v96 = vld [vmem:[%s0 + $0x1a8] sm:$0xff]
  %v97 = vld [vmem:[%s0 + $0x1b0] sm:$0xff]
  %v98 = vld [vmem:[%s0 + $0x1b8] sm:$0xff]
  %v99 = vld [vmem:[%s0 + $0x1c0] sm:$0xff]
  %v100 = vld [vmem:[%s0 + $0x1c8] sm:$0xff]
  %v101 = vld [vmem:[%s0 + $0x1d0] sm:$0xff]
  %v102 = vld [vmem:[%s0 + $0x1d8] sm:$0xff]
  %v103 = vld [vmem:[%s0 + $0x1e0] sm:$0xff]
  %v104 = vld [vmem:[%s0 + $0x1e8] sm:$0xff]
  %v105 = vld [vmem:[%s0 + $0x1f0] sm:$0xff]
  %v106 = vld [vmem:[%s0 + $0x1f8] sm:$0xff]
  %v107 = vld [vmem:[%s1] sm:$0xff]
  %v108 = vld [vmem:[%s1 + $0x8] sm:$0xff]
  %v109 = vld [vmem:[%s1 + $0x10] sm:$0xff]
  %v110 = vld [vmem:[%s1 + $0x18] sm:$0xff]
  %v111 = vld [vmem:[%s4] sm:$0xff]
  %v112 = vld [vmem:[%s4 + $0x8] sm:$0xff]
  %v113 = vld [vmem:[%s4 + $0x10] sm:$0xff]
  %v114 = vld [vmem:[%s4 + $0x18] sm:$0xff]
  %v115 = vld [vmem:[%s5] sm:$0x1]
  %v117 = vperm.slane %v115, 0
  %vm119 = vcmask 261120
  %v121 = vsel %vm119, %v107, 0
  %v124 = vsel %vm119, %v108, 0
  %v127 = vsel %vm119, %v109, 0
  %v130 = vsel %vm119, %v110, 0
  %132 = vmatpush.msra.mxu0 0.0
  %133 = vmatpush.msra.mxu0 0.0
  %134 = vmatpush.msra.mxu0 0.0
  %135 = vmatpush.msra.mxu0 0.0
  %136 = vmatpush.msra.mxu0 0.0
  %137 = vmatpush.msra.mxu0 0.0
  %138 = vmatpush.msra.mxu0 0.0
  %139 = vmatpush.msra.mxu0 0.0
  %140 = vmatpush.msra.mxu0 0.0
  %141 = vmatpush.msra.mxu0 0.0
  %142 = vmatpush.msra.mxu0 0.0
  %143 = vmatpush.msra.mxu0 0.0
  %144 = vmatpush.msra.mxu0 %v114
  %145 = vmatpush.msra.mxu0 %v113
  %146 = vmatpush.msra.mxu0 %v112
  %147 = vmatpush.msra.mxu0 %v111
  %148 = vmatmul.f32.gmra.mxu0 %v121
  %v149 = vpop.f32.mrf.mxu0
  %v150 = vadd.f32 %v117, %v149
  %151 = vmatmul.f32.gmra.mxu0 %v124
  %v152 = vpop.f32.mrf.mxu0
  %v153 = vadd.f32 %v117, %v152
  %154 = vmatmul.f32.gmra.mxu0 %v127
  %v155 = vpop.f32.mrf.mxu0
  %v156 = vadd.f32 %v117, %v155
  %157 = vmatmul.f32.gmra.mxu0 %v130
  %v158 = vpop.f32.mrf.mxu0
  %v159 = vadd.f32 %v117, %v158
  %160 = vdwg.mxu0
  %v161 = vld [vmem:[%s2] sm:$0xff]
  %v162 = vld [vmem:[%s2 + $0x8] sm:$0xff]
  %v163 = vld [vmem:[%s2 + $0x10] sm:$0xff]
  %v164 = vld [vmem:[%s2 + $0x18] sm:$0xff]
  %v165 = vld [vmem:[%s3] sm:$0x1]
  %v167 = vperm.slane %v165, 0
  %v170 = vsel %vm119, %v43, 0
  %v173 = vsel %vm119, %v44, 0
  %v176 = vsel %vm119, %v45, 0
  %v179 = vsel %vm119, %v46, 0
  %v182 = vsel %vm119, %v47, 0
  %v185 = vsel %vm119, %v48, 0
  %v188 = vsel %vm119, %v49, 0
  %v191 = vsel %vm119, %v50, 0
  %v194 = vsel %vm119, %v51, 0
  %v197 = vsel %vm119, %v52, 0
  %v200 = vsel %vm119, %v53, 0
  %v203 = vsel %vm119, %v54, 0
  %v206 = vsel %vm119, %v55, 0
  %v209 = vsel %vm119, %v56, 0
  %v212 = vsel %vm119, %v57, 0
  %v215 = vsel %vm119, %v58, 0
  %v218 = vsel %vm119, %v59, 0
  %v221 = vsel %vm119, %v60, 0
  %v224 = vsel %vm119, %v61, 0
  %v227 = vsel %vm119, %v62, 0
  %v230 = vsel %vm119, %v63, 0
  %v233 = vsel %vm119, %v64, 0
  %v236 = vsel %vm119, %v65, 0
  %v239 = vsel %vm119, %v66, 0
  %v242 = vsel %vm119, %v67, 0
  %v245 = vsel %vm119, %v68, 0
  %v248 = vsel %vm119, %v69, 0
  %v251 = vsel %vm119, %v70, 0
  %v254 = vsel %vm119, %v71, 0
  %v257 = vsel %vm119, %v72, 0
  %v260 = vsel %vm119, %v73, 0
  %v263 = vsel %vm119, %v74, 0
  %v266 = vsel %vm119, %v75, 0
  %v269 = vsel %vm119, %v76, 0
  %v272 = vsel %vm119, %v77, 0
  %v275 = vsel %vm119, %v78, 0
  %v278 = vsel %vm119, %v79, 0
  %v281 = vsel %vm119, %v80, 0
  %v284 = vsel %vm119, %v81, 0
  %v287 = vsel %vm119, %v82, 0
  %v290 = vsel %vm119, %v83, 0
  %v293 = vsel %vm119, %v84, 0
  %v296 = vsel %vm119, %v85, 0
  %v299 = vsel %vm119, %v86, 0
  %v302 = vsel %vm119, %v87, 0
  %v305 = vsel %vm119, %v88, 0
  %v308 = vsel %vm119, %v89, 0
  %v311 = vsel %vm119, %v90, 0
  %v314 = vsel %vm119, %v91, 0
  %v317 = vsel %vm119, %v92, 0
  %v320 = vsel %vm119, %v93, 0
  %v323 = vsel %vm119, %v94, 0
  %v326 = vsel %vm119, %v95, 0
  %v329 = vsel %vm119, %v96, 0
  %v332 = vsel %vm119, %v97, 0
  %v335 = vsel %vm119, %v98, 0
  %v338 = vsel %vm119, %v99, 0
  %v341 = vsel %vm119, %v100, 0
  %v344 = vsel %vm119, %v101, 0
  %v347 = vsel %vm119, %v102, 0
  %v350 = vsel %vm119, %v103, 0
  %v353 = vsel %vm119, %v104, 0
  %v356 = vsel %vm119, %v105, 0
  %v359 = vsel %vm119, %v106, 0
  %361 = vmatpush.msra.mxu0 0.0
  %362 = vmatpush.msra.mxu0 0.0
  %363 = vmatpush.msra.mxu0 0.0
  %364 = vmatpush.msra.mxu0 0.0
  %365 = vmatpush.msra.mxu0 0.0
  %366 = vmatpush.msra.mxu0 0.0
  %367 = vmatpush.msra.mxu0 0.0
  %368 = vmatpush.msra.mxu0 0.0
  %369 = vmatpush.msra.mxu0 0.0
  %370 = vmatpush.msra.mxu0 0.0
  %371 = vmatpush.msra.mxu0 0.0
  %372 = vmatpush.msra.mxu0 0.0
  %373 = vmatpush.msra.mxu0 %v164
  %374 = vmatpush.msra.mxu0 %v163
  %375 = vmatpush.msra.mxu0 %v162
  %376 = vmatpush.msra.mxu0 %v161
  %377 = vmatmul.f32.gmra.mxu0 %v170
  %v378 = vpop.f32.mrf.mxu0
  %v379 = vadd.f32 %v167, %v378
  %380 = vmatmul.f32.gmra.mxu0 %v173
  %v381 = vpop.f32.mrf.mxu0
  %v382 = vadd.f32 %v167, %v381
  %383 = vmatmul.f32.gmra.mxu0 %v176
  %v384 = vpop.f32.mrf.mxu0
  %v385 = vadd.f32 %v167, %v384
  %386 = vmatmul.f32.gmra.mxu0 %v179
  %v387 = vpop.f32.mrf.mxu0
  %v388 = vadd.f32 %v167, %v387
  %389 = vmatmul.f32.gmra.mxu0 %v182
  %v390 = vpop.f32.mrf.mxu0
  %v391 = vadd.f32 %v167, %v390
  %392 = vmatmul.f32.gmra.mxu0 %v185
  %v393 = vpop.f32.mrf.mxu0
  %v394 = vadd.f32 %v167, %v393
  %395 = vmatmul.f32.gmra.mxu0 %v188
  %v396 = vpop.f32.mrf.mxu0
  %v397 = vadd.f32 %v167, %v396
  %398 = vmatmul.f32.gmra.mxu0 %v191
  %v399 = vpop.f32.mrf.mxu0
  %v400 = vadd.f32 %v167, %v399
  %401 = vmatmul.f32.gmra.mxu0 %v194
  %v402 = vpop.f32.mrf.mxu0
  %v403 = vadd.f32 %v167, %v402
  %404 = vmatmul.f32.gmra.mxu0 %v197
  %v405 = vpop.f32.mrf.mxu0
  %v406 = vadd.f32 %v167, %v405
  %407 = vmatmul.f32.gmra.mxu0 %v200
  %v408 = vpop.f32.mrf.mxu0
  %v409 = vadd.f32 %v167, %v408
  %410 = vmatmul.f32.gmra.mxu0 %v203
  %v411 = vpop.f32.mrf.mxu0
  %v412 = vadd.f32 %v167, %v411
  %413 = vmatmul.f32.gmra.mxu0 %v206
  %v414 = vpop.f32.mrf.mxu0
  %v415 = vadd.f32 %v167, %v414
  %416 = vmatmul.f32.gmra.mxu0 %v209
  %v417 = vpop.f32.mrf.mxu0
  %v418 = vadd.f32 %v167, %v417
  %419 = vmatmul.f32.gmra.mxu0 %v212
  %v420 = vpop.f32.mrf.mxu0
  %v421 = vadd.f32 %v167, %v420
  %422 = vmatmul.f32.gmra.mxu0 %v215
  %v423 = vpop.f32.mrf.mxu0
  %v424 = vadd.f32 %v167, %v423
  %425 = vmatmul.f32.gmra.mxu0 %v218
  %v426 = vpop.f32.mrf.mxu0
  %v427 = vadd.f32 %v167, %v426
  %428 = vmatmul.f32.gmra.mxu0 %v221
  %v429 = vpop.f32.mrf.mxu0
  %v430 = vadd.f32 %v167, %v429
  %431 = vmatmul.f32.gmra.mxu0 %v224
  %v432 = vpop.f32.mrf.mxu0
  %v433 = vadd.f32 %v167, %v432
  %434 = vmatmul.f32.gmra.mxu0 %v227
  %v435 = vpop.f32.mrf.mxu0
  %v436 = vadd.f32 %v167, %v435
  %437 = vmatmul.f32.gmra.mxu0 %v230
  %v438 = vpop.f32.mrf.mxu0
  %v439 = vadd.f32 %v167, %v438
  %440 = vmatmul.f32.gmra.mxu0 %v233
  %v441 = vpop.f32.mrf.mxu0
  %v442 = vadd.f32 %v167, %v441
  %443 = vmatmul.f32.gmra.mxu0 %v236
  %v444 = vpop.f32.mrf.mxu0
  %v445 = vadd.f32 %v167, %v444
  %446 = vmatmul.f32.gmra.mxu0 %v239
  %v447 = vpop.f32.mrf.mxu0
  %v448 = vadd.f32 %v167, %v447
  %449 = vmatmul.f32.gmra.mxu0 %v242
  %v450 = vpop.f32.mrf.mxu0
  %v451 = vadd.f32 %v167, %v450
  %452 = vmatmul.f32.gmra.mxu0 %v245
  %v453 = vpop.f32.mrf.mxu0
  %v454 = vadd.f32 %v167, %v453
  %455 = vmatmul.f32.gmra.mxu0 %v248
  %v456 = vpop.f32.mrf.mxu0
  %v457 = vadd.f32 %v167, %v456
  %458 = vmatmul.f32.gmra.mxu0 %v251
  %v459 = vpop.f32.mrf.mxu0
  %v460 = vadd.f32 %v167, %v459
  %461 = vmatmul.f32.gmra.mxu0 %v254
  %v462 = vpop.f32.mrf.mxu0
  %v463 = vadd.f32 %v167, %v462
  %464 = vmatmul.f32.gmra.mxu0 %v257
  %v465 = vpop.f32.mrf.mxu0
  %v466 = vadd.f32 %v167, %v465
  %467 = vmatmul.f32.gmra.mxu0 %v260
  %v468 = vpop.f32.mrf.mxu0
  %v469 = vadd.f32 %v167, %v468
  %470 = vmatmul.f32.gmra.mxu0 %v263
  %v471 = vpop.f32.mrf.mxu0
  %v472 = vadd.f32 %v167, %v471
  %473 = vmatmul.f32.gmra.mxu0 %v266
  %v474 = vpop.f32.mrf.mxu0
  %v475 = vadd.f32 %v167, %v474
  %476 = vmatmul.f32.gmra.mxu0 %v269
  %v477 = vpop.f32.mrf.mxu0
  %v478 = vadd.f32 %v167, %v477
  %479 = vmatmul.f32.gmra.mxu0 %v272
  %v480 = vpop.f32.mrf.mxu0
  %v481 = vadd.f32 %v167, %v480
  %482 = vmatmul.f32.gmra.mxu0 %v275
  %v483 = vpop.f32.mrf.mxu0
  %v484 = vadd.f32 %v167, %v483
  %485 = vmatmul.f32.gmra.mxu0 %v278
  %v486 = vpop.f32.mrf.mxu0
  %v487 = vadd.f32 %v167, %v486
  %488 = vmatmul.f32.gmra.mxu0 %v281
  %v489 = vpop.f32.mrf.mxu0
  %v490 = vadd.f32 %v167, %v489
  %491 = vmatmul.f32.gmra.mxu0 %v284
  %v492 = vpop.f32.mrf.mxu0
  %v493 = vadd.f32 %v167, %v492
  %494 = vmatmul.f32.gmra.mxu0 %v287
  %v495 = vpop.f32.mrf.mxu0
  %v496 = vadd.f32 %v167, %v495
  %497 = vmatmul.f32.gmra.mxu0 %v290
  %v498 = vpop.f32.mrf.mxu0
  %v499 = vadd.f32 %v167, %v498
  %500 = vmatmul.f32.gmra.mxu0 %v293
  %v501 = vpop.f32.mrf.mxu0
  %v502 = vadd.f32 %v167, %v501
  %503 = vmatmul.f32.gmra.mxu0 %v296
  %v504 = vpop.f32.mrf.mxu0
  %v505 = vadd.f32 %v167, %v504
  %506 = vmatmul.f32.gmra.mxu0 %v299
  %v507 = vpop.f32.mrf.mxu0
  %v508 = vadd.f32 %v167, %v507
  %509 = vmatmul.f32.gmra.mxu0 %v302
  %v510 = vpop.f32.mrf.mxu0
  %v511 = vadd.f32 %v167, %v510
  %512 = vmatmul.f32.gmra.mxu0 %v305
  %v513 = vpop.f32.mrf.mxu0
  %v514 = vadd.f32 %v167, %v513
  %515 = vmatmul.f32.gmra.mxu0 %v308
  %v516 = vpop.f32.mrf.mxu0
  %v517 = vadd.f32 %v167, %v516
  %518 = vmatmul.f32.gmra.mxu0 %v311
  %v519 = vpop.f32.mrf.mxu0
  %v520 = vadd.f32 %v167, %v519
  %521 = vmatmul.f32.gmra.mxu0 %v314
  %v522 = vpop.f32.mrf.mxu0
  %v523 = vadd.f32 %v167, %v522
  %524 = vmatmul.f32.gmra.mxu0 %v317
  %v525 = vpop.f32.mrf.mxu0
  %v526 = vadd.f32 %v167, %v525
  %527 = vmatmul.f32.gmra.mxu0 %v320
  %v528 = vpop.f32.mrf.mxu0
  %v529 = vadd.f32 %v167, %v528
  %530 = vmatmul.f32.gmra.mxu0 %v323
  %v531 = vpop.f32.mrf.mxu0
  %v532 = vadd.f32 %v167, %v531
  %533 = vmatmul.f32.gmra.mxu0 %v326
  %v534 = vpop.f32.mrf.mxu0
  %v535 = vadd.f32 %v167, %v534
  %536 = vmatmul.f32.gmra.mxu0 %v329
  %v537 = vpop.f32.mrf.mxu0
  %v538 = vadd.f32 %v167, %v537
  %539 = vmatmul.f32.gmra.mxu0 %v332
  %v540 = vpop.f32.mrf.mxu0
  %v541 = vadd.f32 %v167, %v540
  %542 = vmatmul.f32.gmra.mxu0 %v335
  %v543 = vpop.f32.mrf.mxu0
  %v544 = vadd.f32 %v167, %v543
  %545 = vmatmul.f32.gmra.mxu0 %v338
  %v546 = vpop.f32.mrf.mxu0
  %v547 = vadd.f32 %v167, %v546
  %548 = vmatmul.f32.gmra.mxu0 %v341
  %v549 = vpop.f32.mrf.mxu0
  %v550 = vadd.f32 %v167, %v549
  %551 = vmatmul.f32.gmra.mxu0 %v344
  %v552 = vpop.f32.mrf.mxu0
  %v553 = vadd.f32 %v167, %v552
  %554 = vmatmul.f32.gmra.mxu0 %v347
  %v555 = vpop.f32.mrf.mxu0
  %v556 = vadd.f32 %v167, %v555
  %557 = vmatmul.f32.gmra.mxu0 %v350
  %v558 = vpop.f32.mrf.mxu0
  %v559 = vadd.f32 %v167, %v558
  %560 = vmatmul.f32.gmra.mxu0 %v353
  %v561 = vpop.f32.mrf.mxu0
  %v562 = vadd.f32 %v167, %v561
  %563 = vmatmul.f32.gmra.mxu0 %v356
  %v564 = vpop.f32.mrf.mxu0
  %v565 = vadd.f32 %v167, %v564
  %566 = vmatmul.f32.gmra.mxu0 %v359
  %v567 = vpop.f32.mrf.mxu0
  %v568 = vadd.f32 %v167, %v567
  %569 = vdwg.mxu0
  %v574 = vrot.slane %v150, 1
  %v575 = vrot.slane %v150, 2
  %v576 = vrot.slane %v150, 3
  %v577 = vrot.slane %v150, 4
  %v578 = vrot.slane %v150, 5
  %v579 = vrot.slane %v150, 6
  %v580 = vrot.slane %v150, 7
  %v581 = vrot.slane %v153, 1
  %v582 = vrot.slane %v153, 2
  %v583 = vrot.slane %v153, 3
  %v584 = vrot.slane %v153, 4
  %v585 = vrot.slane %v153, 5
  %v586 = vrot.slane %v153, 6
  %v587 = vrot.slane %v153, 7
  %v588 = vrot.slane %v156, 1
  %v589 = vrot.slane %v156, 2
  %v590 = vrot.slane %v156, 3
  %v591 = vrot.slane %v156, 4
  %v592 = vrot.slane %v156, 5
  %v593 = vrot.slane %v156, 6
  %v594 = vrot.slane %v156, 7
  %v595 = vrot.slane %v159, 1
  %v596 = vrot.slane %v159, 2
  %v597 = vrot.slane %v159, 3
  %v598 = vrot.slane %v159, 4
  %v599 = vrot.slane %v159, 5
  %v600 = vrot.slane %v159, 6
  %v601 = vrot.slane %v159, 7
  %v602 = vperm.slane %v150, 0
  %v603 = vperm.slane %v574, 0
  %v604 = vperm.slane %v575, 0
  %v605 = vperm.slane %v576, 0
  %v606 = vperm.slane %v577, 0
  %v607 = vperm.slane %v578, 0
  %v608 = vperm.slane %v579, 0
  %v609 = vperm.slane %v580, 0
  %v610 = vperm.slane %v153, 0
  %v611 = vperm.slane %v581, 0
  %v612 = vperm.slane %v582, 0
  %v613 = vperm.slane %v583, 0
  %v614 = vperm.slane %v584, 0
  %v615 = vperm.slane %v585, 0
  %v616 = vperm.slane %v586, 0
  %v617 = vperm.slane %v587, 0
  %v618 = vperm.slane %v156, 0
  %v619 = vperm.slane %v588, 0
  %v620 = vperm.slane %v589, 0
  %v621 = vperm.slane %v590, 0
  %v622 = vperm.slane %v591, 0
  %v623 = vperm.slane %v592, 0
  %v624 = vperm.slane %v593, 0
  %v625 = vperm.slane %v594, 0
  %v626 = vperm.slane %v159, 0
  %v627 = vperm.slane %v595, 0
  %v628 = vperm.slane %v596, 0
  %v629 = vperm.slane %v597, 0
  %v630 = vperm.slane %v598, 0
  %v631 = vperm.slane %v599, 0
  %v632 = vperm.slane %v600, 0
  %v633 = vperm.slane %v601, 0
  %v666 = vadd.f32 %v379, %v602
  %v667 = vadd.f32 %v382, %v602
  %v668 = vadd.f32 %v385, %v603
  %v669 = vadd.f32 %v388, %v603
  %v670 = vadd.f32 %v391, %v604
  %v671 = vadd.f32 %v394, %v604
  %v672 = vadd.f32 %v397, %v605
  %v673 = vadd.f32 %v400, %v605
  %v674 = vadd.f32 %v403, %v606
  %v675 = vadd.f32 %v406, %v606
  %v676 = vadd.f32 %v409, %v607
  %v677 = vadd.f32 %v412, %v607
  %v678 = vadd.f32 %v415, %v608
  %v679 = vadd.f32 %v418, %v608
  %v680 = vadd.f32 %v421, %v609
  %v681 = vadd.f32 %v424, %v609
  %v682 = vadd.f32 %v427, %v610
  %v683 = vadd.f32 %v430, %v610
  %v684 = vadd.f32 %v433, %v611
  %v685 = vadd.f32 %v436, %v611
  %v686 = vadd.f32 %v439, %v612
  %v687 = vadd.f32 %v442, %v612
  %v688 = vadd.f32 %v445, %v613
  %v689 = vadd.f32 %v448, %v613
  %v690 = vadd.f32 %v451, %v614
  %v691 = vadd.f32 %v454, %v614
  %v692 = vadd.f32 %v457, %v615
  %v693 = vadd.f32 %v460, %v615
  %v694 = vadd.f32 %v463, %v616
  %v695 = vadd.f32 %v466, %v616
  %v696 = vadd.f32 %v469, %v617
  %v697 = vadd.f32 %v472, %v617
  %v698 = vadd.f32 %v475, %v618
  %v699 = vadd.f32 %v478, %v618
  %v700 = vadd.f32 %v481, %v619
  %v701 = vadd.f32 %v484, %v619
  %v702 = vadd.f32 %v487, %v620
  %v703 = vadd.f32 %v490, %v620
  %v704 = vadd.f32 %v493, %v621
  %v705 = vadd.f32 %v496, %v621
  %v706 = vadd.f32 %v499, %v622
  %v707 = vadd.f32 %v502, %v622
  %v708 = vadd.f32 %v505, %v623
  %v709 = vadd.f32 %v508, %v623
  %v710 = vadd.f32 %v511, %v624
  %v711 = vadd.f32 %v514, %v624
  %v712 = vadd.f32 %v517, %v625
  %v713 = vadd.f32 %v520, %v625
  %v714 = vadd.f32 %v523, %v626
  %v715 = vadd.f32 %v526, %v626
  %v716 = vadd.f32 %v529, %v627
  %v717 = vadd.f32 %v532, %v627
  %v718 = vadd.f32 %v535, %v628
  %v719 = vadd.f32 %v538, %v628
  %v720 = vadd.f32 %v541, %v629
  %v721 = vadd.f32 %v544, %v629
  %v722 = vadd.f32 %v547, %v630
  %v723 = vadd.f32 %v550, %v630
  %v724 = vadd.f32 %v553, %v631
  %v725 = vadd.f32 %v556, %v631
  %v726 = vadd.f32 %v559, %v632
  %v727 = vadd.f32 %v562, %v632
  %v728 = vadd.f32 %v565, %v633
  %v729 = vadd.f32 %v568, %v633
  %v730 = vtanh.pop %v666
  %v731 = vtanh.pop %v667
  %v732 = vtanh.pop %v668
  %v733 = vtanh.pop %v669
  %v734 = vtanh.pop %v670
  %v735 = vtanh.pop %v671
  %v736 = vtanh.pop %v672
  %v737 = vtanh.pop %v673
  %v738 = vtanh.pop %v674
  %v739 = vtanh.pop %v675
  %v740 = vtanh.pop %v676
  %v741 = vtanh.pop %v677
  %v742 = vtanh.pop %v678
  %v743 = vtanh.pop %v679
  %v744 = vtanh.pop %v680
  %v745 = vtanh.pop %v681
  %v746 = vtanh.pop %v682
  %v747 = vtanh.pop %v683
  %v748 = vtanh.pop %v684
  %v749 = vtanh.pop %v685
  %v750 = vtanh.pop %v686
  %v751 = vtanh.pop %v687
  %v752 = vtanh.pop %v688
  %v753 = vtanh.pop %v689
  %v754 = vtanh.pop %v690
  %v755 = vtanh.pop %v691
  %v756 = vtanh.pop %v692
  %v757 = vtanh.pop %v693
  %v758 = vtanh.pop %v694
  %v759 = vtanh.pop %v695
  %v760 = vtanh.pop %v696
  %v761 = vtanh.pop %v697
  %v762 = vtanh.pop %v698
  %v763 = vtanh.pop %v699
  %v764 = vtanh.pop %v700
  %v765 = vtanh.pop %v701
  %v766 = vtanh.pop %v702
  %v767 = vtanh.pop %v703
  %v768 = vtanh.pop %v704
  %v769 = vtanh.pop %v705
  %v770 = vtanh.pop %v706
  %v771 = vtanh.pop %v707
  %v772 = vtanh.pop %v708
  %v773 = vtanh.pop %v709
  %v774 = vtanh.pop %v710
  %v775 = vtanh.pop %v711
  %v776 = vtanh.pop %v712
  %v777 = vtanh.pop %v713
  %v778 = vtanh.pop %v714
  %v779 = vtanh.pop %v715
  %v780 = vtanh.pop %v716
  %v781 = vtanh.pop %v717
  %v782 = vtanh.pop %v718
  %v783 = vtanh.pop %v719
  %v784 = vtanh.pop %v720
  %v785 = vtanh.pop %v721
  %v786 = vtanh.pop %v722
  %v787 = vtanh.pop %v723
  %v788 = vtanh.pop %v724
  %v789 = vtanh.pop %v725
  %v790 = vtanh.pop %v726
  %v791 = vtanh.pop %v727
  %v792 = vtanh.pop %v728
  %v793 = vtanh.pop %v729
  %v794 = vld [vmem:[%s6] sm:$0x1]
  %v796 = vperm.slane %v794, 0
  %v798 = vmul.f32 %v730, %v796
  %v799 = vmul.f32 %v731, %v796
  %v800 = vmul.f32 %v732, %v796
  %v801 = vmul.f32 %v733, %v796
  %v802 = vmul.f32 %v734, %v796
  %v803 = vmul.f32 %v735, %v796
  %v804 = vmul.f32 %v736, %v796
  %v805 = vmul.f32 %v737, %v796
  %v806 = vmul.f32 %v738, %v796
  %v807 = vmul.f32 %v739, %v796
  %v808 = vmul.f32 %v740, %v796
  %v809 = vmul.f32 %v741, %v796
  %v810 = vmul.f32 %v742, %v796
  %v811 = vmul.f32 %v743, %v796
  %v812 = vmul.f32 %v744, %v796
  %v813 = vmul.f32 %v745, %v796
  %v814 = vmul.f32 %v746, %v796
  %v815 = vmul.f32 %v747, %v796
  %v816 = vmul.f32 %v748, %v796
  %v817 = vmul.f32 %v749, %v796
  %v818 = vmul.f32 %v750, %v796
  %v819 = vmul.f32 %v751, %v796
  %v820 = vmul.f32 %v752, %v796
  %v821 = vmul.f32 %v753, %v796
  %v822 = vmul.f32 %v754, %v796
  %v823 = vmul.f32 %v755, %v796
  %v824 = vmul.f32 %v756, %v796
  %v825 = vmul.f32 %v757, %v796
  %v826 = vmul.f32 %v758, %v796
  %v827 = vmul.f32 %v759, %v796
  %v828 = vmul.f32 %v760, %v796
  %v829 = vmul.f32 %v761, %v796
  %v830 = vmul.f32 %v762, %v796
  %v831 = vmul.f32 %v763, %v796
  %v832 = vmul.f32 %v764, %v796
  %v833 = vmul.f32 %v765, %v796
  %v834 = vmul.f32 %v766, %v796
  %v835 = vmul.f32 %v767, %v796
  %v836 = vmul.f32 %v768, %v796
  %v837 = vmul.f32 %v769, %v796
  %v838 = vmul.f32 %v770, %v796
  %v839 = vmul.f32 %v771, %v796
  %v840 = vmul.f32 %v772, %v796
  %v841 = vmul.f32 %v773, %v796
  %v842 = vmul.f32 %v774, %v796
  %v843 = vmul.f32 %v775, %v796
  %v844 = vmul.f32 %v776, %v796
  %v845 = vmul.f32 %v777, %v796
  %v846 = vmul.f32 %v778, %v796
  %v847 = vmul.f32 %v779, %v796
  %v848 = vmul.f32 %v780, %v796
  %v849 = vmul.f32 %v781, %v796
  %v850 = vmul.f32 %v782, %v796
  %v851 = vmul.f32 %v783, %v796
  %v852 = vmul.f32 %v784, %v796
  %v853 = vmul.f32 %v785, %v796
  %v854 = vmul.f32 %v786, %v796
  %v855 = vmul.f32 %v787, %v796
  %v856 = vmul.f32 %v788, %v796
  %v857 = vmul.f32 %v789, %v796
  %v858 = vmul.f32 %v790, %v796
  %v859 = vmul.f32 %v791, %v796
  %v860 = vmul.f32 %v792, %v796
  %v861 = vmul.f32 %v793, %v796
  %862 = vadd.xlane.f32.xlu0 %v798
  %v863 = vpop.xlane.xlu0 %862
  %864 = vadd.xlane.f32.xlu0 %v799
  %v865 = vpop.xlane.xlu0 %864
  %866 = vadd.xlane.f32.xlu0 %v800
  %v867 = vpop.xlane.xlu0 %866
  %868 = vadd.xlane.f32.xlu0 %v801
  %v869 = vpop.xlane.xlu0 %868
  %870 = vadd.xlane.f32.xlu0 %v802
  %v871 = vpop.xlane.xlu0 %870
  %872 = vadd.xlane.f32.xlu0 %v803
  %v873 = vpop.xlane.xlu0 %872
  %874 = vadd.xlane.f32.xlu0 %v804
  %v875 = vpop.xlane.xlu0 %874
  %876 = vadd.xlane.f32.xlu0 %v805
  %v877 = vpop.xlane.xlu0 %876
  %878 = vadd.xlane.f32.xlu0 %v806
  %v879 = vpop.xlane.xlu0 %878
  %880 = vadd.xlane.f32.xlu0 %v807
  %v881 = vpop.xlane.xlu0 %880
  %882 = vadd.xlane.f32.xlu0 %v808
  %v883 = vpop.xlane.xlu0 %882
  %884 = vadd.xlane.f32.xlu0 %v809
  %v885 = vpop.xlane.xlu0 %884
  %886 = vadd.xlane.f32.xlu0 %v810
  %v887 = vpop.xlane.xlu0 %886
  %888 = vadd.xlane.f32.xlu0 %v811
  %v889 = vpop.xlane.xlu0 %888
  %890 = vadd.xlane.f32.xlu0 %v812
  %v891 = vpop.xlane.xlu0 %890
  %892 = vadd.xlane.f32.xlu0 %v813
  %v893 = vpop.xlane.xlu0 %892
  %894 = vadd.xlane.f32.xlu0 %v814
  %v895 = vpop.xlane.xlu0 %894
  %896 = vadd.xlane.f32.xlu0 %v815
  %v897 = vpop.xlane.xlu0 %896
  %898 = vadd.xlane.f32.xlu0 %v816
  %v899 = vpop.xlane.xlu0 %898
  %900 = vadd.xlane.f32.xlu0 %v817
  %v901 = vpop.xlane.xlu0 %900
  %902 = vadd.xlane.f32.xlu0 %v818
  %v903 = vpop.xlane.xlu0 %902
  %904 = vadd.xlane.f32.xlu0 %v819
  %v905 = vpop.xlane.xlu0 %904
  %906 = vadd.xlane.f32.xlu0 %v820
  %v907 = vpop.xlane.xlu0 %906
  %908 = vadd.xlane.f32.xlu0 %v821
  %v909 = vpop.xlane.xlu0 %908
  %910 = vadd.xlane.f32.xlu0 %v822
  %v911 = vpop.xlane.xlu0 %910
  %912 = vadd.xlane.f32.xlu0 %v823
  %v913 = vpop.xlane.xlu0 %912
  %914 = vadd.xlane.f32.xlu0 %v824
  %v915 = vpop.xlane.xlu0 %914
  %916 = vadd.xlane.f32.xlu0 %v825
  %v917 = vpop.xlane.xlu0 %916
  %918 = vadd.xlane.f32.xlu0 %v826
  %v919 = vpop.xlane.xlu0 %918
  %920 = vadd.xlane.f32.xlu0 %v827
  %v921 = vpop.xlane.xlu0 %920
  %922 = vadd.xlane.f32.xlu0 %v828
  %v923 = vpop.xlane.xlu0 %922
  %924 = vadd.xlane.f32.xlu0 %v829
  %v925 = vpop.xlane.xlu0 %924
  %926 = vadd.xlane.f32.xlu0 %v830
  %v927 = vpop.xlane.xlu0 %926
  %928 = vadd.xlane.f32.xlu0 %v831
  %v929 = vpop.xlane.xlu0 %928
  %930 = vadd.xlane.f32.xlu0 %v832
  %v931 = vpop.xlane.xlu0 %930
  %932 = vadd.xlane.f32.xlu0 %v833
  %v933 = vpop.xlane.xlu0 %932
  %934 = vadd.xlane.f32.xlu0 %v834
  %v935 = vpop.xlane.xlu0 %934
  %936 = vadd.xlane.f32.xlu0 %v835
  %v937 = vpop.xlane.xlu0 %936
  %938 = vadd.xlane.f32.xlu0 %v836
  %v939 = vpop.xlane.xlu0 %938
  %940 = vadd.xlane.f32.xlu0 %v837
  %v941 = vpop.xlane.xlu0 %940
  %942 = vadd.xlane.f32.xlu0 %v838
  %v943 = vpop.xlane.xlu0 %942
  %944 = vadd.xlane.f32.xlu0 %v839
  %v945 = vpop.xlane.xlu0 %944
  %946 = vadd.xlane.f32.xlu0 %v840
  %v947 = vpop.xlane.xlu0 %946
  %948 = vadd.xlane.f32.xlu0 %v841
  %v949 = vpop.xlane.xlu0 %948
  %950 = vadd.xlane.f32.xlu0 %v842
  %v951 = vpop.xlane.xlu0 %950
  %952 = vadd.xlane.f32.xlu0 %v843
  %v953 = vpop.xlane.xlu0 %952
  %954 = vadd.xlane.f32.xlu0 %v844
  %v955 = vpop.xlane.xlu0 %954
  %956 = vadd.xlane.f32.xlu0 %v845
  %v957 = vpop.xlane.xlu0 %956
  %958 = vadd.xlane.f32.xlu0 %v846
  %v959 = vpop.xlane.xlu0 %958
  %960 = vadd.xlane.f32.xlu0 %v847
  %v961 = vpop.xlane.xlu0 %960
  %962 = vadd.xlane.f32.xlu0 %v848
  %v963 = vpop.xlane.xlu0 %962
  %964 = vadd.xlane.f32.xlu0 %v849
  %v965 = vpop.xlane.xlu0 %964
  %966 = vadd.xlane.f32.xlu0 %v850
  %v967 = vpop.xlane.xlu0 %966
  %968 = vadd.xlane.f32.xlu0 %v851
  %v969 = vpop.xlane.xlu0 %968
  %970 = vadd.xlane.f32.xlu0 %v852
  %v971 = vpop.xlane.xlu0 %970
  %972 = vadd.xlane.f32.xlu0 %v853
  %v973 = vpop.xlane.xlu0 %972
  %974 = vadd.xlane.f32.xlu0 %v854
  %v975 = vpop.xlane.xlu0 %974
  %976 = vadd.xlane.f32.xlu0 %v855
  %v977 = vpop.xlane.xlu0 %976
  %978 = vadd.xlane.f32.xlu0 %v856
  %v979 = vpop.xlane.xlu0 %978
  %980 = vadd.xlane.f32.xlu0 %v857
  %v981 = vpop.xlane.xlu0 %980
  %982 = vadd.xlane.f32.xlu0 %v858
  %v983 = vpop.xlane.xlu0 %982
  %984 = vadd.xlane.f32.xlu0 %v859
  %v985 = vpop.xlane.xlu0 %984
  %986 = vadd.xlane.f32.xlu0 %v860
  %v987 = vpop.xlane.xlu0 %986
  %988 = vadd.xlane.f32.xlu0 %v861
  %v989 = vpop.xlane.xlu0 %988
  %v990 = vld [vmem:[#allocation2] sm:$0x1]
  %v992 = vperm.slane %v990, 0
  %v994 = vadd.f32 %v863, %v992
  %v995 = vadd.f32 %v865, %v992
  %v996 = vadd.f32 %v867, %v992
  %v997 = vadd.f32 %v869, %v992
  %v998 = vadd.f32 %v871, %v992
  %v999 = vadd.f32 %v873, %v992
  %v1000 = vadd.f32 %v875, %v992
  %v1001 = vadd.f32 %v877, %v992
  %v1002 = vadd.f32 %v879, %v992
  %v1003 = vadd.f32 %v881, %v992
  %v1004 = vadd.f32 %v883, %v992
  %v1005 = vadd.f32 %v885, %v992
  %v1006 = vadd.f32 %v887, %v992
  %v1007 = vadd.f32 %v889, %v992
  %v1008 = vadd.f32 %v891, %v992
  %v1009 = vadd.f32 %v893, %v992
  %v1010 = vadd.f32 %v895, %v992
  %v1011 = vadd.f32 %v897, %v992
  %v1012 = vadd.f32 %v899, %v992
  %v1013 = vadd.f32 %v901, %v992
  %v1014 = vadd.f32 %v903, %v992
  %v1015 = vadd.f32 %v905, %v992
  %v1016 = vadd.f32 %v907, %v992
  %v1017 = vadd.f32 %v909, %v992
  %v1018 = vadd.f32 %v911, %v992
  %v1019 = vadd.f32 %v913, %v992
  %v1020 = vadd.f32 %v915, %v992
  %v1021 = vadd.f32 %v917, %v992
  %v1022 = vadd.f32 %v919, %v992
  %v1023 = vadd.f32 %v921, %v992
  %v1024 = vadd.f32 %v923, %v992
  %v1025 = vadd.f32 %v925, %v992
  %v1026 = vadd.f32 %v927, %v992
  %v1027 = vadd.f32 %v929, %v992
  %v1028 = vadd.f32 %v931, %v992
  %v1029 = vadd.f32 %v933, %v992
  %v1030 = vadd.f32 %v935, %v992
  %v1031 = vadd.f32 %v937, %v992
  %v1032 = vadd.f32 %v939, %v992
  %v1033 = vadd.f32 %v941, %v992
  %v1034 = vadd.f32 %v943, %v992
  %v1035 = vadd.f32 %v945, %v992
  %v1036 = vadd.f32 %v947, %v992
  %v1037 = vadd.f32 %v949, %v992
  %v1038 = vadd.f32 %v951, %v992
  %v1039 = vadd.f32 %v953, %v992
  %v1040 = vadd.f32 %v955, %v992
  %v1041 = vadd.f32 %v957, %v992
  %v1042 = vadd.f32 %v959, %v992
  %v1043 = vadd.f32 %v961, %v992
  %v1044 = vadd.f32 %v963, %v992
  %v1045 = vadd.f32 %v965, %v992
  %v1046 = vadd.f32 %v967, %v992
  %v1047 = vadd.f32 %v969, %v992
  %v1048 = vadd.f32 %v971, %v992
  %v1049 = vadd.f32 %v973, %v992
  %v1050 = vadd.f32 %v975, %v992
  %v1051 = vadd.f32 %v977, %v992
  %v1052 = vadd.f32 %v979, %v992
  %v1053 = vadd.f32 %v981, %v992
  %v1054 = vadd.f32 %v983, %v992
  %v1055 = vadd.f32 %v985, %v992
  %v1056 = vadd.f32 %v987, %v992
  %v1057 = vadd.f32 %v989, %v992
  %vm1058 = vcmask 7168
  %v1059 = vsel %vm1058, %v994, -inf
  %v1060 = vsel %vm1058, %v995, -inf
  %v1061 = vmax.f32 %v1059, %v1060
  %v1062 = vrot.slane %v1061, 4
  %v1063 = vmax.f32 %v1061, %v1062
  %v1064 = vrot.slane %v1063, 2
  %v1065 = vmax.f32 %v1063, %v1064
  %v1066 = vrot.slane %v1065, 1
  %v1067 = vmax.f32 %v1065, %v1066
  %v1068 = vsel %vm1058, %v996, -inf
  %v1069 = vsel %vm1058, %v997, -inf
  %v1070 = vmax.f32 %v1068, %v1069
  %v1071 = vrot.slane %v1070, 4
  %v1072 = vmax.f32 %v1070, %v1071
  %v1073 = vrot.slane %v1072, 2
  %v1074 = vmax.f32 %v1072, %v1073
  %v1075 = vrot.slane %v1074, 1
  %v1076 = vmax.f32 %v1074, %v1075
  %v1077 = vsel %vm1058, %v998, -inf
  %v1078 = vsel %vm1058, %v999, -inf
  %v1079 = vmax.f32 %v1077, %v1078
  %v1080 = vrot.slane %v1079, 4
  %v1081 = vmax.f32 %v1079, %v1080
  %v1082 = vrot.slane %v1081, 2
  %v1083 = vmax.f32 %v1081, %v1082
  %v1084 = vrot.slane %v1083, 1
  %v1085 = vmax.f32 %v1083, %v1084
  %v1086 = vsel %vm1058, %v1000, -inf
  %v1087 = vsel %vm1058, %v1001, -inf
  %v1088 = vmax.f32 %v1086, %v1087
  %v1089 = vrot.slane %v1088, 4
  %v1090 = vmax.f32 %v1088, %v1089
  %v1091 = vrot.slane %v1090, 2
  %v1092 = vmax.f32 %v1090, %v1091
  %v1093 = vrot.slane %v1092, 1
  %v1094 = vmax.f32 %v1092, %v1093
  %v1095 = vsel %vm1058, %v1002, -inf
  %v1096 = vsel %vm1058, %v1003, -inf
  %v1097 = vmax.f32 %v1095, %v1096
  %v1098 = vrot.slane %v1097, 4
  %v1099 = vmax.f32 %v1097, %v1098
  %v1100 = vrot.slane %v1099, 2
  %v1101 = vmax.f32 %v1099, %v1100
  %v1102 = vrot.slane %v1101, 1
  %v1103 = vmax.f32 %v1101, %v1102
  %v1104 = vsel %vm1058, %v1004, -inf
  %v1105 = vsel %vm1058, %v1005, -inf
  %v1106 = vmax.f32 %v1104, %v1105
  %v1107 = vrot.slane %v1106, 4
  %v1108 = vmax.f32 %v1106, %v1107
  %v1109 = vrot.slane %v1108, 2
  %v1110 = vmax.f32 %v1108, %v1109
  %v1111 = vrot.slane %v1110, 1
  %v1112 = vmax.f32 %v1110, %v1111
  %v1113 = vsel %vm1058, %v1006, -inf
  %v1114 = vsel %vm1058, %v1007, -inf
  %v1115 = vmax.f32 %v1113, %v1114
  %v1116 = vrot.slane %v1115, 4
  %v1117 = vmax.f32 %v1115, %v1116
  %v1118 = vrot.slane %v1117, 2
  %v1119 = vmax.f32 %v1117, %v1118
  %v1120 = vrot.slane %v1119, 1
  %v1121 = vmax.f32 %v1119, %v1120
  %v1122 = vsel %vm1058, %v1008, -inf
  %v1123 = vsel %vm1058, %v1009, -inf
  %v1124 = vmax.f32 %v1122, %v1123
  %v1125 = vrot.slane %v1124, 4
  %v1126 = vmax.f32 %v1124, %v1125
  %v1127 = vrot.slane %v1126, 2
  %v1128 = vmax.f32 %v1126, %v1127
  %v1129 = vrot.slane %v1128, 1
  %v1130 = vmax.f32 %v1128, %v1129
  %v1131 = vsel %vm1058, %v1010, -inf
  %v1132 = vsel %vm1058, %v1011, -inf
  %v1133 = vmax.f32 %v1131, %v1132
  %v1134 = vrot.slane %v1133, 4
  %v1135 = vmax.f32 %v1133, %v1134
  %v1136 = vrot.slane %v1135, 2
  %v1137 = vmax.f32 %v1135, %v1136
  %v1138 = vrot.slane %v1137, 1
  %v1139 = vmax.f32 %v1137, %v1138
  %v1140 = vsel %vm1058, %v1012, -inf
  %v1141 = vsel %vm1058, %v1013, -inf
  %v1142 = vmax.f32 %v1140, %v1141
  %v1143 = vrot.slane %v1142, 4
  %v1144 = vmax.f32 %v1142, %v1143
  %v1145 = vrot.slane %v1144, 2
  %v1146 = vmax.f32 %v1144, %v1145
  %v1147 = vrot.slane %v1146, 1
  %v1148 = vmax.f32 %v1146, %v1147
  %v1149 = vsel %vm1058, %v1014, -inf
  %v1150 = vsel %vm1058, %v1015, -inf
  %v1151 = vmax.f32 %v1149, %v1150
  %v1152 = vrot.slane %v1151, 4
  %v1153 = vmax.f32 %v1151, %v1152
  %v1154 = vrot.slane %v1153, 2
  %v1155 = vmax.f32 %v1153, %v1154
  %v1156 = vrot.slane %v1155, 1
  %v1157 = vmax.f32 %v1155, %v1156
  %v1158 = vsel %vm1058, %v1016, -inf
  %v1159 = vsel %vm1058, %v1017, -inf
  %v1160 = vmax.f32 %v1158, %v1159
  %v1161 = vrot.slane %v1160, 4
  %v1162 = vmax.f32 %v1160, %v1161
  %v1163 = vrot.slane %v1162, 2
  %v1164 = vmax.f32 %v1162, %v1163
  %v1165 = vrot.slane %v1164, 1
  %v1166 = vmax.f32 %v1164, %v1165
  %v1167 = vsel %vm1058, %v1018, -inf
  %v1168 = vsel %vm1058, %v1019, -inf
  %v1169 = vmax.f32 %v1167, %v1168
  %v1170 = vrot.slane %v1169, 4
  %v1171 = vmax.f32 %v1169, %v1170
  %v1172 = vrot.slane %v1171, 2
  %v1173 = vmax.f32 %v1171, %v1172
  %v1174 = vrot.slane %v1173, 1
  %v1175 = vmax.f32 %v1173, %v1174
  %v1176 = vsel %vm1058, %v1020, -inf
  %v1177 = vsel %vm1058, %v1021, -inf
  %v1178 = vmax.f32 %v1176, %v1177
  %v1179 = vrot.slane %v1178, 4
  %v1180 = vmax.f32 %v1178, %v1179
  %v1181 = vrot.slane %v1180, 2
  %v1182 = vmax.f32 %v1180, %v1181
  %v1183 = vrot.slane %v1182, 1
  %v1184 = vmax.f32 %v1182, %v1183
  %v1185 = vsel %vm1058, %v1022, -inf
  %v1186 = vsel %vm1058, %v1023, -inf
  %v1187 = vmax.f32 %v1185, %v1186
  %v1188 = vrot.slane %v1187, 4
  %v1189 = vmax.f32 %v1187, %v1188
  %v1190 = vrot.slane %v1189, 2
  %v1191 = vmax.f32 %v1189, %v1190
  %v1192 = vrot.slane %v1191, 1
  %v1193 = vmax.f32 %v1191, %v1192
  %v1194 = vsel %vm1058, %v1024, -inf
  %v1195 = vsel %vm1058, %v1025, -inf
  %v1196 = vmax.f32 %v1194, %v1195
  %v1197 = vrot.slane %v1196, 4
  %v1198 = vmax.f32 %v1196, %v1197
  %v1199 = vrot.slane %v1198, 2
  %v1200 = vmax.f32 %v1198, %v1199
  %v1201 = vrot.slane %v1200, 1
  %v1202 = vmax.f32 %v1200, %v1201
  %v1203 = vsel %vm1058, %v1026, -inf
  %v1204 = vsel %vm1058, %v1027, -inf
  %v1205 = vmax.f32 %v1203, %v1204
  %v1206 = vrot.slane %v1205, 4
  %v1207 = vmax.f32 %v1205, %v1206
  %v1208 = vrot.slane %v1207, 2
  %v1209 = vmax.f32 %v1207, %v1208
  %v1210 = vrot.slane %v1209, 1
  %v1211 = vmax.f32 %v1209, %v1210
  %v1212 = vsel %vm1058, %v1028, -inf
  %v1213 = vsel %vm1058, %v1029, -inf
  %v1214 = vmax.f32 %v1212, %v1213
  %v1215 = vrot.slane %v1214, 4
  %v1216 = vmax.f32 %v1214, %v1215
  %v1217 = vrot.slane %v1216, 2
  %v1218 = vmax.f32 %v1216, %v1217
  %v1219 = vrot.slane %v1218, 1
  %v1220 = vmax.f32 %v1218, %v1219
  %v1221 = vsel %vm1058, %v1030, -inf
  %v1222 = vsel %vm1058, %v1031, -inf
  %v1223 = vmax.f32 %v1221, %v1222
  %v1224 = vrot.slane %v1223, 4
  %v1225 = vmax.f32 %v1223, %v1224
  %v1226 = vrot.slane %v1225, 2
  %v1227 = vmax.f32 %v1225, %v1226
  %v1228 = vrot.slane %v1227, 1
  %v1229 = vmax.f32 %v1227, %v1228
  %v1230 = vsel %vm1058, %v1032, -inf
  %v1231 = vsel %vm1058, %v1033, -inf
  %v1232 = vmax.f32 %v1230, %v1231
  %v1233 = vrot.slane %v1232, 4
  %v1234 = vmax.f32 %v1232, %v1233
  %v1235 = vrot.slane %v1234, 2
  %v1236 = vmax.f32 %v1234, %v1235
  %v1237 = vrot.slane %v1236, 1
  %v1238 = vmax.f32 %v1236, %v1237
  %v1239 = vsel %vm1058, %v1034, -inf
  %v1240 = vsel %vm1058, %v1035, -inf
  %v1241 = vmax.f32 %v1239, %v1240
  %v1242 = vrot.slane %v1241, 4
  %v1243 = vmax.f32 %v1241, %v1242
  %v1244 = vrot.slane %v1243, 2
  %v1245 = vmax.f32 %v1243, %v1244
  %v1246 = vrot.slane %v1245, 1
  %v1247 = vmax.f32 %v1245, %v1246
  %v1248 = vsel %vm1058, %v1036, -inf
  %v1249 = vsel %vm1058, %v1037, -inf
  %v1250 = vmax.f32 %v1248, %v1249
  %v1251 = vrot.slane %v1250, 4
  %v1252 = vmax.f32 %v1250, %v1251
  %v1253 = vrot.slane %v1252, 2
  %v1254 = vmax.f32 %v1252, %v1253
  %v1255 = vrot.slane %v1254, 1
  %v1256 = vmax.f32 %v1254, %v1255
  %v1257 = vsel %vm1058, %v1038, -inf
  %v1258 = vsel %vm1058, %v1039, -inf
  %v1259 = vmax.f32 %v1257, %v1258
  %v1260 = vrot.slane %v1259, 4
  %v1261 = vmax.f32 %v1259, %v1260
  %v1262 = vrot.slane %v1261, 2
  %v1263 = vmax.f32 %v1261, %v1262
  %v1264 = vrot.slane %v1263, 1
  %v1265 = vmax.f32 %v1263, %v1264
  %v1266 = vsel %vm1058, %v1040, -inf
  %v1267 = vsel %vm1058, %v1041, -inf
  %v1268 = vmax.f32 %v1266, %v1267
  %v1269 = vrot.slane %v1268, 4
  %v1270 = vmax.f32 %v1268, %v1269
  %v1271 = vrot.slane %v1270, 2
  %v1272 = vmax.f32 %v1270, %v1271
  %v1273 = vrot.slane %v1272, 1
  %v1274 = vmax.f32 %v1272, %v1273
  %v1275 = vsel %vm1058, %v1042, -inf
  %v1276 = vsel %vm1058, %v1043, -inf
  %v1277 = vmax.f32 %v1275, %v1276
  %v1278 = vrot.slane %v1277, 4
  %v1279 = vmax.f32 %v1277, %v1278
  %v1280 = vrot.slane %v1279, 2
  %v1281 = vmax.f32 %v1279, %v1280
  %v1282 = vrot.slane %v1281, 1
  %v1283 = vmax.f32 %v1281, %v1282
  %v1284 = vsel %vm1058, %v1044, -inf
  %v1285 = vsel %vm1058, %v1045, -inf
  %v1286 = vmax.f32 %v1284, %v1285
  %v1287 = vrot.slane %v1286, 4
  %v1288 = vmax.f32 %v1286, %v1287
  %v1289 = vrot.slane %v1288, 2
  %v1290 = vmax.f32 %v1288, %v1289
  %v1291 = vrot.slane %v1290, 1
  %v1292 = vmax.f32 %v1290, %v1291
  %v1293 = vsel %vm1058, %v1046, -inf
  %v1294 = vsel %vm1058, %v1047, -inf
  %v1295 = vmax.f32 %v1293, %v1294
  %v1296 = vrot.slane %v1295, 4
  %v1297 = vmax.f32 %v1295, %v1296
  %v1298 = vrot.slane %v1297, 2
  %v1299 = vmax.f32 %v1297, %v1298
  %v1300 = vrot.slane %v1299, 1
  %v1301 = vmax.f32 %v1299, %v1300
  %v1302 = vsel %vm1058, %v1048, -inf
  %v1303 = vsel %vm1058, %v1049, -inf
  %v1304 = vmax.f32 %v1302, %v1303
  %v1305 = vrot.slane %v1304, 4
  %v1306 = vmax.f32 %v1304, %v1305
  %v1307 = vrot.slane %v1306, 2
  %v1308 = vmax.f32 %v1306, %v1307
  %v1309 = vrot.slane %v1308, 1
  %v1310 = vmax.f32 %v1308, %v1309
  %v1311 = vsel %vm1058, %v1050, -inf
  %v1312 = vsel %vm1058, %v1051, -inf
  %v1313 = vmax.f32 %v1311, %v1312
  %v1314 = vrot.slane %v1313, 4
  %v1315 = vmax.f32 %v1313, %v1314
  %v1316 = vrot.slane %v1315, 2
  %v1317 = vmax.f32 %v1315, %v1316
  %v1318 = vrot.slane %v1317, 1
  %v1319 = vmax.f32 %v1317, %v1318
  %v1320 = vsel %vm1058, %v1052, -inf
  %v1321 = vsel %vm1058, %v1053, -inf
  %v1322 = vmax.f32 %v1320, %v1321
  %v1323 = vrot.slane %v1322, 4
  %v1324 = vmax.f32 %v1322, %v1323
  %v1325 = vrot.slane %v1324, 2
  %v1326 = vmax.f32 %v1324, %v1325
  %v1327 = vrot.slane %v1326, 1
  %v1328 = vmax.f32 %v1326, %v1327
  %v1329 = vsel %vm1058, %v1054, -inf
  %v1330 = vsel %vm1058, %v1055, -inf
  %v1331 = vmax.f32 %v1329, %v1330
  %v1332 = vrot.slane %v1331, 4
  %v1333 = vmax.f32 %v1331, %v1332
  %v1334 = vrot.slane %v1333, 2
  %v1335 = vmax.f32 %v1333, %v1334
  %v1336 = vrot.slane %v1335, 1
  %v1337 = vmax.f32 %v1335, %v1336
  %v1338 = vsel %vm1058, %v1056, -inf
  %v1339 = vsel %vm1058, %v1057, -inf
  %v1340 = vmax.f32 %v1338, %v1339
  %v1341 = vrot.slane %v1340, 4
  %v1342 = vmax.f32 %v1340, %v1341
  %v1343 = vrot.slane %v1342, 2
  %v1344 = vmax.f32 %v1342, %v1343
  %v1345 = vrot.slane %v1344, 1
  %v1346 = vmax.f32 %v1344, %v1345
  %v1347 = vsub.f32 %v994, %v1067
  %v1348 = vsub.f32 %v995, %v1067
  %v1349 = vsub.f32 %v996, %v1076
  %v1350 = vsub.f32 %v997, %v1076
  %v1351 = vsub.f32 %v998, %v1085
  %v1352 = vsub.f32 %v999, %v1085
  %v1353 = vsub.f32 %v1000, %v1094
  %v1354 = vsub.f32 %v1001, %v1094
  %v1355 = vsub.f32 %v1002, %v1103
  %v1356 = vsub.f32 %v1003, %v1103
  %v1357 = vsub.f32 %v1004, %v1112
  %v1358 = vsub.f32 %v1005, %v1112
  %v1359 = vsub.f32 %v1006, %v1121
  %v1360 = vsub.f32 %v1007, %v1121
  %v1361 = vsub.f32 %v1008, %v1130
  %v1362 = vsub.f32 %v1009, %v1130
  %v1363 = vsub.f32 %v1010, %v1139
  %v1364 = vsub.f32 %v1011, %v1139
  %v1365 = vsub.f32 %v1012, %v1148
  %v1366 = vsub.f32 %v1013, %v1148
  %v1367 = vsub.f32 %v1014, %v1157
  %v1368 = vsub.f32 %v1015, %v1157
  %v1369 = vsub.f32 %v1016, %v1166
  %v1370 = vsub.f32 %v1017, %v1166
  %v1371 = vsub.f32 %v1018, %v1175
  %v1372 = vsub.f32 %v1019, %v1175
  %v1373 = vsub.f32 %v1020, %v1184
  %v1374 = vsub.f32 %v1021, %v1184
  %v1375 = vsub.f32 %v1022, %v1193
  %v1376 = vsub.f32 %v1023, %v1193
  %v1377 = vsub.f32 %v1024, %v1202
  %v1378 = vsub.f32 %v1025, %v1202
  %v1379 = vsub.f32 %v1026, %v1211
  %v1380 = vsub.f32 %v1027, %v1211
  %v1381 = vsub.f32 %v1028, %v1220
  %v1382 = vsub.f32 %v1029, %v1220
  %v1383 = vsub.f32 %v1030, %v1229
  %v1384 = vsub.f32 %v1031, %v1229
  %v1385 = vsub.f32 %v1032, %v1238
  %v1386 = vsub.f32 %v1033, %v1238
  %v1387 = vsub.f32 %v1034, %v1247
  %v1388 = vsub.f32 %v1035, %v1247
  %v1389 = vsub.f32 %v1036, %v1256
  %v1390 = vsub.f32 %v1037, %v1256
  %v1391 = vsub.f32 %v1038, %v1265
  %v1392 = vsub.f32 %v1039, %v1265
  %v1393 = vsub.f32 %v1040, %v1274
  %v1394 = vsub.f32 %v1041, %v1274
  %v1395 = vsub.f32 %v1042, %v1283
  %v1396 = vsub.f32 %v1043, %v1283
  %v1397 = vsub.f32 %v1044, %v1292
  %v1398 = vsub.f32 %v1045, %v1292
  %v1399 = vsub.f32 %v1046, %v1301
  %v1400 = vsub.f32 %v1047, %v1301
  %v1401 = vsub.f32 %v1048, %v1310
  %v1402 = vsub.f32 %v1049, %v1310
  %v1403 = vsub.f32 %v1050, %v1319
  %v1404 = vsub.f32 %v1051, %v1319
  %v1405 = vsub.f32 %v1052, %v1328
  %v1406 = vsub.f32 %v1053, %v1328
  %v1407 = vsub.f32 %v1054, %v1337
  %v1408 = vsub.f32 %v1055, %v1337
  %v1409 = vsub.f32 %v1056, %v1346
  %v1410 = vsub.f32 %v1057, %v1346
  %v1411 = vmul.f32 %v1347, 1.442695
  %v1412 = vpow.pop %v1411
  %v1413 = vmul.f32 %v1348, 1.442695
  %v1414 = vpow.pop %v1413
  %v1415 = vmul.f32 %v1349, 1.442695
  %v1416 = vpow.pop %v1415
  %v1417 = vmul.f32 %v1350, 1.442695
  %v1418 = vpow.pop %v1417
  %v1419 = vmul.f32 %v1351, 1.442695
  %v1420 = vpow.pop %v1419
  %v1421 = vmul.f32 %v1352, 1.442695
  %v1422 = vpow.pop %v1421
  %v1423 = vmul.f32 %v1353, 1.442695
  %v1424 = vpow.pop %v1423
  %v1425 = vmul.f32 %v1354, 1.442695
  %v1426 = vpow.pop %v1425
  %v1427 = vmul.f32 %v1355, 1.442695
  %v1428 = vpow.pop %v1427
  %v1429 = vmul.f32 %v1356, 1.442695
  %v1430 = vpow.pop %v1429
  %v1431 = vmul.f32 %v1357, 1.442695
  %v1432 = vpow.pop %v1431
  %v1433 = vmul.f32 %v1358, 1.442695
  %v1434 = vpow.pop %v1433
  %v1435 = vmul.f32 %v1359, 1.442695
  %v1436 = vpow.pop %v1435
  %v1437 = vmul.f32 %v1360, 1.442695
  %v1438 = vpow.pop %v1437
  %v1439 = vmul.f32 %v1361, 1.442695
  %v1440 = vpow.pop %v1439
  %v1441 = vmul.f32 %v1362, 1.442695
  %v1442 = vpow.pop %v1441
  %v1443 = vmul.f32 %v1363, 1.442695
  %v1444 = vpow.pop %v1443
  %v1445 = vmul.f32 %v1364, 1.442695
  %v1446 = vpow.pop %v1445
  %v1447 = vmul.f32 %v1365, 1.442695
  %v1448 = vpow.pop %v1447
  %v1449 = vmul.f32 %v1366, 1.442695
  %v1450 = vpow.pop %v1449
  %v1451 = vmul.f32 %v1367, 1.442695
  %v1452 = vpow.pop %v1451
  %v1453 = vmul.f32 %v1368, 1.442695
  %v1454 = vpow.pop %v1453
  %v1455 = vmul.f32 %v1369, 1.442695
  %v1456 = vpow.pop %v1455
  %v1457 = vmul.f32 %v1370, 1.442695
  %v1458 = vpow.pop %v1457
  %v1459 = vmul.f32 %v1371, 1.442695
  %v1460 = vpow.pop %v1459
  %v1461 = vmul.f32 %v1372, 1.442695
  %v1462 = vpow.pop %v1461
  %v1463 = vmul.f32 %v1373, 1.442695
  %v1464 = vpow.pop %v1463
  %v1465 = vmul.f32 %v1374, 1.442695
  %v1466 = vpow.pop %v1465
  %v1467 = vmul.f32 %v1375, 1.442695
  %v1468 = vpow.pop %v1467
  %v1469 = vmul.f32 %v1376, 1.442695
  %v1470 = vpow.pop %v1469
  %v1471 = vmul.f32 %v1377, 1.442695
  %v1472 = vpow.pop %v1471
  %v1473 = vmul.f32 %v1378, 1.442695
  %v1474 = vpow.pop %v1473
  %v1475 = vmul.f32 %v1379, 1.442695
  %v1476 = vpow.pop %v1475
  %v1477 = vmul.f32 %v1380, 1.442695
  %v1478 = vpow.pop %v1477
  %v1479 = vmul.f32 %v1381, 1.442695
  %v1480 = vpow.pop %v1479
  %v1481 = vmul.f32 %v1382, 1.442695
  %v1482 = vpow.pop %v1481
  %v1483 = vmul.f32 %v1383, 1.442695
  %v1484 = vpow.pop %v1483
  %v1485 = vmul.f32 %v1384, 1.442695
  %v1486 = vpow.pop %v1485
  %v1487 = vmul.f32 %v1385, 1.442695
  %v1488 = vpow.pop %v1487
  %v1489 = vmul.f32 %v1386, 1.442695
  %v1490 = vpow.pop %v1489
  %v1491 = vmul.f32 %v1387, 1.442695
  %v1492 = vpow.pop %v1491
  %v1493 = vmul.f32 %v1388, 1.442695
  %v1494 = vpow.pop %v1493
  %v1495 = vmul.f32 %v1389, 1.442695
  %v1496 = vpow.pop %v1495
  %v1497 = vmul.f32 %v1390, 1.442695
  %v1498 = vpow.pop %v1497
  %v1499 = vmul.f32 %v1391, 1.442695
  %v1500 = vpow.pop %v1499
  %v1501 = vmul.f32 %v1392, 1.442695
  %v1502 = vpow.pop %v1501
  %v1503 = vmul.f32 %v1393, 1.442695
  %v1504 = vpow.pop %v1503
  %v1505 = vmul.f32 %v1394, 1.442695
  %v1506 = vpow.pop %v1505
  %v1507 = vmul.f32 %v1395, 1.442695
  %v1508 = vpow.pop %v1507
  %v1509 = vmul.f32 %v1396, 1.442695
  %v1510 = vpow.pop %v1509
  %v1511 = vmul.f32 %v1397, 1.442695
  %v1512 = vpow.pop %v1511
  %v1513 = vmul.f32 %v1398, 1.442695
  %v1514 = vpow.pop %v1513
  %v1515 = vmul.f32 %v1399, 1.442695
  %v1516 = vpow.pop %v1515
  %v1517 = vmul.f32 %v1400, 1.442695
  %v1518 = vpow.pop %v1517
  %v1519 = vmul.f32 %v1401, 1.442695
  %v1520 = vpow.pop %v1519
  %v1521 = vmul.f32 %v1402, 1.442695
  %v1522 = vpow.pop %v1521
  %v1523 = vmul.f32 %v1403, 1.442695
  %v1524 = vpow.pop %v1523
  %v1525 = vmul.f32 %v1404, 1.442695
  %v1526 = vpow.pop %v1525
  %v1527 = vmul.f32 %v1405, 1.442695
  %v1528 = vpow.pop %v1527
  %v1529 = vmul.f32 %v1406, 1.442695
  %v1530 = vpow.pop %v1529
  %v1531 = vmul.f32 %v1407, 1.442695
  %v1532 = vpow.pop %v1531
  %v1533 = vmul.f32 %v1408, 1.442695
  %v1534 = vpow.pop %v1533
  %v1535 = vmul.f32 %v1409, 1.442695
  %v1536 = vpow.pop %v1535
  %v1537 = vmul.f32 %v1410, 1.442695
  %v1538 = vpow.pop %v1537
  %v1539 = vsel %vm1058, %v1412, 0.0
  %v1540 = vsel %vm1058, %v1414, 0.0
  %v1541 = vadd.f32 %v1539, %v1540
  %v1542 = vrot.slane %v1541, 4
  %v1543 = vadd.f32 %v1541, %v1542
  %v1544 = vrot.slane %v1543, 2
  %v1545 = vadd.f32 %v1543, %v1544
  %v1546 = vrot.slane %v1545, 1
  %v1547 = vadd.f32 %v1545, %v1546
  %v1548 = vsel %vm1058, %v1416, 0.0
  %v1549 = vsel %vm1058, %v1418, 0.0
  %v1550 = vadd.f32 %v1548, %v1549
  %v1551 = vrot.slane %v1550, 4
  %v1552 = vadd.f32 %v1550, %v1551
  %v1553 = vrot.slane %v1552, 2
  %v1554 = vadd.f32 %v1552, %v1553
  %v1555 = vrot.slane %v1554, 1
  %v1556 = vadd.f32 %v1554, %v1555
  %v1557 = vsel %vm1058, %v1420, 0.0
  %v1558 = vsel %vm1058, %v1422, 0.0
  %v1559 = vadd.f32 %v1557, %v1558
  %v1560 = vrot.slane %v1559, 4
  %v1561 = vadd.f32 %v1559, %v1560
  %v1562 = vrot.slane %v1561, 2
  %v1563 = vadd.f32 %v1561, %v1562
  %v1564 = vrot.slane %v1563, 1
  %v1565 = vadd.f32 %v1563, %v1564
  %v1566 = vsel %vm1058, %v1424, 0.0
  %v1567 = vsel %vm1058, %v1426, 0.0
  %v1568 = vadd.f32 %v1566, %v1567
  %v1569 = vrot.slane %v1568, 4
  %v1570 = vadd.f32 %v1568, %v1569
  %v1571 = vrot.slane %v1570, 2
  %v1572 = vadd.f32 %v1570, %v1571
  %v1573 = vrot.slane %v1572, 1
  %v1574 = vadd.f32 %v1572, %v1573
  %v1575 = vsel %vm1058, %v1428, 0.0
  %v1576 = vsel %vm1058, %v1430, 0.0
  %v1577 = vadd.f32 %v1575, %v1576
  %v1578 = vrot.slane %v1577, 4
  %v1579 = vadd.f32 %v1577, %v1578
  %v1580 = vrot.slane %v1579, 2
  %v1581 = vadd.f32 %v1579, %v1580
  %v1582 = vrot.slane %v1581, 1
  %v1583 = vadd.f32 %v1581, %v1582
  %v1584 = vsel %vm1058, %v1432, 0.0
  %v1585 = vsel %vm1058, %v1434, 0.0
  %v1586 = vadd.f32 %v1584, %v1585
  %v1587 = vrot.slane %v1586, 4
  %v1588 = vadd.f32 %v1586, %v1587
  %v1589 = vrot.slane %v1588, 2
  %v1590 = vadd.f32 %v1588, %v1589
  %v1591 = vrot.slane %v1590, 1
  %v1592 = vadd.f32 %v1590, %v1591
  %v1593 = vsel %vm1058, %v1436, 0.0
  %v1594 = vsel %vm1058, %v1438, 0.0
  %v1595 = vadd.f32 %v1593, %v1594
  %v1596 = vrot.slane %v1595, 4
  %v1597 = vadd.f32 %v1595, %v1596
  %v1598 = vrot.slane %v1597, 2
  %v1599 = vadd.f32 %v1597, %v1598
  %v1600 = vrot.slane %v1599, 1
  %v1601 = vadd.f32 %v1599, %v1600
  %v1602 = vsel %vm1058, %v1440, 0.0
  %v1603 = vsel %vm1058, %v1442, 0.0
  %v1604 = vadd.f32 %v1602, %v1603
  %v1605 = vrot.slane %v1604, 4
  %v1606 = vadd.f32 %v1604, %v1605
  %v1607 = vrot.slane %v1606, 2
  %v1608 = vadd.f32 %v1606, %v1607
  %v1609 = vrot.slane %v1608, 1
  %v1610 = vadd.f32 %v1608, %v1609
  %v1611 = vsel %vm1058, %v1444, 0.0
  %v1612 = vsel %vm1058, %v1446, 0.0
  %v1613 = vadd.f32 %v1611, %v1612
  %v1614 = vrot.slane %v1613, 4
  %v1615 = vadd.f32 %v1613, %v1614
  %v1616 = vrot.slane %v1615, 2
  %v1617 = vadd.f32 %v1615, %v1616
  %v1618 = vrot.slane %v1617, 1
  %v1619 = vadd.f32 %v1617, %v1618
  %v1620 = vsel %vm1058, %v1448, 0.0
  %v1621 = vsel %vm1058, %v1450, 0.0
  %v1622 = vadd.f32 %v1620, %v1621
  %v1623 = vrot.slane %v1622, 4
  %v1624 = vadd.f32 %v1622, %v1623
  %v1625 = vrot.slane %v1624, 2
  %v1626 = vadd.f32 %v1624, %v1625
  %v1627 = vrot.slane %v1626, 1
  %v1628 = vadd.f32 %v1626, %v1627
  %v1629 = vsel %vm1058, %v1452, 0.0
  %v1630 = vsel %vm1058, %v1454, 0.0
  %v1631 = vadd.f32 %v1629, %v1630
  %v1632 = vrot.slane %v1631, 4
  %v1633 = vadd.f32 %v1631, %v1632
  %v1634 = vrot.slane %v1633, 2
  %v1635 = vadd.f32 %v1633, %v1634
  %v1636 = vrot.slane %v1635, 1
  %v1637 = vadd.f32 %v1635, %v1636
  %v1638 = vsel %vm1058, %v1456, 0.0
  %v1639 = vsel %vm1058, %v1458, 0.0
  %v1640 = vadd.f32 %v1638, %v1639
  %v1641 = vrot.slane %v1640, 4
  %v1642 = vadd.f32 %v1640, %v1641
  %v1643 = vrot.slane %v1642, 2
  %v1644 = vadd.f32 %v1642, %v1643
  %v1645 = vrot.slane %v1644, 1
  %v1646 = vadd.f32 %v1644, %v1645
  %v1647 = vsel %vm1058, %v1460, 0.0
  %v1648 = vsel %vm1058, %v1462, 0.0
  %v1649 = vadd.f32 %v1647, %v1648
  %v1650 = vrot.slane %v1649, 4
  %v1651 = vadd.f32 %v1649, %v1650
  %v1652 = vrot.slane %v1651, 2
  %v1653 = vadd.f32 %v1651, %v1652
  %v1654 = vrot.slane %v1653, 1
  %v1655 = vadd.f32 %v1653, %v1654
  %v1656 = vsel %vm1058, %v1464, 0.0
  %v1657 = vsel %vm1058, %v1466, 0.0
  %v1658 = vadd.f32 %v1656, %v1657
  %v1659 = vrot.slane %v1658, 4
  %v1660 = vadd.f32 %v1658, %v1659
  %v1661 = vrot.slane %v1660, 2
  %v1662 = vadd.f32 %v1660, %v1661
  %v1663 = vrot.slane %v1662, 1
  %v1664 = vadd.f32 %v1662, %v1663
  %v1665 = vsel %vm1058, %v1468, 0.0
  %v1666 = vsel %vm1058, %v1470, 0.0
  %v1667 = vadd.f32 %v1665, %v1666
  %v1668 = vrot.slane %v1667, 4
  %v1669 = vadd.f32 %v1667, %v1668
  %v1670 = vrot.slane %v1669, 2
  %v1671 = vadd.f32 %v1669, %v1670
  %v1672 = vrot.slane %v1671, 1
  %v1673 = vadd.f32 %v1671, %v1672
  %v1674 = vsel %vm1058, %v1472, 0.0
  %v1675 = vsel %vm1058, %v1474, 0.0
  %v1676 = vadd.f32 %v1674, %v1675
  %v1677 = vrot.slane %v1676, 4
  %v1678 = vadd.f32 %v1676, %v1677
  %v1679 = vrot.slane %v1678, 2
  %v1680 = vadd.f32 %v1678, %v1679
  %v1681 = vrot.slane %v1680, 1
  %v1682 = vadd.f32 %v1680, %v1681
  %v1683 = vsel %vm1058, %v1476, 0.0
  %v1684 = vsel %vm1058, %v1478, 0.0
  %v1685 = vadd.f32 %v1683, %v1684
  %v1686 = vrot.slane %v1685, 4
  %v1687 = vadd.f32 %v1685, %v1686
  %v1688 = vrot.slane %v1687, 2
  %v1689 = vadd.f32 %v1687, %v1688
  %v1690 = vrot.slane %v1689, 1
  %v1691 = vadd.f32 %v1689, %v1690
  %v1692 = vsel %vm1058, %v1480, 0.0
  %v1693 = vsel %vm1058, %v1482, 0.0
  %v1694 = vadd.f32 %v1692, %v1693
  %v1695 = vrot.slane %v1694, 4
  %v1696 = vadd.f32 %v1694, %v1695
  %v1697 = vrot.slane %v1696, 2
  %v1698 = vadd.f32 %v1696, %v1697
  %v1699 = vrot.slane %v1698, 1
  %v1700 = vadd.f32 %v1698, %v1699
  %v1701 = vsel %vm1058, %v1484, 0.0
  %v1702 = vsel %vm1058, %v1486, 0.0
  %v1703 = vadd.f32 %v1701, %v1702
  %v1704 = vrot.slane %v1703, 4
  %v1705 = vadd.f32 %v1703, %v1704
  %v1706 = vrot.slane %v1705, 2
  %v1707 = vadd.f32 %v1705, %v1706
  %v1708 = vrot.slane %v1707, 1
  %v1709 = vadd.f32 %v1707, %v1708
  %v1710 = vsel %vm1058, %v1488, 0.0
  %v1711 = vsel %vm1058, %v1490, 0.0
  %v1712 = vadd.f32 %v1710, %v1711
  %v1713 = vrot.slane %v1712, 4
  %v1714 = vadd.f32 %v1712, %v1713
  %v1715 = vrot.slane %v1714, 2
  %v1716 = vadd.f32 %v1714, %v1715
  %v1717 = vrot.slane %v1716, 1
  %v1718 = vadd.f32 %v1716, %v1717
  %v1719 = vsel %vm1058, %v1492, 0.0
  %v1720 = vsel %vm1058, %v1494, 0.0
  %v1721 = vadd.f32 %v1719, %v1720
  %v1722 = vrot.slane %v1721, 4
  %v1723 = vadd.f32 %v1721, %v1722
  %v1724 = vrot.slane %v1723, 2
  %v1725 = vadd.f32 %v1723, %v1724
  %v1726 = vrot.slane %v1725, 1
  %v1727 = vadd.f32 %v1725, %v1726
  %v1728 = vsel %vm1058, %v1496, 0.0
  %v1729 = vsel %vm1058, %v1498, 0.0
  %v1730 = vadd.f32 %v1728, %v1729
  %v1731 = vrot.slane %v1730, 4
  %v1732 = vadd.f32 %v1730, %v1731
  %v1733 = vrot.slane %v1732, 2
  %v1734 = vadd.f32 %v1732, %v1733
  %v1735 = vrot.slane %v1734, 1
  %v1736 = vadd.f32 %v1734, %v1735
  %v1737 = vsel %vm1058, %v1500, 0.0
  %v1738 = vsel %vm1058, %v1502, 0.0
  %v1739 = vadd.f32 %v1737, %v1738
  %v1740 = vrot.slane %v1739, 4
  %v1741 = vadd.f32 %v1739, %v1740
  %v1742 = vrot.slane %v1741, 2
  %v1743 = vadd.f32 %v1741, %v1742
  %v1744 = vrot.slane %v1743, 1
  %v1745 = vadd.f32 %v1743, %v1744
  %v1746 = vsel %vm1058, %v1504, 0.0
  %v1747 = vsel %vm1058, %v1506, 0.0
  %v1748 = vadd.f32 %v1746, %v1747
  %v1749 = vrot.slane %v1748, 4
  %v1750 = vadd.f32 %v1748, %v1749
  %v1751 = vrot.slane %v1750, 2
  %v1752 = vadd.f32 %v1750, %v1751
  %v1753 = vrot.slane %v1752, 1
  %v1754 = vadd.f32 %v1752, %v1753
  %v1755 = vsel %vm1058, %v1508, 0.0
  %v1756 = vsel %vm1058, %v1510, 0.0
  %v1757 = vadd.f32 %v1755, %v1756
  %v1758 = vrot.slane %v1757, 4
  %v1759 = vadd.f32 %v1757, %v1758
  %v1760 = vrot.slane %v1759, 2
  %v1761 = vadd.f32 %v1759, %v1760
  %v1762 = vrot.slane %v1761, 1
  %v1763 = vadd.f32 %v1761, %v1762
  %v1764 = vsel %vm1058, %v1512, 0.0
  %v1765 = vsel %vm1058, %v1514, 0.0
  %v1766 = vadd.f32 %v1764, %v1765
  %v1767 = vrot.slane %v1766, 4
  %v1768 = vadd.f32 %v1766, %v1767
  %v1769 = vrot.slane %v1768, 2
  %v1770 = vadd.f32 %v1768, %v1769
  %v1771 = vrot.slane %v1770, 1
  %v1772 = vadd.f32 %v1770, %v1771
  %v1773 = vsel %vm1058, %v1516, 0.0
  %v1774 = vsel %vm1058, %v1518, 0.0
  %v1775 = vadd.f32 %v1773, %v1774
  %v1776 = vrot.slane %v1775, 4
  %v1777 = vadd.f32 %v1775, %v1776
  %v1778 = vrot.slane %v1777, 2
  %v1779 = vadd.f32 %v1777, %v1778
  %v1780 = vrot.slane %v1779, 1
  %v1781 = vadd.f32 %v1779, %v1780
  %v1782 = vsel %vm1058, %v1520, 0.0
  %v1783 = vsel %vm1058, %v1522, 0.0
  %v1784 = vadd.f32 %v1782, %v1783
  %v1785 = vrot.slane %v1784, 4
  %v1786 = vadd.f32 %v1784, %v1785
  %v1787 = vrot.slane %v1786, 2
  %v1788 = vadd.f32 %v1786, %v1787
  %v1789 = vrot.slane %v1788, 1
  %v1790 = vadd.f32 %v1788, %v1789
  %v1791 = vsel %vm1058, %v1524, 0.0
  %v1792 = vsel %vm1058, %v1526, 0.0
  %v1793 = vadd.f32 %v1791, %v1792
  %v1794 = vrot.slane %v1793, 4
  %v1795 = vadd.f32 %v1793, %v1794
  %v1796 = vrot.slane %v1795, 2
  %v1797 = vadd.f32 %v1795, %v1796
  %v1798 = vrot.slane %v1797, 1
  %v1799 = vadd.f32 %v1797, %v1798
  %v1800 = vsel %vm1058, %v1528, 0.0
  %v1801 = vsel %vm1058, %v1530, 0.0
  %v1802 = vadd.f32 %v1800, %v1801
  %v1803 = vrot.slane %v1802, 4
  %v1804 = vadd.f32 %v1802, %v1803
  %v1805 = vrot.slane %v1804, 2
  %v1806 = vadd.f32 %v1804, %v1805
  %v1807 = vrot.slane %v1806, 1
  %v1808 = vadd.f32 %v1806, %v1807
  %v1809 = vsel %vm1058, %v1532, 0.0
  %v1810 = vsel %vm1058, %v1534, 0.0
  %v1811 = vadd.f32 %v1809, %v1810
  %v1812 = vrot.slane %v1811, 4
  %v1813 = vadd.f32 %v1811, %v1812
  %v1814 = vrot.slane %v1813, 2
  %v1815 = vadd.f32 %v1813, %v1814
  %v1816 = vrot.slane %v1815, 1
  %v1817 = vadd.f32 %v1815, %v1816
  %v1818 = vsel %vm1058, %v1536, 0.0
  %v1819 = vsel %vm1058, %v1538, 0.0
  %v1820 = vadd.f32 %v1818, %v1819
  %v1821 = vrot.slane %v1820, 4
  %v1822 = vadd.f32 %v1820, %v1821
  %v1823 = vrot.slane %v1822, 2
  %v1824 = vadd.f32 %v1822, %v1823
  %v1825 = vrot.slane %v1824, 1
  %v1826 = vadd.f32 %v1824, %v1825
  %v1827 = vlog2.pop %v1547
  %v1828 = vmul.f32 %v1827, 0.6931472
  %v1829 = vlog2.pop %v1556
  %v1830 = vmul.f32 %v1829, 0.6931472
  %v1831 = vlog2.pop %v1565
  %v1832 = vmul.f32 %v1831, 0.6931472
  %v1833 = vlog2.pop %v1574
  %v1834 = vmul.f32 %v1833, 0.6931472
  %v1835 = vlog2.pop %v1583
  %v1836 = vmul.f32 %v1835, 0.6931472
  %v1837 = vlog2.pop %v1592
  %v1838 = vmul.f32 %v1837, 0.6931472
  %v1839 = vlog2.pop %v1601
  %v1840 = vmul.f32 %v1839, 0.6931472
  %v1841 = vlog2.pop %v1610
  %v1842 = vmul.f32 %v1841, 0.6931472
  %v1843 = vlog2.pop %v1619
  %v1844 = vmul.f32 %v1843, 0.6931472
  %v1845 = vlog2.pop %v1628
  %v1846 = vmul.f32 %v1845, 0.6931472
  %v1847 = vlog2.pop %v1637
  %v1848 = vmul.f32 %v1847, 0.6931472
  %v1849 = vlog2.pop %v1646
  %v1850 = vmul.f32 %v1849, 0.6931472
  %v1851 = vlog2.pop %v1655
  %v1852 = vmul.f32 %v1851, 0.6931472
  %v1853 = vlog2.pop %v1664
  %v1854 = vmul.f32 %v1853, 0.6931472
  %v1855 = vlog2.pop %v1673
  %v1856 = vmul.f32 %v1855, 0.6931472
  %v1857 = vlog2.pop %v1682
  %v1858 = vmul.f32 %v1857, 0.6931472
  %v1859 = vlog2.pop %v1691
  %v1860 = vmul.f32 %v1859, 0.6931472
  %v1861 = vlog2.pop %v1700
  %v1862 = vmul.f32 %v1861, 0.6931472
  %v1863 = vlog2.pop %v1709
  %v1864 = vmul.f32 %v1863, 0.6931472
  %v1865 = vlog2.pop %v1718
  %v1866 = vmul.f32 %v1865, 0.6931472
  %v1867 = vlog2.pop %v1727
  %v1868 = vmul.f32 %v1867, 0.6931472
  %v1869 = vlog2.pop %v1736
  %v1870 = vmul.f32 %v1869, 0.6931472
  %v1871 = vlog2.pop %v1745
  %v1872 = vmul.f32 %v1871, 0.6931472
  %v1873 = vlog2.pop %v1754
  %v1874 = vmul.f32 %v1873, 0.6931472
  %v1875 = vlog2.pop %v1763
  %v1876 = vmul.f32 %v1875, 0.6931472
  %v1877 = vlog2.pop %v1772
  %v1878 = vmul.f32 %v1877, 0.6931472
  %v1879 = vlog2.pop %v1781
  %v1880 = vmul.f32 %v1879, 0.6931472
  %v1881 = vlog2.pop %v1790
  %v1882 = vmul.f32 %v1881, 0.6931472
  %v1883 = vlog2.pop %v1799
  %v1884 = vmul.f32 %v1883, 0.6931472
  %v1885 = vlog2.pop %v1808
  %v1886 = vmul.f32 %v1885, 0.6931472
  %v1887 = vlog2.pop %v1817
  %v1888 = vmul.f32 %v1887, 0.6931472
  %v1889 = vlog2.pop %v1826
  %v1890 = vmul.f32 %v1889, 0.6931472
  %v1891 = vadd.f32 %v1828, %v1067
  %v1892 = vadd.f32 %v1830, %v1076
  %v1893 = vadd.f32 %v1832, %v1085
  %v1894 = vadd.f32 %v1834, %v1094
  %v1895 = vadd.f32 %v1836, %v1103
  %v1896 = vadd.f32 %v1838, %v1112
  %v1897 = vadd.f32 %v1840, %v1121
  %v1898 = vadd.f32 %v1842, %v1130
  %v1899 = vadd.f32 %v1844, %v1139
  %v1900 = vadd.f32 %v1846, %v1148
  %v1901 = vadd.f32 %v1848, %v1157
  %v1902 = vadd.f32 %v1850, %v1166
  %v1903 = vadd.f32 %v1852, %v1175
  %v1904 = vadd.f32 %v1854, %v1184
  %v1905 = vadd.f32 %v1856, %v1193
  %v1906 = vadd.f32 %v1858, %v1202
  %v1907 = vadd.f32 %v1860, %v1211
  %v1908 = vadd.f32 %v1862, %v1220
  %v1909 = vadd.f32 %v1864, %v1229
  %v1910 = vadd.f32 %v1866, %v1238
  %v1911 = vadd.f32 %v1868, %v1247
  %v1912 = vadd.f32 %v1870, %v1256
  %v1913 = vadd.f32 %v1872, %v1265
  %v1914 = vadd.f32 %v1874, %v1274
  %v1915 = vadd.f32 %v1876, %v1283
  %v1916 = vadd.f32 %v1878, %v1292
  %v1917 = vadd.f32 %v1880, %v1301
  %v1918 = vadd.f32 %v1882, %v1310
  %v1919 = vadd.f32 %v1884, %v1319
  %v1920 = vadd.f32 %v1886, %v1328
  %v1921 = vadd.f32 %v1888, %v1337
  %v1922 = vadd.f32 %v1890, %v1346
  %v1923 = vsub.f32 %v994, %v1891
  %v1924 = vsub.f32 %v995, %v1891
  %v1925 = vsub.f32 %v996, %v1892
  %v1926 = vsub.f32 %v997, %v1892
  %v1927 = vsub.f32 %v998, %v1893
  %v1928 = vsub.f32 %v999, %v1893
  %v1929 = vsub.f32 %v1000, %v1894
  %v1930 = vsub.f32 %v1001, %v1894
  %v1931 = vsub.f32 %v1002, %v1895
  %v1932 = vsub.f32 %v1003, %v1895
  %v1933 = vsub.f32 %v1004, %v1896
  %v1934 = vsub.f32 %v1005, %v1896
  %v1935 = vsub.f32 %v1006, %v1897
  %v1936 = vsub.f32 %v1007, %v1897
  %v1937 = vsub.f32 %v1008, %v1898
  %v1938 = vsub.f32 %v1009, %v1898
  %v1939 = vsub.f32 %v1010, %v1899
  %v1940 = vsub.f32 %v1011, %v1899
  %v1941 = vsub.f32 %v1012, %v1900
  %v1942 = vsub.f32 %v1013, %v1900
  %v1943 = vsub.f32 %v1014, %v1901
  %v1944 = vsub.f32 %v1015, %v1901
  %v1945 = vsub.f32 %v1016, %v1902
  %v1946 = vsub.f32 %v1017, %v1902
  %v1947 = vsub.f32 %v1018, %v1903
  %v1948 = vsub.f32 %v1019, %v1903
  %v1949 = vsub.f32 %v1020, %v1904
  %v1950 = vsub.f32 %v1021, %v1904
  %v1951 = vsub.f32 %v1022, %v1905
  %v1952 = vsub.f32 %v1023, %v1905
  %v1953 = vsub.f32 %v1024, %v1906
  %v1954 = vsub.f32 %v1025, %v1906
  %v1955 = vsub.f32 %v1026, %v1907
  %v1956 = vsub.f32 %v1027, %v1907
  %v1957 = vsub.f32 %v1028, %v1908
  %v1958 = vsub.f32 %v1029, %v1908
  %v1959 = vsub.f32 %v1030, %v1909
  %v1960 = vsub.f32 %v1031, %v1909
  %v1961 = vsub.f32 %v1032, %v1910
  %v1962 = vsub.f32 %v1033, %v1910
  %v1963 = vsub.f32 %v1034, %v1911
  %v1964 = vsub.f32 %v1035, %v1911
  %v1965 = vsub.f32 %v1036, %v1912
  %v1966 = vsub.f32 %v1037, %v1912
  %v1967 = vsub.f32 %v1038, %v1913
  %v1968 = vsub.f32 %v1039, %v1913
  %v1969 = vsub.f32 %v1040, %v1914
  %v1970 = vsub.f32 %v1041, %v1914
  %v1971 = vsub.f32 %v1042, %v1915
  %v1972 = vsub.f32 %v1043, %v1915
  %v1973 = vsub.f32 %v1044, %v1916
  %v1974 = vsub.f32 %v1045, %v1916
  %v1975 = vsub.f32 %v1046, %v1917
  %v1976 = vsub.f32 %v1047, %v1917
  %v1977 = vsub.f32 %v1048, %v1918
  %v1978 = vsub.f32 %v1049, %v1918
  %v1979 = vsub.f32 %v1050, %v1919
  %v1980 = vsub.f32 %v1051, %v1919
  %v1981 = vsub.f32 %v1052, %v1920
  %v1982 = vsub.f32 %v1053, %v1920
  %v1983 = vsub.f32 %v1054, %v1921
  %v1984 = vsub.f32 %v1055, %v1921
  %v1985 = vsub.f32 %v1056, %v1922
  %v1986 = vsub.f32 %v1057, %v1922
  %1988 = vset.pattern.permute.xlu0 0
  %1989 = vperm.xlu0 %1988, %v1923
  %v1990 = vpop.permute.xlu0 %1989
  %1993 = vset.pattern.permute.xlu0 0
  %1994 = vperm.xlu0 %1993, %v1924
  %v1995 = vpop.permute.xlu0 %1994
  %1998 = vset.pattern.permute.xlu0 0
  %1999 = vperm.xlu0 %1998, %v1925
  %v2000 = vpop.permute.xlu0 %1999
  %2003 = vset.pattern.permute.xlu0 0
  %2004 = vperm.xlu0 %2003, %v1926
  %v2005 = vpop.permute.xlu0 %2004
  %2008 = vset.pattern.permute.xlu0 0
  %2009 = vperm.xlu0 %2008, %v1927
  %v2010 = vpop.permute.xlu0 %2009
  %2013 = vset.pattern.permute.xlu0 0
  %2014 = vperm.xlu0 %2013, %v1928
  %v2015 = vpop.permute.xlu0 %2014
  %2018 = vset.pattern.permute.xlu0 0
  %2019 = vperm.xlu0 %2018, %v1929
  %v2020 = vpop.permute.xlu0 %2019
  %2023 = vset.pattern.permute.xlu0 0
  %2024 = vperm.xlu0 %2023, %v1930
  %v2025 = vpop.permute.xlu0 %2024
  %2028 = vset.pattern.permute.xlu0 0
  %2029 = vperm.xlu0 %2028, %v1931
  %v2030 = vpop.permute.xlu0 %2029
  %2033 = vset.pattern.permute.xlu0 0
  %2034 = vperm.xlu0 %2033, %v1932
  %v2035 = vpop.permute.xlu0 %2034
  %2038 = vset.pattern.permute.xlu0 0
  %2039 = vperm.xlu0 %2038, %v1933
  %v2040 = vpop.permute.xlu0 %2039
  %2043 = vset.pattern.permute.xlu0 0
  %2044 = vperm.xlu0 %2043, %v1934
  %v2045 = vpop.permute.xlu0 %2044
  %2048 = vset.pattern.permute.xlu0 0
  %2049 = vperm.xlu0 %2048, %v1935
  %v2050 = vpop.permute.xlu0 %2049
  %2053 = vset.pattern.permute.xlu0 0
  %2054 = vperm.xlu0 %2053, %v1936
  %v2055 = vpop.permute.xlu0 %2054
  %2058 = vset.pattern.permute.xlu0 0
  %2059 = vperm.xlu0 %2058, %v1937
  %v2060 = vpop.permute.xlu0 %2059
  %2063 = vset.pattern.permute.xlu0 0
  %2064 = vperm.xlu0 %2063, %v1938
  %v2065 = vpop.permute.xlu0 %2064
  %2068 = vset.pattern.permute.xlu0 0
  %2069 = vperm.xlu0 %2068, %v1939
  %v2070 = vpop.permute.xlu0 %2069
  %2073 = vset.pattern.permute.xlu0 0
  %2074 = vperm.xlu0 %2073, %v1940
  %v2075 = vpop.permute.xlu0 %2074
  %2078 = vset.pattern.permute.xlu0 0
  %2079 = vperm.xlu0 %2078, %v1941
  %v2080 = vpop.permute.xlu0 %2079
  %2083 = vset.pattern.permute.xlu0 0
  %2084 = vperm.xlu0 %2083, %v1942
  %v2085 = vpop.permute.xlu0 %2084
  %2088 = vset.pattern.permute.xlu0 0
  %2089 = vperm.xlu0 %2088, %v1943
  %v2090 = vpop.permute.xlu0 %2089
  %2093 = vset.pattern.permute.xlu0 0
  %2094 = vperm.xlu0 %2093, %v1944
  %v2095 = vpop.permute.xlu0 %2094
  %2098 = vset.pattern.permute.xlu0 0
  %2099 = vperm.xlu0 %2098, %v1945
  %v2100 = vpop.permute.xlu0 %2099
  %2103 = vset.pattern.permute.xlu0 0
  %2104 = vperm.xlu0 %2103, %v1946
  %v2105 = vpop.permute.xlu0 %2104
  %2108 = vset.pattern.permute.xlu0 0
  %2109 = vperm.xlu0 %2108, %v1947
  %v2110 = vpop.permute.xlu0 %2109
  %2113 = vset.pattern.permute.xlu0 0
  %2114 = vperm.xlu0 %2113, %v1948
  %v2115 = vpop.permute.xlu0 %2114
  %2118 = vset.pattern.permute.xlu0 0
  %2119 = vperm.xlu0 %2118, %v1949
  %v2120 = vpop.permute.xlu0 %2119
  %2123 = vset.pattern.permute.xlu0 0
  %2124 = vperm.xlu0 %2123, %v1950
  %v2125 = vpop.permute.xlu0 %2124
  %2128 = vset.pattern.permute.xlu0 0
  %2129 = vperm.xlu0 %2128, %v1951
  %v2130 = vpop.permute.xlu0 %2129
  %2133 = vset.pattern.permute.xlu0 0
  %2134 = vperm.xlu0 %2133, %v1952
  %v2135 = vpop.permute.xlu0 %2134
  %2138 = vset.pattern.permute.xlu0 0
  %2139 = vperm.xlu0 %2138, %v1953
  %v2140 = vpop.permute.xlu0 %2139
  %2143 = vset.pattern.permute.xlu0 0
  %2144 = vperm.xlu0 %2143, %v1954
  %v2145 = vpop.permute.xlu0 %2144
  %2148 = vset.pattern.permute.xlu0 0
  %2149 = vperm.xlu0 %2148, %v1955
  %v2150 = vpop.permute.xlu0 %2149
  %2153 = vset.pattern.permute.xlu0 0
  %2154 = vperm.xlu0 %2153, %v1956
  %v2155 = vpop.permute.xlu0 %2154
  %2158 = vset.pattern.permute.xlu0 0
  %2159 = vperm.xlu0 %2158, %v1957
  %v2160 = vpop.permute.xlu0 %2159
  %2163 = vset.pattern.permute.xlu0 0
  %2164 = vperm.xlu0 %2163, %v1958
  %v2165 = vpop.permute.xlu0 %2164
  %2168 = vset.pattern.permute.xlu0 0
  %2169 = vperm.xlu0 %2168, %v1959
  %v2170 = vpop.permute.xlu0 %2169
  %2173 = vset.pattern.permute.xlu0 0
  %2174 = vperm.xlu0 %2173, %v1960
  %v2175 = vpop.permute.xlu0 %2174
  %2178 = vset.pattern.permute.xlu0 0
  %2179 = vperm.xlu0 %2178, %v1961
  %v2180 = vpop.permute.xlu0 %2179
  %2183 = vset.pattern.permute.xlu0 0
  %2184 = vperm.xlu0 %2183, %v1962
  %v2185 = vpop.permute.xlu0 %2184
  %2188 = vset.pattern.permute.xlu0 0
  %2189 = vperm.xlu0 %2188, %v1963
  %v2190 = vpop.permute.xlu0 %2189
  %2193 = vset.pattern.permute.xlu0 0
  %2194 = vperm.xlu0 %2193, %v1964
  %v2195 = vpop.permute.xlu0 %2194
  %2198 = vset.pattern.permute.xlu0 0
  %2199 = vperm.xlu0 %2198, %v1965
  %v2200 = vpop.permute.xlu0 %2199
  %2203 = vset.pattern.permute.xlu0 0
  %2204 = vperm.xlu0 %2203, %v1966
  %v2205 = vpop.permute.xlu0 %2204
  %2208 = vset.pattern.permute.xlu0 0
  %2209 = vperm.xlu0 %2208, %v1967
  %v2210 = vpop.permute.xlu0 %2209
  %2213 = vset.pattern.permute.xlu0 0
  %2214 = vperm.xlu0 %2213, %v1968
  %v2215 = vpop.permute.xlu0 %2214
  %2218 = vset.pattern.permute.xlu0 0
  %2219 = vperm.xlu0 %2218, %v1969
  %v2220 = vpop.permute.xlu0 %2219
  %2223 = vset.pattern.permute.xlu0 0
  %2224 = vperm.xlu0 %2223, %v1970
  %v2225 = vpop.permute.xlu0 %2224
  %2228 = vset.pattern.permute.xlu0 0
  %2229 = vperm.xlu0 %2228, %v1971
  %v2230 = vpop.permute.xlu0 %2229
  %2233 = vset.pattern.permute.xlu0 0
  %2234 = vperm.xlu0 %2233, %v1972
  %v2235 = vpop.permute.xlu0 %2234
  %2238 = vset.pattern.permute.xlu0 0
  %2239 = vperm.xlu0 %2238, %v1973
  %v2240 = vpop.permute.xlu0 %2239
  %2243 = vset.pattern.permute.xlu0 0
  %2244 = vperm.xlu0 %2243, %v1974
  %v2245 = vpop.permute.xlu0 %2244
  %2248 = vset.pattern.permute.xlu0 0
  %2249 = vperm.xlu0 %2248, %v1975
  %v2250 = vpop.permute.xlu0 %2249
  %2253 = vset.pattern.permute.xlu0 0
  %2254 = vperm.xlu0 %2253, %v1976
  %v2255 = vpop.permute.xlu0 %2254
  %2258 = vset.pattern.permute.xlu0 0
  %2259 = vperm.xlu0 %2258, %v1977
  %v2260 = vpop.permute.xlu0 %2259
  %2263 = vset.pattern.permute.xlu0 0
  %2264 = vperm.xlu0 %2263, %v1978
  %v2265 = vpop.permute.xlu0 %2264
  %2268 = vset.pattern.permute.xlu0 0
  %2269 = vperm.xlu0 %2268, %v1979
  %v2270 = vpop.permute.xlu0 %2269
  %2273 = vset.pattern.permute.xlu0 0
  %2274 = vperm.xlu0 %2273, %v1980
  %v2275 = vpop.permute.xlu0 %2274
  %2278 = vset.pattern.permute.xlu0 0
  %2279 = vperm.xlu0 %2278, %v1981
  %v2280 = vpop.permute.xlu0 %2279
  %2283 = vset.pattern.permute.xlu0 0
  %2284 = vperm.xlu0 %2283, %v1982
  %v2285 = vpop.permute.xlu0 %2284
  %2288 = vset.pattern.permute.xlu0 0
  %2289 = vperm.xlu0 %2288, %v1983
  %v2290 = vpop.permute.xlu0 %2289
  %2293 = vset.pattern.permute.xlu0 0
  %2294 = vperm.xlu0 %2293, %v1984
  %v2295 = vpop.permute.xlu0 %2294
  %2298 = vset.pattern.permute.xlu0 0
  %2299 = vperm.xlu0 %2298, %v1985
  %v2300 = vpop.permute.xlu0 %2299
  %2303 = vset.pattern.permute.xlu0 0
  %2304 = vperm.xlu0 %2303, %v1986
  %v2305 = vpop.permute.xlu0 %2304
  %v2307 = vmul.f32 %v43, %v1990
  %v2308 = vmul.f32 %v44, %v1995
  %v2309 = vmul.f32 %v45, %v2000
  %v2310 = vmul.f32 %v46, %v2005
  %v2311 = vmul.f32 %v47, %v2010
  %v2312 = vmul.f32 %v48, %v2015
  %v2313 = vmul.f32 %v49, %v2020
  %v2314 = vmul.f32 %v50, %v2025
  %v2315 = vmul.f32 %v51, %v2030
  %v2316 = vmul.f32 %v52, %v2035
  %v2317 = vmul.f32 %v53, %v2040
  %v2318 = vmul.f32 %v54, %v2045
  %v2319 = vmul.f32 %v55, %v2050
  %v2320 = vmul.f32 %v56, %v2055
  %v2321 = vmul.f32 %v57, %v2060
  %v2322 = vmul.f32 %v58, %v2065
  %v2323 = vmul.f32 %v59, %v2070
  %v2324 = vmul.f32 %v60, %v2075
  %v2325 = vmul.f32 %v61, %v2080
  %v2326 = vmul.f32 %v62, %v2085
  %v2327 = vmul.f32 %v63, %v2090
  %v2328 = vmul.f32 %v64, %v2095
  %v2329 = vmul.f32 %v65, %v2100
  %v2330 = vmul.f32 %v66, %v2105
  %v2331 = vmul.f32 %v67, %v2110
  %v2332 = vmul.f32 %v68, %v2115
  %v2333 = vmul.f32 %v69, %v2120
  %v2334 = vmul.f32 %v70, %v2125
  %v2335 = vmul.f32 %v71, %v2130
  %v2336 = vmul.f32 %v72, %v2135
  %v2337 = vmul.f32 %v73, %v2140
  %v2338 = vmul.f32 %v74, %v2145
  %v2339 = vmul.f32 %v75, %v2150
  %v2340 = vmul.f32 %v76, %v2155
  %v2341 = vmul.f32 %v77, %v2160
  %v2342 = vmul.f32 %v78, %v2165
  %v2343 = vmul.f32 %v79, %v2170
  %v2344 = vmul.f32 %v80, %v2175
  %v2345 = vmul.f32 %v81, %v2180
  %v2346 = vmul.f32 %v82, %v2185
  %v2347 = vmul.f32 %v83, %v2190
  %v2348 = vmul.f32 %v84, %v2195
  %v2349 = vmul.f32 %v85, %v2200
  %v2350 = vmul.f32 %v86, %v2205
  %v2351 = vmul.f32 %v87, %v2210
  %v2352 = vmul.f32 %v88, %v2215
  %v2353 = vmul.f32 %v89, %v2220
  %v2354 = vmul.f32 %v90, %v2225
  %v2355 = vmul.f32 %v91, %v2230
  %v2356 = vmul.f32 %v92, %v2235
  %v2357 = vmul.f32 %v93, %v2240
  %v2358 = vmul.f32 %v94, %v2245
  %v2359 = vmul.f32 %v95, %v2250
  %v2360 = vmul.f32 %v96, %v2255
  %v2361 = vmul.f32 %v97, %v2260
  %v2362 = vmul.f32 %v98, %v2265
  %v2363 = vmul.f32 %v99, %v2270
  %v2364 = vmul.f32 %v100, %v2275
  %v2365 = vmul.f32 %v101, %v2280
  %v2366 = vmul.f32 %v102, %v2285
  %v2367 = vmul.f32 %v103, %v2290
  %v2368 = vmul.f32 %v104, %v2295
  %v2369 = vmul.f32 %v105, %v2300
  %v2370 = vmul.f32 %v106, %v2305
  %v2371 = vsel %vm119, %v2307, 0.0
  %v2372 = vsel %vm119, %v2308, 0.0
  %v2373 = vadd.f32 %v2371, %v2372
  %v2374 = vrot.slane %v2373, 4
  %v2375 = vadd.f32 %v2373, %v2374
  %v2376 = vrot.slane %v2375, 2
  %v2377 = vadd.f32 %v2375, %v2376
  %v2378 = vrot.slane %v2377, 1
  %v2379 = vadd.f32 %v2377, %v2378
  %v2380 = vsel %vm119, %v2309, 0.0
  %v2381 = vsel %vm119, %v2310, 0.0
  %v2382 = vadd.f32 %v2380, %v2381
  %v2383 = vrot.slane %v2382, 4
  %v2384 = vadd.f32 %v2382, %v2383
  %v2385 = vrot.slane %v2384, 2
  %v2386 = vadd.f32 %v2384, %v2385
  %v2387 = vrot.slane %v2386, 1
  %v2388 = vadd.f32 %v2386, %v2387
  %v2389 = vsel %vm119, %v2311, 0.0
  %v2390 = vsel %vm119, %v2312, 0.0
  %v2391 = vadd.f32 %v2389, %v2390
  %v2392 = vrot.slane %v2391, 4
  %v2393 = vadd.f32 %v2391, %v2392
  %v2394 = vrot.slane %v2393, 2
  %v2395 = vadd.f32 %v2393, %v2394
  %v2396 = vrot.slane %v2395, 1
  %v2397 = vadd.f32 %v2395, %v2396
  %v2398 = vsel %vm119, %v2313, 0.0
  %v2399 = vsel %vm119, %v2314, 0.0
  %v2400 = vadd.f32 %v2398, %v2399
  %v2401 = vrot.slane %v2400, 4
  %v2402 = vadd.f32 %v2400, %v2401
  %v2403 = vrot.slane %v2402, 2
  %v2404 = vadd.f32 %v2402, %v2403
  %v2405 = vrot.slane %v2404, 1
  %v2406 = vadd.f32 %v2404, %v2405
  %v2407 = vsel %vm119, %v2315, 0.0
  %v2408 = vsel %vm119, %v2316, 0.0
  %v2409 = vadd.f32 %v2407, %v2408
  %v2410 = vrot.slane %v2409, 4
  %v2411 = vadd.f32 %v2409, %v2410
  %v2412 = vrot.slane %v2411, 2
  %v2413 = vadd.f32 %v2411, %v2412
  %v2414 = vrot.slane %v2413, 1
  %v2415 = vadd.f32 %v2413, %v2414
  %v2416 = vsel %vm119, %v2317, 0.0
  %v2417 = vsel %vm119, %v2318, 0.0
  %v2418 = vadd.f32 %v2416, %v2417
  %v2419 = vrot.slane %v2418, 4
  %v2420 = vadd.f32 %v2418, %v2419
  %v2421 = vrot.slane %v2420, 2
  %v2422 = vadd.f32 %v2420, %v2421
  %v2423 = vrot.slane %v2422, 1
  %v2424 = vadd.f32 %v2422, %v2423
  %v2425 = vsel %vm119, %v2319, 0.0
  %v2426 = vsel %vm119, %v2320, 0.0
  %v2427 = vadd.f32 %v2425, %v2426
  %v2428 = vrot.slane %v2427, 4
  %v2429 = vadd.f32 %v2427, %v2428
  %v2430 = vrot.slane %v2429, 2
  %v2431 = vadd.f32 %v2429, %v2430
  %v2432 = vrot.slane %v2431, 1
  %v2433 = vadd.f32 %v2431, %v2432
  %v2434 = vsel %vm119, %v2321, 0.0
  %v2435 = vsel %vm119, %v2322, 0.0
  %v2436 = vadd.f32 %v2434, %v2435
  %v2437 = vrot.slane %v2436, 4
  %v2438 = vadd.f32 %v2436, %v2437
  %v2439 = vrot.slane %v2438, 2
  %v2440 = vadd.f32 %v2438, %v2439
  %v2441 = vrot.slane %v2440, 1
  %v2442 = vadd.f32 %v2440, %v2441
  %v2443 = vsel %vm119, %v2323, 0.0
  %v2444 = vsel %vm119, %v2324, 0.0
  %v2445 = vadd.f32 %v2443, %v2444
  %v2446 = vrot.slane %v2445, 4
  %v2447 = vadd.f32 %v2445, %v2446
  %v2448 = vrot.slane %v2447, 2
  %v2449 = vadd.f32 %v2447, %v2448
  %v2450 = vrot.slane %v2449, 1
  %v2451 = vadd.f32 %v2449, %v2450
  %v2452 = vsel %vm119, %v2325, 0.0
  %v2453 = vsel %vm119, %v2326, 0.0
  %v2454 = vadd.f32 %v2452, %v2453
  %v2455 = vrot.slane %v2454, 4
  %v2456 = vadd.f32 %v2454, %v2455
  %v2457 = vrot.slane %v2456, 2
  %v2458 = vadd.f32 %v2456, %v2457
  %v2459 = vrot.slane %v2458, 1
  %v2460 = vadd.f32 %v2458, %v2459
  %v2461 = vsel %vm119, %v2327, 0.0
  %v2462 = vsel %vm119, %v2328, 0.0
  %v2463 = vadd.f32 %v2461, %v2462
  %v2464 = vrot.slane %v2463, 4
  %v2465 = vadd.f32 %v2463, %v2464
  %v2466 = vrot.slane %v2465, 2
  %v2467 = vadd.f32 %v2465, %v2466
  %v2468 = vrot.slane %v2467, 1
  %v2469 = vadd.f32 %v2467, %v2468
  %v2470 = vsel %vm119, %v2329, 0.0
  %v2471 = vsel %vm119, %v2330, 0.0
  %v2472 = vadd.f32 %v2470, %v2471
  %v2473 = vrot.slane %v2472, 4
  %v2474 = vadd.f32 %v2472, %v2473
  %v2475 = vrot.slane %v2474, 2
  %v2476 = vadd.f32 %v2474, %v2475
  %v2477 = vrot.slane %v2476, 1
  %v2478 = vadd.f32 %v2476, %v2477
  %v2479 = vsel %vm119, %v2331, 0.0
  %v2480 = vsel %vm119, %v2332, 0.0
  %v2481 = vadd.f32 %v2479, %v2480
  %v2482 = vrot.slane %v2481, 4
  %v2483 = vadd.f32 %v2481, %v2482
  %v2484 = vrot.slane %v2483, 2
  %v2485 = vadd.f32 %v2483, %v2484
  %v2486 = vrot.slane %v2485, 1
  %v2487 = vadd.f32 %v2485, %v2486
  %v2488 = vsel %vm119, %v2333, 0.0
  %v2489 = vsel %vm119, %v2334, 0.0
  %v2490 = vadd.f32 %v2488, %v2489
  %v2491 = vrot.slane %v2490, 4
  %v2492 = vadd.f32 %v2490, %v2491
  %v2493 = vrot.slane %v2492, 2
  %v2494 = vadd.f32 %v2492, %v2493
  %v2495 = vrot.slane %v2494, 1
  %v2496 = vadd.f32 %v2494, %v2495
  %v2497 = vsel %vm119, %v2335, 0.0
  %v2498 = vsel %vm119, %v2336, 0.0
  %v2499 = vadd.f32 %v2497, %v2498
  %v2500 = vrot.slane %v2499, 4
  %v2501 = vadd.f32 %v2499, %v2500
  %v2502 = vrot.slane %v2501, 2
  %v2503 = vadd.f32 %v2501, %v2502
  %v2504 = vrot.slane %v2503, 1
  %v2505 = vadd.f32 %v2503, %v2504
  %v2506 = vsel %vm119, %v2337, 0.0
  %v2507 = vsel %vm119, %v2338, 0.0
  %v2508 = vadd.f32 %v2506, %v2507
  %v2509 = vrot.slane %v2508, 4
  %v2510 = vadd.f32 %v2508, %v2509
  %v2511 = vrot.slane %v2510, 2
  %v2512 = vadd.f32 %v2510, %v2511
  %v2513 = vrot.slane %v2512, 1
  %v2514 = vadd.f32 %v2512, %v2513
  %v2515 = vsel %vm119, %v2339, 0.0
  %v2516 = vsel %vm119, %v2340, 0.0
  %v2517 = vadd.f32 %v2515, %v2516
  %v2518 = vrot.slane %v2517, 4
  %v2519 = vadd.f32 %v2517, %v2518
  %v2520 = vrot.slane %v2519, 2
  %v2521 = vadd.f32 %v2519, %v2520
  %v2522 = vrot.slane %v2521, 1
  %v2523 = vadd.f32 %v2521, %v2522
  %v2524 = vsel %vm119, %v2341, 0.0
  %v2525 = vsel %vm119, %v2342, 0.0
  %v2526 = vadd.f32 %v2524, %v2525
  %v2527 = vrot.slane %v2526, 4
  %v2528 = vadd.f32 %v2526, %v2527
  %v2529 = vrot.slane %v2528, 2
  %v2530 = vadd.f32 %v2528, %v2529
  %v2531 = vrot.slane %v2530, 1
  %v2532 = vadd.f32 %v2530, %v2531
  %v2533 = vsel %vm119, %v2343, 0.0
  %v2534 = vsel %vm119, %v2344, 0.0
  %v2535 = vadd.f32 %v2533, %v2534
  %v2536 = vrot.slane %v2535, 4
  %v2537 = vadd.f32 %v2535, %v2536
  %v2538 = vrot.slane %v2537, 2
  %v2539 = vadd.f32 %v2537, %v2538
  %v2540 = vrot.slane %v2539, 1
  %v2541 = vadd.f32 %v2539, %v2540
  %v2542 = vsel %vm119, %v2345, 0.0
  %v2543 = vsel %vm119, %v2346, 0.0
  %v2544 = vadd.f32 %v2542, %v2543
  %v2545 = vrot.slane %v2544, 4
  %v2546 = vadd.f32 %v2544, %v2545
  %v2547 = vrot.slane %v2546, 2
  %v2548 = vadd.f32 %v2546, %v2547
  %v2549 = vrot.slane %v2548, 1
  %v2550 = vadd.f32 %v2548, %v2549
  %v2551 = vsel %vm119, %v2347, 0.0
  %v2552 = vsel %vm119, %v2348, 0.0
  %v2553 = vadd.f32 %v2551, %v2552
  %v2554 = vrot.slane %v2553, 4
  %v2555 = vadd.f32 %v2553, %v2554
  %v2556 = vrot.slane %v2555, 2
  %v2557 = vadd.f32 %v2555, %v2556
  %v2558 = vrot.slane %v2557, 1
  %v2559 = vadd.f32 %v2557, %v2558
  %v2560 = vsel %vm119, %v2349, 0.0
  %v2561 = vsel %vm119, %v2350, 0.0
  %v2562 = vadd.f32 %v2560, %v2561
  %v2563 = vrot.slane %v2562, 4
  %v2564 = vadd.f32 %v2562, %v2563
  %v2565 = vrot.slane %v2564, 2
  %v2566 = vadd.f32 %v2564, %v2565
  %v2567 = vrot.slane %v2566, 1
  %v2568 = vadd.f32 %v2566, %v2567
  %v2569 = vsel %vm119, %v2351, 0.0
  %v2570 = vsel %vm119, %v2352, 0.0
  %v2571 = vadd.f32 %v2569, %v2570
  %v2572 = vrot.slane %v2571, 4
  %v2573 = vadd.f32 %v2571, %v2572
  %v2574 = vrot.slane %v2573, 2
  %v2575 = vadd.f32 %v2573, %v2574
  %v2576 = vrot.slane %v2575, 1
  %v2577 = vadd.f32 %v2575, %v2576
  %v2578 = vsel %vm119, %v2353, 0.0
  %v2579 = vsel %vm119, %v2354, 0.0
  %v2580 = vadd.f32 %v2578, %v2579
  %v2581 = vrot.slane %v2580, 4
  %v2582 = vadd.f32 %v2580, %v2581
  %v2583 = vrot.slane %v2582, 2
  %v2584 = vadd.f32 %v2582, %v2583
  %v2585 = vrot.slane %v2584, 1
  %v2586 = vadd.f32 %v2584, %v2585
  %v2587 = vsel %vm119, %v2355, 0.0
  %v2588 = vsel %vm119, %v2356, 0.0
  %v2589 = vadd.f32 %v2587, %v2588
  %v2590 = vrot.slane %v2589, 4
  %v2591 = vadd.f32 %v2589, %v2590
  %v2592 = vrot.slane %v2591, 2
  %v2593 = vadd.f32 %v2591, %v2592
  %v2594 = vrot.slane %v2593, 1
  %v2595 = vadd.f32 %v2593, %v2594
  %v2596 = vsel %vm119, %v2357, 0.0
  %v2597 = vsel %vm119, %v2358, 0.0
  %v2598 = vadd.f32 %v2596, %v2597
  %v2599 = vrot.slane %v2598, 4
  %v2600 = vadd.f32 %v2598, %v2599
  %v2601 = vrot.slane %v2600, 2
  %v2602 = vadd.f32 %v2600, %v2601
  %v2603 = vrot.slane %v2602, 1
  %v2604 = vadd.f32 %v2602, %v2603
  %v2605 = vsel %vm119, %v2359, 0.0
  %v2606 = vsel %vm119, %v2360, 0.0
  %v2607 = vadd.f32 %v2605, %v2606
  %v2608 = vrot.slane %v2607, 4
  %v2609 = vadd.f32 %v2607, %v2608
  %v2610 = vrot.slane %v2609, 2
  %v2611 = vadd.f32 %v2609, %v2610
  %v2612 = vrot.slane %v2611, 1
  %v2613 = vadd.f32 %v2611, %v2612
  %v2614 = vsel %vm119, %v2361, 0.0
  %v2615 = vsel %vm119, %v2362, 0.0
  %v2616 = vadd.f32 %v2614, %v2615
  %v2617 = vrot.slane %v2616, 4
  %v2618 = vadd.f32 %v2616, %v2617
  %v2619 = vrot.slane %v2618, 2
  %v2620 = vadd.f32 %v2618, %v2619
  %v2621 = vrot.slane %v2620, 1
  %v2622 = vadd.f32 %v2620, %v2621
  %v2623 = vsel %vm119, %v2363, 0.0
  %v2624 = vsel %vm119, %v2364, 0.0
  %v2625 = vadd.f32 %v2623, %v2624
  %v2626 = vrot.slane %v2625, 4
  %v2627 = vadd.f32 %v2625, %v2626
  %v2628 = vrot.slane %v2627, 2
  %v2629 = vadd.f32 %v2627, %v2628
  %v2630 = vrot.slane %v2629, 1
  %v2631 = vadd.f32 %v2629, %v2630
  %v2632 = vsel %vm119, %v2365, 0.0
  %v2633 = vsel %vm119, %v2366, 0.0
  %v2634 = vadd.f32 %v2632, %v2633
  %v2635 = vrot.slane %v2634, 4
  %v2636 = vadd.f32 %v2634, %v2635
  %v2637 = vrot.slane %v2636, 2
  %v2638 = vadd.f32 %v2636, %v2637
  %v2639 = vrot.slane %v2638, 1
  %v2640 = vadd.f32 %v2638, %v2639
  %v2641 = vsel %vm119, %v2367, 0.0
  %v2642 = vsel %vm119, %v2368, 0.0
  %v2643 = vadd.f32 %v2641, %v2642
  %v2644 = vrot.slane %v2643, 4
  %v2645 = vadd.f32 %v2643, %v2644
  %v2646 = vrot.slane %v2645, 2
  %v2647 = vadd.f32 %v2645, %v2646
  %v2648 = vrot.slane %v2647, 1
  %v2649 = vadd.f32 %v2647, %v2648
  %v2650 = vsel %vm119, %v2369, 0.0
  %v2651 = vsel %vm119, %v2370, 0.0
  %v2652 = vadd.f32 %v2650, %v2651
  %v2653 = vrot.slane %v2652, 4
  %v2654 = vadd.f32 %v2652, %v2653
  %v2655 = vrot.slane %v2654, 2
  %v2656 = vadd.f32 %v2654, %v2655
  %v2657 = vrot.slane %v2656, 1
  %v2658 = vadd.f32 %v2656, %v2657
  %v2659 = vtanh.pop %v2379
  %v2660 = vtanh.pop %v2388
  %v2661 = vtanh.pop %v2397
  %v2662 = vtanh.pop %v2406
  %v2663 = vtanh.pop %v2415
  %v2664 = vtanh.pop %v2424
  %v2665 = vtanh.pop %v2433
  %v2666 = vtanh.pop %v2442
  %v2667 = vtanh.pop %v2451
  %v2668 = vtanh.pop %v2460
  %v2669 = vtanh.pop %v2469
  %v2670 = vtanh.pop %v2478
  %v2671 = vtanh.pop %v2487
  %v2672 = vtanh.pop %v2496
  %v2673 = vtanh.pop %v2505
  %v2674 = vtanh.pop %v2514
  %v2675 = vtanh.pop %v2523
  %v2676 = vtanh.pop %v2532
  %v2677 = vtanh.pop %v2541
  %v2678 = vtanh.pop %v2550
  %v2679 = vtanh.pop %v2559
  %v2680 = vtanh.pop %v2568
  %v2681 = vtanh.pop %v2577
  %v2682 = vtanh.pop %v2586
  %v2683 = vtanh.pop %v2595
  %v2684 = vtanh.pop %v2604
  %v2685 = vtanh.pop %v2613
  %v2686 = vtanh.pop %v2622
  %v2687 = vtanh.pop %v2631
  %v2688 = vtanh.pop %v2640
  %v2689 = vtanh.pop %v2649
  %v2690 = vtanh.pop %v2658
  %v2691 = vld [vmem:[%s8] sm:$0xff]
  %v2692 = vld [vmem:[%s8 + $0x8] sm:$0xff]
  %v2693 = vld [vmem:[%s8 + $0x10] sm:$0xff]
  %v2694 = vld [vmem:[%s8 + $0x18] sm:$0xff]
  %v2695 = vld [vmem:[%s9] sm:$0x1]
  %v2697 = vperm.slane %v2695, 0
  %vm2731 = vcmask 1041409
  %v2732 = vsel %vm2731, %v2660, %v2659
  %vm2733 = vcmask 1042434
  %v2734 = vsel %vm2733, %v2661, %v2732
  %vm2735 = vcmask 1043459
  %v2736 = vsel %vm2735, %v2662, %v2734
  %vm2737 = vcmask 1044484
  %v2738 = vsel %vm2737, %v2663, %v2736
  %vm2739 = vcmask 1045509
  %v2740 = vsel %vm2739, %v2664, %v2738
  %vm2741 = vcmask 1046534
  %v2742 = vsel %vm2741, %v2665, %v2740
  %vm2743 = vcmask 1047559
  %v2744 = vsel %vm2743, %v2666, %v2742
  %v2745 = vsel %vm2731, %v2668, %v2667
  %v2746 = vsel %vm2733, %v2669, %v2745
  %v2747 = vsel %vm2735, %v2670, %v2746
  %v2748 = vsel %vm2737, %v2671, %v2747
  %v2749 = vsel %vm2739, %v2672, %v2748
  %v2750 = vsel %vm2741, %v2673, %v2749
  %v2751 = vsel %vm2743, %v2674, %v2750
  %v2752 = vsel %vm2731, %v2676, %v2675
  %v2753 = vsel %vm2733, %v2677, %v2752
  %v2754 = vsel %vm2735, %v2678, %v2753
  %v2755 = vsel %vm2737, %v2679, %v2754
  %v2756 = vsel %vm2739, %v2680, %v2755
  %v2757 = vsel %vm2741, %v2681, %v2756
  %v2758 = vsel %vm2743, %v2682, %v2757
  %v2759 = vsel %vm2731, %v2684, %v2683
  %v2760 = vsel %vm2733, %v2685, %v2759
  %v2761 = vsel %vm2735, %v2686, %v2760
  %v2762 = vsel %vm2737, %v2687, %v2761
  %v2763 = vsel %vm2739, %v2688, %v2762
  %v2764 = vsel %vm2741, %v2689, %v2763
  %v2765 = vsel %vm2743, %v2690, %v2764
  %v2766 = vsel %vm119, %v2744, 0
  %v2768 = vsel %vm119, %v2751, 0
  %v2770 = vsel %vm119, %v2758, 0
  %v2772 = vsel %vm119, %v2765, 0
  %2774 = vmatpush.msra.mxu0 0.0
  %2775 = vmatpush.msra.mxu0 0.0
  %2776 = vmatpush.msra.mxu0 0.0
  %2777 = vmatpush.msra.mxu0 0.0
  %2778 = vmatpush.msra.mxu0 0.0
  %2779 = vmatpush.msra.mxu0 0.0
  %2780 = vmatpush.msra.mxu0 0.0
  %2781 = vmatpush.msra.mxu0 0.0
  %2782 = vmatpush.msra.mxu0 0.0
  %2783 = vmatpush.msra.mxu0 0.0
  %2784 = vmatpush.msra.mxu0 0.0
  %2785 = vmatpush.msra.mxu0 0.0
  %2786 = vmatpush.msra.mxu0 %v2694
  %2787 = vmatpush.msra.mxu0 %v2693
  %2788 = vmatpush.msra.mxu0 %v2692
  %2789 = vmatpush.msra.mxu0 %v2691
  %2790 = vmatmul.f32.gmra.mxu0 %v2766
  %v2791 = vpop.f32.mrf.mxu0
  %v2792 = vadd.f32 %v2697, %v2791
  %2793 = vmatmul.f32.gmra.mxu0 %v2768
  %v2794 = vpop.f32.mrf.mxu0
  %v2795 = vadd.f32 %v2697, %v2794
  %2796 = vmatmul.f32.gmra.mxu0 %v2770
  %v2797 = vpop.f32.mrf.mxu0
  %v2798 = vadd.f32 %v2697, %v2797
  %2799 = vmatmul.f32.gmra.mxu0 %v2772
  %v2800 = vpop.f32.mrf.mxu0
  %v2801 = vadd.f32 %v2697, %v2800
  %2802 = vdwg.mxu0
  %v2803 = vmax.f32 %v2792, 0.0
  %v2804 = vmax.f32 %v2795, 0.0
  %v2805 = vmax.f32 %v2798, 0.0
  %v2806 = vmax.f32 %v2801, 0.0
  %v2807 = vld [vmem:[%s10] sm:$0xff]
  %v2808 = vld [vmem:[%s10 + $0x8] sm:$0xff]
  %v2809 = vld [vmem:[%s10 + $0x10] sm:$0xff]
  %v2810 = vld [vmem:[%s10 + $0x18] sm:$0xff]
  %v2811 = vld [vmem:[%s10 + $0x20] sm:$0xff]
  %v2812 = vld [vmem:[%s10 + $0x28] sm:$0xff]
  %v2813 = vld [vmem:[%s10 + $0x30] sm:$0xff]
  %v2814 = vld [vmem:[%s10 + $0x38] sm:$0xff]
  %v2815 = vld [vmem:[%s10 + $0x40] sm:$0xff]
  %v2816 = vld [vmem:[%s10 + $0x48] sm:$0xff]
  %v2817 = vld [vmem:[%s10 + $0x50] sm:$0xff]
  %v2818 = vld [vmem:[%s10 + $0x58] sm:$0xff]
  %v2819 = vld [vmem:[%s10 + $0x60] sm:$0xff]
  %v2820 = vld [vmem:[%s10 + $0x68] sm:$0xff]
  %v2821 = vld [vmem:[%s10 + $0x70] sm:$0xff]
  %v2822 = vld [vmem:[%s10 + $0x78] sm:$0xff]
  %v2823 = vld [vmem:[%s11] sm:$0x1]
  %v2825 = vperm.slane %v2823, 0
  %2827 = vmatpush.msra.mxu0 %v2822
  %2828 = vmatpush.msra.mxu0 %v2821
  %2829 = vmatpush.msra.mxu0 %v2820
  %2830 = vmatpush.msra.mxu0 %v2819
  %2831 = vmatpush.msra.mxu0 %v2818
  %2832 = vmatpush.msra.mxu0 %v2817
  %2833 = vmatpush.msra.mxu0 %v2816
  %2834 = vmatpush.msra.mxu0 %v2815
  %2835 = vmatpush.msra.mxu0 %v2814
  %2836 = vmatpush.msra.mxu0 %v2813
  %2837 = vmatpush.msra.mxu0 %v2812
  %2838 = vmatpush.msra.mxu0 %v2811
  %2839 = vmatpush.msra.mxu0 %v2810
  %2840 = vmatpush.msra.mxu0 %v2809
  %2841 = vmatpush.msra.mxu0 %v2808
  %2842 = vmatpush.msra.mxu0 %v2807
  %2843 = vmatmul.f32.gmra.mxu0 %v2803
  %v2844 = vpop.f32.mrf.mxu0
  %v2845 = vadd.f32 %v2825, %v2844
  %2846 = vmatmul.f32.gmra.mxu0 %v2804
  %v2847 = vpop.f32.mrf.mxu0
  %v2848 = vadd.f32 %v2825, %v2847
  %2849 = vmatmul.f32.gmra.mxu0 %v2805
  %v2850 = vpop.f32.mrf.mxu0
  %v2851 = vadd.f32 %v2825, %v2850
  %2852 = vmatmul.f32.gmra.mxu0 %v2806
  %v2853 = vpop.f32.mrf.mxu0
  %v2854 = vadd.f32 %v2825, %v2853
  %2855 = vdwg.mxu0
  %2856 = vmax.xlane.f32.xlu0 %v2845
  %v2857 = vpop.xlane.xlu0 %2856
  %2858 = vmax.xlane.f32.xlu0 %v2848
  %v2859 = vpop.xlane.xlu0 %2858
  %2860 = vmax.xlane.f32.xlu0 %v2851
  %v2861 = vpop.xlane.xlu0 %2860
  %2862 = vmax.xlane.f32.xlu0 %v2854
  %v2863 = vpop.xlane.xlu0 %2862
  %v2864 = vsub.f32 %v2845, %v2857
  %v2865 = vsub.f32 %v2848, %v2859
  %v2866 = vsub.f32 %v2851, %v2861
  %v2867 = vsub.f32 %v2854, %v2863
  %v2868 = vmul.f32 %v2864, 1.442695
  %v2869 = vpow.pop %v2868
  %v2870 = vmul.f32 %v2865, 1.442695
  %v2871 = vpow.pop %v2870
  %v2872 = vmul.f32 %v2866, 1.442695
  %v2873 = vpow.pop %v2872
  %v2874 = vmul.f32 %v2867, 1.442695
  %v2875 = vpow.pop %v2874
  %2876 = vadd.xlane.f32.xlu0 %v2869
  %v2877 = vpop.xlane.xlu0 %2876
  %2878 = vadd.xlane.f32.xlu0 %v2871
  %v2879 = vpop.xlane.xlu0 %2878
  %2880 = vadd.xlane.f32.xlu0 %v2873
  %v2881 = vpop.xlane.xlu0 %2880
  %2882 = vadd.xlane.f32.xlu0 %v2875
  %v2883 = vpop.xlane.xlu0 %2882
  %v2884 = vlog2.pop %v2877
  %v2885 = vmul.f32 %v2884, 0.6931472
  %v2886 = vlog2.pop %v2879
  %v2887 = vmul.f32 %v2886, 0.6931472
  %v2888 = vlog2.pop %v2881
  %v2889 = vmul.f32 %v2888, 0.6931472
  %v2890 = vlog2.pop %v2883
  %v2891 = vmul.f32 %v2890, 0.6931472
  %v2892 = vadd.f32 %v2885, %v2857
  %v2893 = vadd.f32 %v2887, %v2859
  %v2894 = vadd.f32 %v2889, %v2861
  %v2895 = vadd.f32 %v2891, %v2863
  %v2896 = vsub.f32 %v2845, %v2892
  %v2897 = vsub.f32 %v2848, %v2893
  %v2898 = vsub.f32 %v2851, %v2894
  %v2899 = vsub.f32 %v2854, %v2895
  %2900 = vst [vmem:[%s12] sm:$0xff] %v2896
  %2901 = vst [vmem:[%s12 + $0x8] sm:$0xff] %v2897
  %2902 = vst [vmem:[%s12 + $0x10] sm:$0xff] %v2898
  %2903 = vst [vmem:[%s12 + $0x18] sm:$0xff] %v2899
  // Predicated region
  $region50: #{intent_forward.1} parent=0 // pred_check
    _
  $region51: #{intent_forward.1} parent=0 // pred_check_branch
    %2905 = sbr.rel (0) target = $region53
  $region52: #{intent_forward.1} parent=0 // pred_region
    _
  $region53: #{intent_forward.1} parent=0 // pred_fallthru
    _
  // Predicated region
  $region54: #{intent_forward.1} parent=0 // pred_check
    _
  $region55: #{intent_forward.1} parent=0 // pred_check_branch
    %2907 = sbr.rel (0) target = $region57
  $region56: #{intent_forward.1} parent=0 // pred_region
    _
  $region57: #{intent_forward.1} parent=0 // pred_fallthru
    _

// kernel: intent_forward.1
$region0: #{intent_forward.1}
  #allocation0 [shape = 'u32[]', space=smem, size = 0x4, offset = 0x4, fixed_abs, tag = 'smem constant byte address 0x4 - core index']
  #allocation1 [shape = 'u32[72,128]{1,0:T(1,128)}', space=vmem, size = 0x9000, scoped, tag = 'internal scratch']
  #allocation2 [shape = 'f32[1,1]{1,0:T(1,128)S(1)}', space=vmem, size = 0x200, scoped, tag = 'scoped memory for intent_forward.1']
  %s0 = inlined_call_operand.vmem [shape: f32[32,16,32], index: 0, kind: input, shape index: {}]
  %s1 = inlined_call_operand.vmem [shape: f32[32,32], index: 1, kind: input, shape index: {}]
  %s2 = inlined_call_operand.vmem [shape: f32[32,128], index: 2, kind: input, shape index: {}]
  %s3 = inlined_call_operand.vmem [shape: f32[1,128], index: 3, kind: input, shape index: {}]
  %s4 = inlined_call_operand.vmem [shape: f32[32,128], index: 4, kind: input, shape index: {}]
  %s5 = inlined_call_operand.vmem [shape: f32[1,128], index: 5, kind: input, shape index: {}]
  %s6 = inlined_call_operand.vmem [shape: f32[1,128], index: 6, kind: input, shape index: {}]
  %s7 = inlined_call_operand.<no memory space> [shape: f32[1,1], index: 7, kind: input, shape index: {}]
  %s8 = inlined_call_operand.vmem [shape: f32[32,128], index: 8, kind: input, shape index: {}]
  %s9 = inlined_call_operand.vmem [shape: f32[1,128], index: 9, kind: input, shape index: {}]
  %s10 = inlined_call_operand.vmem [shape: f32[128,128], index: 10, kind: input, shape index: {}]
  %s11 = inlined_call_operand.vmem [shape: f32[1,128], index: 11, kind: input, shape index: {}]
  %s12 = inlined_call_operand.vmem [shape: f32[32,128], index: 12, kind: output, shape index: {}]
  %s13 = sld [smem:[#allocation0]]
  $region58: #{intent_forward.1} parent=0
    _
  %s15 = ssub.s32 1, %s13
  %s16 = scalar_select 0, %s15, %s13
  %v17 = vstv %s7
  %18 = vst [vmem:[#allocation2] sm:$0x1] %v17
  // Predicated region
  $region2: #{intent_forward.1} parent=0 // pred_check
    _
  $region3: #{intent_forward.1} parent=0 // pred_check_branch
    %20 = sbr.rel (0) target = $region5
  $region4: #{intent_forward.1} parent=0 // pred_region
    _
  $region5: #{intent_forward.1} parent=0 // pred_fallthru
    _
  // Predicated region
  $region6: #{intent_forward.1} parent=0 // pred_check
    _
  $region7: #{intent_forward.1} parent=0 // pred_check_branch
    %22 = sbr.rel (0) target = $region9
  $region8: #{intent_forward.1} parent=0 // pred_region
    _
  $region9: #{intent_forward.1} parent=0 // pred_fallthru
    _
  // Predicated region
  $region10: #{intent_forward.1} parent=0 // pred_check
    _
  $region11: #{intent_forward.1} parent=0 // pred_check_branch
    %24 = sbr.rel (0) target = $region13
  $region12: #{intent_forward.1} parent=0 // pred_region
    _
  $region13: #{intent_forward.1} parent=0 // pred_fallthru
    _
  // Predicated region
  $region14: #{intent_forward.1} parent=0 // pred_check
    _
  $region15: #{intent_forward.1} parent=0 // pred_check_branch
    %26 = sbr.rel (0) target = $region17
  $region16: #{intent_forward.1} parent=0 // pred_region
    _
  $region17: #{intent_forward.1} parent=0 // pred_fallthru
    _
  // Predicated region
  $region18: #{intent_forward.1} parent=0 // pred_check
    _
  $region19: #{intent_forward.1} parent=0 // pred_check_branch
    %28 = sbr.rel (0) target = $region21
  $region20: #{intent_forward.1} parent=0 // pred_region
    _
  $region21: #{intent_forward.1} parent=0 // pred_fallthru
    _
  // Predicated region
  $region22: #{intent_forward.1} parent=0 // pred_check
    _
  $region23: #{intent_forward.1} parent=0 // pred_check_branch
    %30 = sbr.rel (0) target = $region25
  $region24: #{intent_forward.1} parent=0 // pred_region
    _
  $region25: #{intent_forward.1} parent=0 // pred_fallthru
    _
  // Predicated region
  $region26: #{intent_forward.1} parent=0 // pred_check
    _
  $region27: #{intent_forward.1} parent=0 // pred_check_branch
    %32 = sbr.rel (0) target = $region29
  $region28: #{intent_forward.1} parent=0 // pred_region
    _
  $region29: #{intent_forward.1} parent=0 // pred_fallthru
    _
  // Predicated region
  $region30: #{intent_forward.1} parent=0 // pred_check
    _
  $region31: #{intent_forward.1} parent=0 // pred_check_branch
    %34 = sbr.rel (0) target = $region33
  $region32: #{intent_forward.1} parent=0 // pred_region
    _
  $region33: #{intent_forward.1} parent=0 // pred_fallthru
    _
  // Predicated region
  $region34: #{intent_forward.1} parent=0 // pred_check
    _
  $region35: #{intent_forward.1} parent=0 // pred_check_branch
    %36 = sbr.rel (0) target = $region37
  $region36: #{intent_forward.1} parent=0 // pred_region
    _
  $region37: #{intent_forward.1} parent=0 // pred_fallthru
    _
  // Predicated region
  $region38: #{intent_forward.1} parent=0 // pred_check
    _
  $region39: #{intent_forward.1} parent=0 // pred_check_branch
    %38 = sbr.rel (0) target = $region41
  $region40: #{intent_forward.1} parent=0 // pred_region
    _
  $region41: #{intent_forward.1} parent=0 // pred_fallthru
    _
  // Predicated region
  $region42: #{intent_forward.1} parent=0 // pred_check
    _
  $region43: #{intent_forward.1} parent=0 // pred_check_branch
    %40 = sbr.rel (0) target = $region45
  $region44: #{intent_forward.1} parent=0 // pred_region
    _
  $region45: #{intent_forward.1} parent=0 // pred_fallthru
    _
  // Predicated region
  $region46: #{intent_forward.1} parent=0 // pred_check
    _
  $region47: #{intent_forward.1} parent=0 // pred_check_branch
    %42 = sbr.rel (0) target = $region49
  $region48: #{intent_forward.1} parent=0 // pred_region
    _
  $region49: #{intent_forward.1} parent=0 // pred_fallthru
    _
  %v43 = vld [vmem:[%s0] sm:$0xff]
  %v44 = vld [vmem:[%s0 + $0x8] sm:$0xff]
  %v45 = vld [vmem:[%s0 + $0x10] sm:$0xff]
  %v46 = vld [vmem:[%s0 + $0x18] sm:$0xff]
  %v47 = vld [vmem:[%s0 + $0x20] sm:$0xff]
  %v48 = vld [vmem:[%s0 + $0x28] sm:$0xff]
  %v49 = vld [vmem:[%s0 + $0x30] sm:$0xff]
  %v50 = vld [vmem:[%s0 + $0x38] sm:$0xff]
  %v51 = vld [vmem:[%s0 + $0x40] sm:$0xff]
  %v52 = vld [vmem:[%s0 + $0x48] sm:$0xff]
  %v53 = vld [vmem:[%s0 + $0x50] sm:$0xff]
  %v54 = vld [vmem:[%s0 + $0x58] sm:$0xff]
  %v55 = vld [vmem:[%s0 + $0x60] sm:$0xff]
  %v56 = vld [vmem:[%s0 + $0x68] sm:$0xff]
  %v57 = vld [vmem:[%s0 + $0x70] sm:$0xff]
  %v58 = vld [vmem:[%s0 + $0x78] sm:$0xff]
  %v59 = vld [vmem:[%s0 + $0x80] sm:$0xff]
  %v60 = vld [vmem:[%s0 + $0x88] sm:$0xff]
  %v61 = vld [vmem:[%s0 + $0x90] sm:$0xff]
  %v62 = vld [vmem:[%s0 + $0x98] sm:$0xff]
  %v63 = vld [vmem:[%s0 + $0xa0] sm:$0xff]
  %v64 = vld [vmem:[%s0 + $0xa8] sm:$0xff]
  %v65 = vld [vmem:[%s0 + $0xb0] sm:$0xff]
  %v66 = vld [vmem:[%s0 + $0xb8] sm:$0xff]
  %v67 = vld [vmem:[%s0 + $0xc0] sm:$0xff]
  %v68 = vld [vmem:[%s0 + $0xc8] sm:$0xff]
  %v69 = vld [vmem:[%s0 + $0xd0] sm:$0xff]
  %v70 = vld [vmem:[%s0 + $0xd8] sm:$0xff]
  %v71 = vld [vmem:[%s0 + $0xe0] sm:$0xff]
  %v72 = vld [vmem:[%s0 + $0xe8] sm:$0xff]
  %v73 = vld [vmem:[%s0 + $0xf0] sm:$0xff]
  %v74 = vld [vmem:[%s0 + $0xf8] sm:$0xff]
  %v75 = vld [vmem:[%s0 + $0x100] sm:$0xff]
  %v76 = vld [vmem:[%s0 + $0x108] sm:$0xff]
  %v77 = vld [vmem:[%s0 + $0x110] sm:$0xff]
  %v78 = vld [vmem:[%s0 + $0x118] sm:$0xff]
  %v79 = vld [vmem:[%s0 + $0x120] sm:$0xff]
  %v80 = vld [vmem:[%s0 + $0x128] sm:$0xff]
  %v81 = vld [vmem:[%s0 + $0x130] sm:$0xff]
  %v82 = vld [vmem:[%s0 + $0x138] sm:$0xff]
  %v83 = vld [vmem:[%s0 + $0x140] sm:$0xff]
  %v84 = vld [vmem:[%s0 + $0x148] sm:$0xff]
  %v85 = vld [vmem:[%s0 + $0x150] sm:$0xff]
  %v86 = vld [vmem:[%s0 + $0x158] sm:$0xff]
  %v87 = vld [vmem:[%s0 + $0x160] sm:$0xff]
  %v88 = vld [vmem:[%s0 + $0x168] sm:$0xff]
  %v89 = vld [vmem:[%s0 + $0x170] sm:$0xff]
  %v90 = vld [vmem:[%s0 + $0x178] sm:$0xff]
  %v91 = vld [vmem:[%s0 + $0x180] sm:$0xff]
  %v92 = vld [vmem:[%s0 + $0x188] sm:$0xff]
  %v93 = vld [vmem:[%s0 + $0x190] sm:$0xff]
  %v94 = vld [vmem:[%s0 + $0x198] sm:$0xff]
  %v95 = vld [vmem:[%s0 + $0x1a0] sm:$0xff]
  %v96 = vld [vmem:[%s0 + $0x1a8] sm:$0xff]
  %v97 = vld [vmem:[%s0 + $0x1b0] sm:$0xff]
  %v98 = vld [vmem:[%s0 + $0x1b8] sm:$0xff]
  %v99 = vld [vmem:[%s0 + $0x1c0] sm:$0xff]
  %v100 = vld [vmem:[%s0 + $0x1c8] sm:$0xff]
  %v101 = vld [vmem:[%s0 + $0x1d0] sm:$0xff]
  %v102 = vld [vmem:[%s0 + $0x1d8] sm:$0xff]
  %v103 = vld [vmem:[%s0 + $0x1e0] sm:$0xff]
  %v104 = vld [vmem:[%s0 + $0x1e8] sm:$0xff]
  %v105 = vld [vmem:[%s0 + $0x1f0] sm:$0xff]
  %v106 = vld [vmem:[%s0 + $0x1f8] sm:$0xff]
  %v107 = vld [vmem:[%s1] sm:$0xff]
  %v108 = vld [vmem:[%s1 + $0x8] sm:$0xff]
  %v109 = vld [vmem:[%s1 + $0x10] sm:$0xff]
  %v110 = vld [vmem:[%s1 + $0x18] sm:$0xff]
  %v111 = vld [vmem:[%s4] sm:$0xff]
  %v112 = vld [vmem:[%s4 + $0x8] sm:$0xff]
  %v113 = vld [vmem:[%s4 + $0x10] sm:$0xff]
  %v114 = vld [vmem:[%s4 + $0x18] sm:$0xff]
  %v115 = vld [vmem:[%s5] sm:$0x1]
  %v117 = vperm.slane %v115, 0
  %vm119 = vcmask 261120
  %v121 = vsel %vm119, %v107, 0
  %v124 = vsel %vm119, %v108, 0
  %v127 = vsel %vm119, %v109, 0
  %v130 = vsel %vm119, %v110, 0
  %132 = vmatpush.msra.mxu0 0.0
  %133 = vmatpush.msra.mxu0 0.0
  %134 = vmatpush.msra.mxu0 0.0
  %135 = vmatpush.msra.mxu0 0.0
  %136 = vmatpush.msra.mxu0 0.0
  %137 = vmatpush.msra.mxu0 0.0
  %138 = vmatpush.msra.mxu0 0.0
  %139 = vmatpush.msra.mxu0 0.0
  %140 = vmatpush.msra.mxu0 0.0
  %141 = vmatpush.msra.mxu0 0.0
  %142 = vmatpush.msra.mxu0 0.0
  %143 = vmatpush.msra.mxu0 0.0
  %144 = vmatpush.msra.mxu0 %v114
  %145 = vmatpush.msra.mxu0 %v113
  %146 = vmatpush.msra.mxu0 %v112
  %147 = vmatpush.msra.mxu0 %v111
  %148 = vmatmul.f32.gmra.mxu0 %v121
  %v149 = vpop.f32.mrf.mxu0
  %v150 = vadd.f32 %v117, %v149
  %151 = vmatmul.f32.gmra.mxu0 %v124
  %v152 = vpop.f32.mrf.mxu0
  %v153 = vadd.f32 %v117, %v152
  %154 = vmatmul.f32.gmra.mxu0 %v127
  %v155 = vpop.f32.mrf.mxu0
  %v156 = vadd.f32 %v117, %v155
  %157 = vmatmul.f32.gmra.mxu0 %v130
  %v158 = vpop.f32.mrf.mxu0
  %v159 = vadd.f32 %v117, %v158
  %160 = vdwg.mxu0
  %v161 = vld [vmem:[%s2] sm:$0xff]
  %v162 = vld [vmem:[%s2 + $0x8] sm:$0xff]
  %v163 = vld [vmem:[%s2 + $0x10] sm:$0xff]
  %v164 = vld [vmem:[%s2 + $0x18] sm:$0xff]
  %v165 = vld [vmem:[%s3] sm:$0x1]
  %v167 = vperm.slane %v165, 0
  %v170 = vsel %vm119, %v43, 0
  %v173 = vsel %vm119, %v44, 0
  %v176 = vsel %vm119, %v45, 0
  %v179 = vsel %vm119, %v46, 0
  %v182 = vsel %vm119, %v47, 0
  %v185 = vsel %vm119, %v48, 0
  %v188 = vsel %vm119, %v49, 0
  %v191 = vsel %vm119, %v50, 0
  %v194 = vsel %vm119, %v51, 0
  %v197 = vsel %vm119, %v52, 0
  %v200 = vsel %vm119, %v53, 0
  %v203 = vsel %vm119, %v54, 0
  %v206 = vsel %vm119, %v55, 0
  %v209 = vsel %vm119, %v56, 0
  %v212 = vsel %vm119, %v57, 0
  %v215 = vsel %vm119, %v58, 0
  %v218 = vsel %vm119, %v59, 0
  %v221 = vsel %vm119, %v60, 0
  %v224 = vsel %vm119, %v61, 0
  %v227 = vsel %vm119, %v62, 0
  %v230 = vsel %vm119, %v63, 0
  %v233 = vsel %vm119, %v64, 0
  %v236 = vsel %vm119, %v65, 0
  %v239 = vsel %vm119, %v66, 0
  %v242 = vsel %vm119, %v67, 0
  %v245 = vsel %vm119, %v68, 0
  %v248 = vsel %vm119, %v69, 0
  %v251 = vsel %vm119, %v70, 0
  %v254 = vsel %vm119, %v71, 0
  %v257 = vsel %vm119, %v72, 0
  %v260 = vsel %vm119, %v73, 0
  %v263 = vsel %vm119, %v74, 0
  %v266 = vsel %vm119, %v75, 0
  %v269 = vsel %vm119, %v76, 0
  %v272 = vsel %vm119, %v77, 0
  %v275 = vsel %vm119, %v78, 0
  %v278 = vsel %vm119, %v79, 0
  %v281 = vsel %vm119, %v80, 0
  %v284 = vsel %vm119, %v81, 0
  %v287 = vsel %vm119, %v82, 0
  %v290 = vsel %vm119, %v83, 0
  %v293 = vsel %vm119, %v84, 0
  %v296 = vsel %vm119, %v85, 0
  %v299 = vsel %vm119, %v86, 0
  %v302 = vsel %vm119, %v87, 0
  %v305 = vsel %vm119, %v88, 0
  %v308 = vsel %vm119, %v89, 0
  %v311 = vsel %vm119, %v90, 0
  %v314 = vsel %vm119, %v91, 0
  %v317 = vsel %vm119, %v92, 0
  %v320 = vsel %vm119, %v93, 0
  %v323 = vsel %vm119, %v94, 0
  %v326 = vsel %vm119, %v95, 0
  %v329 = vsel %vm119, %v96, 0
  %v332 = vsel %vm119, %v97, 0
  %v335 = vsel %vm119, %v98, 0
  %v338 = vsel %vm119, %v99, 0
  %v341 = vsel %vm119, %v100, 0
  %v344 = vsel %vm119, %v101, 0
  %v347 = vsel %vm119, %v102, 0
  %v350 = vsel %vm119, %v103, 0
  %v353 = vsel %vm119, %v104, 0
  %v356 = vsel %vm119, %v105, 0
  %v359 = vsel %vm119, %v106, 0
  %361 = vmatpush.msra.mxu0 0.0
  %362 = vmatpush.msra.mxu0 0.0
  %363 = vmatpush.msra.mxu0 0.0
  %364 = vmatpush.msra.mxu0 0.0
  %365 = vmatpush.msra.mxu0 0.0
  %366 = vmatpush.msra.mxu0 0.0
  %367 = vmatpush.msra.mxu0 0.0
  %368 = vmatpush.msra.mxu0 0.0
  %369 = vmatpush.msra.mxu0 0.0
  %370 = vmatpush.msra.mxu0 0.0
  %371 = vmatpush.msra.mxu0 0.0
  %372 = vmatpush.msra.mxu0 0.0
  %373 = vmatpush.msra.mxu0 %v164
  %374 = vmatpush.msra.mxu0 %v163
  %375 = vmatpush.msra.mxu0 %v162
  %376 = vmatpush.msra.mxu0 %v161
  %377 = vmatmul.f32.gmra.mxu0 %v170
  %v378 = vpop.f32.mrf.mxu0
  %v379 = vadd.f32 %v167, %v378
  %380 = vmatmul.f32.gmra.mxu0 %v173
  %v381 = vpop.f32.mrf.mxu0
  %v382 = vadd.f32 %v167, %v381
  %383 = vmatmul.f32.gmra.mxu0 %v176
  %v384 = vpop.f32.mrf.mxu0
  %v385 = vadd.f32 %v167, %v384
  %386 = vmatmul.f32.gmra.mxu0 %v179
  %v387 = vpop.f32.mrf.mxu0
  %v388 = vadd.f32 %v167, %v387
  %389 = vmatmul.f32.gmra.mxu0 %v182
  %v390 = vpop.f32.mrf.mxu0
  %v391 = vadd.f32 %v167, %v390
  %392 = vmatmul.f32.gmra.mxu0 %v185
  %v393 = vpop.f32.mrf.mxu0
  %v394 = vadd.f32 %v167, %v393
  %395 = vmatmul.f32.gmra.mxu0 %v188
  %v396 = vpop.f32.mrf.mxu0
  %v397 = vadd.f32 %v167, %v396
  %398 = vmatmul.f32.gmra.mxu0 %v191
  %v399 = vpop.f32.mrf.mxu0
  %v400 = vadd.f32 %v167, %v399
  %401 = vmatmul.f32.gmra.mxu0 %v194
  %v402 = vpop.f32.mrf.mxu0
  %v403 = vadd.f32 %v167, %v402
  %404 = vmatmul.f32.gmra.mxu0 %v197
  %v405 = vpop.f32.mrf.mxu0
  %v406 = vadd.f32 %v167, %v405
  %407 = vmatmul.f32.gmra.mxu0 %v200
  %v408 = vpop.f32.mrf.mxu0
  %v409 = vadd.f32 %v167, %v408
  %410 = vmatmul.f32.gmra.mxu0 %v203
  %v411 = vpop.f32.mrf.mxu0
  %v412 = vadd.f32 %v167, %v411
  %413 = vmatmul.f32.gmra.mxu0 %v206
  %v414 = vpop.f32.mrf.mxu0
  %v415 = vadd.f32 %v167, %v414
  %416 = vmatmul.f32.gmra.mxu0 %v209
  %v417 = vpop.f32.mrf.mxu0
  %v418 = vadd.f32 %v167, %v417
  %419 = vmatmul.f32.gmra.mxu0 %v212
  %v420 = vpop.f32.mrf.mxu0
  %v421 = vadd.f32 %v167, %v420
  %422 = vmatmul.f32.gmra.mxu0 %v215
  %v423 = vpop.f32.mrf.mxu0
  %v424 = vadd.f32 %v167, %v423
  %425 = vmatmul.f32.gmra.mxu0 %v218
  %v426 = vpop.f32.mrf.mxu0
  %v427 = vadd.f32 %v167, %v426
  %428 = vmatmul.f32.gmra.mxu0 %v221
  %v429 = vpop.f32.mrf.mxu0
  %v430 = vadd.f32 %v167, %v429
  %431 = vmatmul.f32.gmra.mxu0 %v224
  %v432 = vpop.f32.mrf.mxu0
  %v433 = vadd.f32 %v167, %v432
  %434 = vmatmul.f32.gmra.mxu0 %v227
  %v435 = vpop.f32.mrf.mxu0
  %v436 = vadd.f32 %v167, %v435
  %437 = vmatmul.f32.gmra.mxu0 %v230
  %v438 = vpop.f32.mrf.mxu0
  %v439 = vadd.f32 %v167, %v438
  %440 = vmatmul.f32.gmra.mxu0 %v233
  %v441 = vpop.f32.mrf.mxu0
  %v442 = vadd.f32 %v167, %v441
  %443 = vmatmul.f32.gmra.mxu0 %v236
  %v444 = vpop.f32.mrf.mxu0
  %v445 = vadd.f32 %v167, %v444
  %446 = vmatmul.f32.gmra.mxu0 %v239
  %v447 = vpop.f32.mrf.mxu0
  %v448 = vadd.f32 %v167, %v447
  %449 = vmatmul.f32.gmra.mxu0 %v242
  %v450 = vpop.f32.mrf.mxu0
  %v451 = vadd.f32 %v167, %v450
  %452 = vmatmul.f32.gmra.mxu0 %v245
  %v453 = vpop.f32.mrf.mxu0
  %v454 = vadd.f32 %v167, %v453
  %455 = vmatmul.f32.gmra.mxu0 %v248
  %v456 = vpop.f32.mrf.mxu0
  %v457 = vadd.f32 %v167, %v456
  %458 = vmatmul.f32.gmra.mxu0 %v251
  %v459 = vpop.f32.mrf.mxu0
  %v460 = vadd.f32 %v167, %v459
  %461 = vmatmul.f32.gmra.mxu0 %v254
  %v462 = vpop.f32.mrf.mxu0
  %v463 = vadd.f32 %v167, %v462
  %464 = vmatmul.f32.gmra.mxu0 %v257
  %v465 = vpop.f32.mrf.mxu0
  %v466 = vadd.f32 %v167, %v465
  %467 = vmatmul.f32.gmra.mxu0 %v260
  %v468 = vpop.f32.mrf.mxu0
  %v469 = vadd.f32 %v167, %v468
  %470 = vmatmul.f32.gmra.mxu0 %v263
  %v471 = vpop.f32.mrf.mxu0
  %v472 = vadd.f32 %v167, %v471
  %473 = vmatmul.f32.gmra.mxu0 %v266
  %v474 = vpop.f32.mrf.mxu0
  %v475 = vadd.f32 %v167, %v474
  %476 = vmatmul.f32.gmra.mxu0 %v269
  %v477 = vpop.f32.mrf.mxu0
  %v478 = vadd.f32 %v167, %v477
  %479 = vmatmul.f32.gmra.mxu0 %v272
  %v480 = vpop.f32.mrf.mxu0
  %v481 = vadd.f32 %v167, %v480
  %482 = vmatmul.f32.gmra.mxu0 %v275
  %v483 = vpop.f32.mrf.mxu0
  %v484 = vadd.f32 %v167, %v483
  %485 = vmatmul.f32.gmra.mxu0 %v278
  %v486 = vpop.f32.mrf.mxu0
  %v487 = vadd.f32 %v167, %v486
  %488 = vmatmul.f32.gmra.mxu0 %v281
  %v489 = vpop.f32.mrf.mxu0
  %v490 = vadd.f32 %v167, %v489
  %491 = vmatmul.f32.gmra.mxu0 %v284
  %v492 = vpop.f32.mrf.mxu0
  %v493 = vadd.f32 %v167, %v492
  %494 = vmatmul.f32.gmra.mxu0 %v287
  %v495 = vpop.f32.mrf.mxu0
  %v496 = vadd.f32 %v167, %v495
  %497 = vmatmul.f32.gmra.mxu0 %v290
  %v498 = vpop.f32.mrf.mxu0
  %v499 = vadd.f32 %v167, %v498
  %500 = vmatmul.f32.gmra.mxu0 %v293
  %v501 = vpop.f32.mrf.mxu0
  %v502 = vadd.f32 %v167, %v501
  %503 = vmatmul.f32.gmra.mxu0 %v296
  %v504 = vpop.f32.mrf.mxu0
  %v505 = vadd.f32 %v167, %v504
  %506 = vmatmul.f32.gmra.mxu0 %v299
  %v507 = vpop.f32.mrf.mxu0
  %v508 = vadd.f32 %v167, %v507
  %509 = vmatmul.f32.gmra.mxu0 %v302
  %v510 = vpop.f32.mrf.mxu0
  %v511 = vadd.f32 %v167, %v510
  %512 = vmatmul.f32.gmra.mxu0 %v305
  %v513 = vpop.f32.mrf.mxu0
  %v514 = vadd.f32 %v167, %v513
  %515 = vmatmul.f32.gmra.mxu0 %v308
  %v516 = vpop.f32.mrf.mxu0
  %v517 = vadd.f32 %v167, %v516
  %518 = vmatmul.f32.gmra.mxu0 %v311
  %v519 = vpop.f32.mrf.mxu0
  %v520 = vadd.f32 %v167, %v519
  %521 = vmatmul.f32.gmra.mxu0 %v314
  %v522 = vpop.f32.mrf.mxu0
  %v523 = vadd.f32 %v167, %v522
  %524 = vmatmul.f32.gmra.mxu0 %v317
  %v525 = vpop.f32.mrf.mxu0
  %v526 = vadd.f32 %v167, %v525
  %527 = vmatmul.f32.gmra.mxu0 %v320
  %v528 = vpop.f32.mrf.mxu0
  %v529 = vadd.f32 %v167, %v528
  %530 = vmatmul.f32.gmra.mxu0 %v323
  %v531 = vpop.f32.mrf.mxu0
  %v532 = vadd.f32 %v167, %v531
  %533 = vmatmul.f32.gmra.mxu0 %v326
  %v534 = vpop.f32.mrf.mxu0
  %v535 = vadd.f32 %v167, %v534
  %536 = vmatmul.f32.gmra.mxu0 %v329
  %v537 = vpop.f32.mrf.mxu0
  %v538 = vadd.f32 %v167, %v537
  %539 = vmatmul.f32.gmra.mxu0 %v332
  %v540 = vpop.f32.mrf.mxu0
  %v541 = vadd.f32 %v167, %v540
  %542 = vmatmul.f32.gmra.mxu0 %v335
  %v543 = vpop.f32.mrf.mxu0
  %v544 = vadd.f32 %v167, %v543
  %545 = vmatmul.f32.gmra.mxu0 %v338
  %v546 = vpop.f32.mrf.mxu0
  %v547 = vadd.f32 %v167, %v546
  %548 = vmatmul.f32.gmra.mxu0 %v341
  %v549 = vpop.f32.mrf.mxu0
  %v550 = vadd.f32 %v167, %v549
  %551 = vmatmul.f32.gmra.mxu0 %v344
  %v552 = vpop.f32.mrf.mxu0
  %v553 = vadd.f32 %v167, %v552
  %554 = vmatmul.f32.gmra.mxu0 %v347
  %v555 = vpop.f32.mrf.mxu0
  %v556 = vadd.f32 %v167, %v555
  %557 = vmatmul.f32.gmra.mxu0 %v350
  %v558 = vpop.f32.mrf.mxu0
  %v559 = vadd.f32 %v167, %v558
  %560 = vmatmul.f32.gmra.mxu0 %v353
  %v561 = vpop.f32.mrf.mxu0
  %v562 = vadd.f32 %v167, %v561
  %563 = vmatmul.f32.gmra.mxu0 %v356
  %v564 = vpop.f32.mrf.mxu0
  %v565 = vadd.f32 %v167, %v564
  %566 = vmatmul.f32.gmra.mxu0 %v359
  %v567 = vpop.f32.mrf.mxu0
  %v568 = vadd.f32 %v167, %v567
  %569 = vdwg.mxu0
  %v574 = vrot.slane %v150, 1
  %v575 = vrot.slane %v150, 2
  %v576 = vrot.slane %v150, 3
  %v577 = vrot.slane %v150, 4
  %v578 = vrot.slane %v150, 5
  %v579 = vrot.slane %v150, 6
  %v580 = vrot.slane %v150, 7
  %v581 = vrot.slane %v153, 1
  %v582 = vrot.slane %v153, 2
  %v583 = vrot.slane %v153, 3
  %v584 = vrot.slane %v153, 4
  %v585 = vrot.slane %v153, 5
  %v586 = vrot.slane %v153, 6
  %v587 = vrot.slane %v153, 7
  %v588 = vrot.slane %v156, 1
  %v589 = vrot.slane %v156, 2
  %v590 = vrot.slane %v156, 3
  %v591 = vrot.slane %v156, 4
  %v592 = vrot.slane %v156, 5
  %v593 = vrot.slane %v156, 6
  %v594 = vrot.slane %v156, 7
  %v595 = vrot.slane %v159, 1
  %v596 = vrot.slane %v159, 2
  %v597 = vrot.slane %v159, 3
  %v598 = vrot.slane %v159, 4
  %v599 = vrot.slane %v159, 5
  %v600 = vrot.slane %v159, 6
  %v601 = vrot.slane %v159, 7
  %v602 = vperm.slane %v150, 0
  %v603 = vperm.slane %v574, 0
  %v604 = vperm.slane %v575, 0
  %v605 = vperm.slane %v576, 0
  %v606 = vperm.slane %v577, 0
  %v607 = vperm.slane %v578, 0
  %v608 = vperm.slane %v579, 0
  %v609 = vperm.slane %v580, 0
  %v610 = vperm.slane %v153, 0
  %v611 = vperm.slane %v581, 0
  %v612 = vperm.slane %v582, 0
  %v613 = vperm.slane %v583, 0
  %v614 = vperm.slane %v584, 0
  %v615 = vperm.slane %v585, 0
  %v616 = vperm.slane %v586, 0
  %v617 = vperm.slane %v587, 0
  %v618 = vperm.slane %v156, 0
  %v619 = vperm.slane %v588, 0
  %v620 = vperm.slane %v589, 0
  %v621 = vperm.slane %v590, 0
  %v622 = vperm.slane %v591, 0
  %v623 = vperm.slane %v592, 0
  %v624 = vperm.slane %v593, 0
  %v625 = vperm.slane %v594, 0
  %v626 = vperm.slane %v159, 0
  %v627 = vperm.slane %v595, 0
  %v628 = vperm.slane %v596, 0
  %v629 = vperm.slane %v597, 0
  %v630 = vperm.slane %v598, 0
  %v631 = vperm.slane %v599, 0
  %v632 = vperm.slane %v600, 0
  %v633 = vperm.slane %v601, 0
  %v666 = vadd.f32 %v379, %v602
  %v667 = vadd.f32 %v382, %v602
  %v668 = vadd.f32 %v385, %v603
  %v669 = vadd.f32 %v388, %v603
  %v670 = vadd.f32 %v391, %v604
  %v671 = vadd.f32 %v394, %v604
  %v672 = vadd.f32 %v397, %v605
  %v673 = vadd.f32 %v400, %v605
  %v674 = vadd.f32 %v403, %v606
  %v675 = vadd.f32 %v406, %v606
  %v676 = vadd.f32 %v409, %v607
  %v677 = vadd.f32 %v412, %v607
  %v678 = vadd.f32 %v415, %v608
  %v679 = vadd.f32 %v418, %v608
  %v680 = vadd.f32 %v421, %v609
  %v681 = vadd.f32 %v424, %v609
  %v682 = vadd.f32 %v427, %v610
  %v683 = vadd.f32 %v430, %v610
  %v684 = vadd.f32 %v433, %v611
  %v685 = vadd.f32 %v436, %v611
  %v686 = vadd.f32 %v439, %v612
  %v687 = vadd.f32 %v442, %v612
  %v688 = vadd.f32 %v445, %v613
  %v689 = vadd.f32 %v448, %v613
  %v690 = vadd.f32 %v451, %v614
  %v691 = vadd.f32 %v454, %v614
  %v692 = vadd.f32 %v457, %v615
  %v693 = vadd.f32 %v460, %v615
  %v694 = vadd.f32 %v463, %v616
  %v695 = vadd.f32 %v466, %v616
  %v696 = vadd.f32 %v469, %v617
  %v697 = vadd.f32 %v472, %v617
  %v698 = vadd.f32 %v475, %v618
  %v699 = vadd.f32 %v478, %v618
  %v700 = vadd.f32 %v481, %v619
  %v701 = vadd.f32 %v484, %v619
  %v702 = vadd.f32 %v487, %v620
  %v703 = vadd.f32 %v490, %v620
  %v704 = vadd.f32 %v493, %v621
  %v705 = vadd.f32 %v496, %v621
  %v706 = vadd.f32 %v499, %v622
  %v707 = vadd.f32 %v502, %v622
  %v708 = vadd.f32 %v505, %v623
  %v709 = vadd.f32 %v508, %v623
  %v710 = vadd.f32 %v511, %v624
  %v711 = vadd.f32 %v514, %v624
  %v712 = vadd.f32 %v517, %v625
  %v713 = vadd.f32 %v520, %v625
  %v714 = vadd.f32 %v523, %v626
  %v715 = vadd.f32 %v526, %v626
  %v716 = vadd.f32 %v529, %v627
  %v717 = vadd.f32 %v532, %v627
  %v718 = vadd.f32 %v535, %v628
  %v719 = vadd.f32 %v538, %v628
  %v720 = vadd.f32 %v541, %v629
  %v721 = vadd.f32 %v544, %v629
  %v722 = vadd.f32 %v547, %v630
  %v723 = vadd.f32 %v550, %v630
  %v724 = vadd.f32 %v553, %v631
  %v725 = vadd.f32 %v556, %v631
  %v726 = vadd.f32 %v559, %v632
  %v727 = vadd.f32 %v562, %v632
  %v728 = vadd.f32 %v565, %v633
  %v729 = vadd.f32 %v568, %v633
  %v730 = vtanh.pop %v666
  %v731 = vtanh.pop %v667
  %v732 = vtanh.pop %v668
  %v733 = vtanh.pop %v669
  %v734 = vtanh.pop %v670
  %v735 = vtanh.pop %v671
  %v736 = vtanh.pop %v672
  %v737 = vtanh.pop %v673
  %v738 = vtanh.pop %v674
  %v739 = vtanh.pop %v675
  %v740 = vtanh.pop %v676
  %v741 = vtanh.pop %v677
  %v742 = vtanh.pop %v678
  %v743 = vtanh.pop %v679
  %v744 = vtanh.pop %v680
  %v745 = vtanh.pop %v681
  %v746 = vtanh.pop %v682
  %v747 = vtanh.pop %v683
  %v748 = vtanh.pop %v684
  %v749 = vtanh.pop %v685
  %v750 = vtanh.pop %v686
  %v751 = vtanh.pop %v687
  %v752 = vtanh.pop %v688
  %v753 = vtanh.pop %v689
  %v754 = vtanh.pop %v690
  %v755 = vtanh.pop %v691
  %v756 = vtanh.pop %v692
  %v757 = vtanh.pop %v693
  %v758 = vtanh.pop %v694
  %v759 = vtanh.pop %v695
  %v760 = vtanh.pop %v696
  %v761 = vtanh.pop %v697
  %v762 = vtanh.pop %v698
  %v763 = vtanh.pop %v699
  %v764 = vtanh.pop %v700
  %v765 = vtanh.pop %v701
  %v766 = vtanh.pop %v702
  %v767 = vtanh.pop %v703
  %v768 = vtanh.pop %v704
  %v769 = vtanh.pop %v705
  %v770 = vtanh.pop %v706
  %v771 = vtanh.pop %v707
  %v772 = vtanh.pop %v708
  %v773 = vtanh.pop %v709
  %v774 = vtanh.pop %v710
  %v775 = vtanh.pop %v711
  %v776 = vtanh.pop %v712
  %v777 = vtanh.pop %v713
  %v778 = vtanh.pop %v714
  %v779 = vtanh.pop %v715
  %v780 = vtanh.pop %v716
  %v781 = vtanh.pop %v717
  %v782 = vtanh.pop %v718
  %v783 = vtanh.pop %v719
  %v784 = vtanh.pop %v720
  %v785 = vtanh.pop %v721
  %v786 = vtanh.pop %v722
  %v787 = vtanh.pop %v723
  %v788 = vtanh.pop %v724
  %v789 = vtanh.pop %v725
  %v790 = vtanh.pop %v726
  %v791 = vtanh.pop %v727
  %v792 = vtanh.pop %v728
  %v793 = vtanh.pop %v729
  %v794 = vld [vmem:[%s6] sm:$0x1]
  %v796 = vperm.slane %v794, 0
  %v798 = vmul.f32 %v730, %v796
  %v799 = vmul.f32 %v731, %v796
  %v800 = vmul.f32 %v732, %v796
  %v801 = vmul.f32 %v733, %v796
  %v802 = vmul.f32 %v734, %v796
  %v803 = vmul.f32 %v735, %v796
  %v804 = vmul.f32 %v736, %v796
  %v805 = vmul.f32 %v737, %v796
  %v806 = vmul.f32 %v738, %v796
  %v807 = vmul.f32 %v739, %v796
  %v808 = vmul.f32 %v740, %v796
  %v809 = vmul.f32 %v741, %v796
  %v810 = vmul.f32 %v742, %v796
  %v811 = vmul.f32 %v743, %v796
  %v812 = vmul.f32 %v744, %v796
  %v813 = vmul.f32 %v745, %v796
  %v814 = vmul.f32 %v746, %v796
  %v815 = vmul.f32 %v747, %v796
  %v816 = vmul.f32 %v748, %v796
  %v817 = vmul.f32 %v749, %v796
  %v818 = vmul.f32 %v750, %v796
  %v819 = vmul.f32 %v751, %v796
  %v820 = vmul.f32 %v752, %v796
  %v821 = vmul.f32 %v753, %v796
  %v822 = vmul.f32 %v754, %v796
  %v823 = vmul.f32 %v755, %v796
  %v824 = vmul.f32 %v756, %v796
  %v825 = vmul.f32 %v757, %v796
  %v826 = vmul.f32 %v758, %v796
  %v827 = vmul.f32 %v759, %v796
  %v828 = vmul.f32 %v760, %v796
  %v829 = vmul.f32 %v761, %v796
  %v830 = vmul.f32 %v762, %v796
  %v831 = vmul.f32 %v763, %v796
  %v832 = vmul.f32 %v764, %v796
  %v833 = vmul.f32 %v765, %v796
  %v834 = vmul.f32 %v766, %v796
  %v835 = vmul.f32 %v767, %v796
  %v836 = vmul.f32 %v768, %v796
  %v837 = vmul.f32 %v769, %v796
  %v838 = vmul.f32 %v770, %v796
  %v839 = vmul.f32 %v771, %v796
  %v840 = vmul.f32 %v772, %v796
  %v841 = vmul.f32 %v773, %v796
  %v842 = vmul.f32 %v774, %v796
  %v843 = vmul.f32 %v775, %v796
  %v844 = vmul.f32 %v776, %v796
  %v845 = vmul.f32 %v777, %v796
  %v846 = vmul.f32 %v778, %v796
  %v847 = vmul.f32 %v779, %v796
  %v848 = vmul.f32 %v780, %v796
  %v849 = vmul.f32 %v781, %v796
  %v850 = vmul.f32 %v782, %v796
  %v851 = vmul.f32 %v783, %v796
  %v852 = vmul.f32 %v784, %v796
  %v853 = vmul.f32 %v785, %v796
  %v854 = vmul.f32 %v786, %v796
  %v855 = vmul.f32 %v787, %v796
  %v856 = vmul.f32 %v788, %v796
  %v857 = vmul.f32 %v789, %v796
  %v858 = vmul.f32 %v790, %v796
  %v859 = vmul.f32 %v791, %v796
  %v860 = vmul.f32 %v792, %v796
  %v861 = vmul.f32 %v793, %v796
  %862 = vadd.xlane.f32.xlu0 %v798
  %v863 = vpop.xlane.xlu0 %862
  %864 = vadd.xlane.f32.xlu0 %v799
  %v865 = vpop.xlane.xlu0 %864
  %866 = vadd.xlane.f32.xlu0 %v800
  %v867 = vpop.xlane.xlu0 %866
  %868 = vadd.xlane.f32.xlu0 %v801
  %v869 = vpop.xlane.xlu0 %868
  %870 = vadd.xlane.f32.xlu0 %v802
  %v871 = vpop.xlane.xlu0 %870
  %872 = vadd.xlane.f32.xlu0 %v803
  %v873 = vpop.xlane.xlu0 %872
  %874 = vadd.xlane.f32.xlu0 %v804
  %v875 = vpop.xlane.xlu0 %874
  %876 = vadd.xlane.f32.xlu0 %v805
  %v877 = vpop.xlane.xlu0 %876
  %878 = vadd.xlane.f32.xlu0 %v806
  %v879 = vpop.xlane.xlu0 %878
  %880 = vadd.xlane.f32.xlu0 %v807
  %v881 = vpop.xlane.xlu0 %880
  %882 = vadd.xlane.f32.xlu0 %v808
  %v883 = vpop.xlane.xlu0 %882
  %884 = vadd.xlane.f32.xlu0 %v809
  %v885 = vpop.xlane.xlu0 %884
  %886 = vadd.xlane.f32.xlu0 %v810
  %v887 = vpop.xlane.xlu0 %886
  %888 = vadd.xlane.f32.xlu0 %v811
  %v889 = vpop.xlane.xlu0 %888
  %890 = vadd.xlane.f32.xlu0 %v812
  %v891 = vpop.xlane.xlu0 %890
  %892 = vadd.xlane.f32.xlu0 %v813
  %v893 = vpop.xlane.xlu0 %892
  %894 = vadd.xlane.f32.xlu0 %v814
  %v895 = vpop.xlane.xlu0 %894
  %896 = vadd.xlane.f32.xlu0 %v815
  %v897 = vpop.xlane.xlu0 %896
  %898 = vadd.xlane.f32.xlu0 %v816
  %v899 = vpop.xlane.xlu0 %898
  %900 = vadd.xlane.f32.xlu0 %v817
  %v901 = vpop.xlane.xlu0 %900
  %902 = vadd.xlane.f32.xlu0 %v818
  %v903 = vpop.xlane.xlu0 %902
  %904 = vadd.xlane.f32.xlu0 %v819
  %v905 = vpop.xlane.xlu0 %904
  %906 = vadd.xlane.f32.xlu0 %v820
  %v907 = vpop.xlane.xlu0 %906
  %908 = vadd.xlane.f32.xlu0 %v821
  %v909 = vpop.xlane.xlu0 %908
  %910 = vadd.xlane.f32.xlu0 %v822
  %v911 = vpop.xlane.xlu0 %910
  %912 = vadd.xlane.f32.xlu0 %v823
  %v913 = vpop.xlane.xlu0 %912
  %914 = vadd.xlane.f32.xlu0 %v824
  %v915 = vpop.xlane.xlu0 %914
  %916 = vadd.xlane.f32.xlu0 %v825
  %v917 = vpop.xlane.xlu0 %916
  %918 = vadd.xlane.f32.xlu0 %v826
  %v919 = vpop.xlane.xlu0 %918
  %920 = vadd.xlane.f32.xlu0 %v827
  %v921 = vpop.xlane.xlu0 %920
  %922 = vadd.xlane.f32.xlu0 %v828
  %v923 = vpop.xlane.xlu0 %922
  %924 = vadd.xlane.f32.xlu0 %v829
  %v925 = vpop.xlane.xlu0 %924
  %926 = vadd.xlane.f32.xlu0 %v830
  %v927 = vpop.xlane.xlu0 %926
  %928 = vadd.xlane.f32.xlu0 %v831
  %v929 = vpop.xlane.xlu0 %928
  %930 = vadd.xlane.f32.xlu0 %v832
  %v931 = vpop.xlane.xlu0 %930
  %932 = vadd.xlane.f32.xlu0 %v833
  %v933 = vpop.xlane.xlu0 %932
  %934 = vadd.xlane.f32.xlu0 %v834
  %v935 = vpop.xlane.xlu0 %934
  %936 = vadd.xlane.f32.xlu0 %v835
  %v937 = vpop.xlane.xlu0 %936
  %938 = vadd.xlane.f32.xlu0 %v836
  %v939 = vpop.xlane.xlu0 %938
  %940 = vadd.xlane.f32.xlu0 %v837
  %v941 = vpop.xlane.xlu0 %940
  %942 = vadd.xlane.f32.xlu0 %v838
  %v943 = vpop.xlane.xlu0 %942
  %944 = vadd.xlane.f32.xlu0 %v839
  %v945 = vpop.xlane.xlu0 %944
  %946 = vadd.xlane.f32.xlu0 %v840
  %v947 = vpop.xlane.xlu0 %946
  %948 = vadd.xlane.f32.xlu0 %v841
  %v949 = vpop.xlane.xlu0 %948
  %950 = vadd.xlane.f32.xlu0 %v842
  %v951 = vpop.xlane.xlu0 %950
  %952 = vadd.xlane.f32.xlu0 %v843
  %v953 = vpop.xlane.xlu0 %952
  %954 = vadd.xlane.f32.xlu0 %v844
  %v955 = vpop.xlane.xlu0 %954
  %956 = vadd.xlane.f32.xlu0 %v845
  %v957 = vpop.xlane.xlu0 %956
  %958 = vadd.xlane.f32.xlu0 %v846
  %v959 = vpop.xlane.xlu0 %958
  %960 = vadd.xlane.f32.xlu0 %v847
  %v961 = vpop.xlane.xlu0 %960
  %962 = vadd.xlane.f32.xlu0 %v848
  %v963 = vpop.xlane.xlu0 %962
  %964 = vadd.xlane.f32.xlu0 %v849
  %v965 = vpop.xlane.xlu0 %964
  %966 = vadd.xlane.f32.xlu0 %v850
  %v967 = vpop.xlane.xlu0 %966
  %968 = vadd.xlane.f32.xlu0 %v851
  %v969 = vpop.xlane.xlu0 %968
  %970 = vadd.xlane.f32.xlu0 %v852
  %v971 = vpop.xlane.xlu0 %970
  %972 = vadd.xlane.f32.xlu0 %v853
  %v973 = vpop.xlane.xlu0 %972
  %974 = vadd.xlane.f32.xlu0 %v854
  %v975 = vpop.xlane.xlu0 %974
  %976 = vadd.xlane.f32.xlu0 %v855
  %v977 = vpop.xlane.xlu0 %976
  %978 = vadd.xlane.f32.xlu0 %v856
  %v979 = vpop.xlane.xlu0 %978
  %980 = vadd.xlane.f32.xlu0 %v857
  %v981 = vpop.xlane.xlu0 %980
  %982 = vadd.xlane.f32.xlu0 %v858
  %v983 = vpop.xlane.xlu0 %982
  %984 = vadd.xlane.f32.xlu0 %v859
  %v985 = vpop.xlane.xlu0 %984
  %986 = vadd.xlane.f32.xlu0 %v860
  %v987 = vpop.xlane.xlu0 %986
  %988 = vadd.xlane.f32.xlu0 %v861
  %v989 = vpop.xlane.xlu0 %988
  %v990 = vld [vmem:[#allocation2] sm:$0x1]
  %v992 = vperm.slane %v990, 0
  %v994 = vadd.f32 %v863, %v992
  %v995 = vadd.f32 %v865, %v992
  %v996 = vadd.f32 %v867, %v992
  %v997 = vadd.f32 %v869, %v992
  %v998 = vadd.f32 %v871, %v992
  %v999 = vadd.f32 %v873, %v992
  %v1000 = vadd.f32 %v875, %v992
  %v1001 = vadd.f32 %v877, %v992
  %v1002 = vadd.f32 %v879, %v992
  %v1003 = vadd.f32 %v881, %v992
  %v1004 = vadd.f32 %v883, %v992
  %v1005 = vadd.f32 %v885, %v992
  %v1006 = vadd.f32 %v887, %v992
  %v1007 = vadd.f32 %v889, %v992
  %v1008 = vadd.f32 %v891, %v992
  %v1009 = vadd.f32 %v893, %v992
  %v1010 = vadd.f32 %v895, %v992
  %v1011 = vadd.f32 %v897, %v992
  %v1012 = vadd.f32 %v899, %v992
  %v1013 = vadd.f32 %v901, %v992
  %v1014 = vadd.f32 %v903, %v992
  %v1015 = vadd.f32 %v905, %v992
  %v1016 = vadd.f32 %v907, %v992
  %v1017 = vadd.f32 %v909, %v992
  %v1018 = vadd.f32 %v911, %v992
  %v1019 = vadd.f32 %v913, %v992
  %v1020 = vadd.f32 %v915, %v992
  %v1021 = vadd.f32 %v917, %v992
  %v1022 = vadd.f32 %v919, %v992
  %v1023 = vadd.f32 %v921, %v992
  %v1024 = vadd.f32 %v923, %v992
  %v1025 = vadd.f32 %v925, %v992
  %v1026 = vadd.f32 %v927, %v992
  %v1027 = vadd.f32 %v929, %v992
  %v1028 = vadd.f32 %v931, %v992
  %v1029 = vadd.f32 %v933, %v992
  %v1030 = vadd.f32 %v935, %v992
  %v1031 = vadd.f32 %v937, %v992
  %v1032 = vadd.f32 %v939, %v992
  %v1033 = vadd.f32 %v941, %v992
  %v1034 = vadd.f32 %v943, %v992
  %v1035 = vadd.f32 %v945, %v992
  %v1036 = vadd.f32 %v947, %v992
  %v1037 = vadd.f32 %v949, %v992
  %v1038 = vadd.f32 %v951, %v992
  %v1039 = vadd.f32 %v953, %v992
  %v1040 = vadd.f32 %v955, %v992
  %v1041 = vadd.f32 %v957, %v992
  %v1042 = vadd.f32 %v959, %v992
  %v1043 = vadd.f32 %v961, %v992
  %v1044 = vadd.f32 %v963, %v992
  %v1045 = vadd.f32 %v965, %v992
  %v1046 = vadd.f32 %v967, %v992
  %v1047 = vadd.f32 %v969, %v992
  %v1048 = vadd.f32 %v971, %v992
  %v1049 = vadd.f32 %v973, %v992
  %v1050 = vadd.f32 %v975, %v992
  %v1051 = vadd.f32 %v977, %v992
  %v1052 = vadd.f32 %v979, %v992
  %v1053 = vadd.f32 %v981, %v992
  %v1054 = vadd.f32 %v983, %v992
  %v1055 = vadd.f32 %v985, %v992
  %v1056 = vadd.f32 %v987, %v992
  %v1057 = vadd.f32 %v989, %v992
  %vm1058 = vcmask 7168
  %v1059 = vsel %vm1058, %v994, -inf
  %v1060 = vsel %vm1058, %v995, -inf
  %v1061 = vmax.f32 %v1059, %v1060
  %v1062 = vrot.slane %v1061, 4
  %v1063 = vmax.f32 %v1061, %v1062
  %v1064 = vrot.slane %v1063, 2
  %v1065 = vmax.f32 %v1063, %v1064
  %v1066 = vrot.slane %v1065, 1
  %v1067 = vmax.f32 %v1065, %v1066
  %v1068 = vsel %vm1058, %v996, -inf
  %v1069 = vsel %vm1058, %v997, -inf
  %v1070 = vmax.f32 %v1068, %v1069
  %v1071 = vrot.slane %v1070, 4
  %v1072 = vmax.f32 %v1070, %v1071
  %v1073 = vrot.slane %v1072, 2
  %v1074 = vmax.f32 %v1072, %v1073
  %v1075 = vrot.slane %v1074, 1
  %v1076 = vmax.f32 %v1074, %v1075
  %v1077 = vsel %vm1058, %v998, -inf
  %v1078 = vsel %vm1058, %v999, -inf
  %v1079 = vmax.f32 %v1077, %v1078
  %v1080 = vrot.slane %v1079, 4
  %v1081 = vmax.f32 %v1079, %v1080
  %v1082 = vrot.slane %v1081, 2
  %v1083 = vmax.f32 %v1081, %v1082
  %v1084 = vrot.slane %v1083, 1
  %v1085 = vmax.f32 %v1083, %v1084
  %v1086 = vsel %vm1058, %v1000, -inf
  %v1087 = vsel %vm1058, %v1001, -inf
  %v1088 = vmax.f32 %v1086, %v1087
  %v1089 = vrot.slane %v1088, 4
  %v1090 = vmax.f32 %v1088, %v1089
  %v1091 = vrot.slane %v1090, 2
  %v1092 = vmax.f32 %v1090, %v1091
  %v1093 = vrot.slane %v1092, 1
  %v1094 = vmax.f32 %v1092, %v1093
  %v1095 = vsel %vm1058, %v1002, -inf
  %v1096 = vsel %vm1058, %v1003, -inf
  %v1097 = vmax.f32 %v1095, %v1096
  %v1098 = vrot.slane %v1097, 4
  %v1099 = vmax.f32 %v1097, %v1098
  %v1100 = vrot.slane %v1099, 2
  %v1101 = vmax.f32 %v1099, %v1100
  %v1102 = vrot.slane %v1101, 1
  %v1103 = vmax.f32 %v1101, %v1102
  %v1104 = vsel %vm1058, %v1004, -inf
  %v1105 = vsel %vm1058, %v1005, -inf
  %v1106 = vmax.f32 %v1104, %v1105
  %v1107 = vrot.slane %v1106, 4
  %v1108 = vmax.f32 %v1106, %v1107
  %v1109 = vrot.slane %v1108, 2
  %v1110 = vmax.f32 %v1108, %v1109
  %v1111 = vrot.slane %v1110, 1
  %v1112 = vmax.f32 %v1110, %v1111
  %v1113 = vsel %vm1058, %v1006, -inf
  %v1114 = vsel %vm1058, %v1007, -inf
  %v1115 = vmax.f32 %v1113, %v1114
  %v1116 = vrot.slane %v1115, 4
  %v1117 = vmax.f32 %v1115, %v1116
  %v1118 = vrot.slane %v1117, 2
  %v1119 = vmax.f32 %v1117, %v1118
  %v1120 = vrot.slane %v1119, 1
  %v1121 = vmax.f32 %v1119, %v1120
  %v1122 = vsel %vm1058, %v1008, -inf
  %v1123 = vsel %vm1058, %v1009, -inf
  %v1124 = vmax.f32 %v1122, %v1123
  %v1125 = vrot.slane %v1124, 4
  %v1126 = vmax.f32 %v1124, %v1125
  %v1127 = vrot.slane %v1126, 2
  %v1128 = vmax.f32 %v1126, %v1127
  %v1129 = vrot.slane %v1128, 1
  %v1130 = vmax.f32 %v1128, %v1129
  %v1131 = vsel %vm1058, %v1010, -inf
  %v1132 = vsel %vm1058, %v1011, -inf
  %v1133 = vmax.f32 %v1131, %v1132
  %v1134 = vrot.slane %v1133, 4
  %v1135 = vmax.f32 %v1133, %v1134
  %v1136 = vrot.slane %v1135, 2
  %v1137 = vmax.f32 %v1135, %v1136
  %v1138 = vrot.slane %v1137, 1
  %v1139 = vmax.f32 %v1137, %v1138
  %v1140 = vsel %vm1058, %v1012, -inf
  %v1141 = vsel %vm1058, %v1013, -inf
  %v1142 = vmax.f32 %v1140, %v1141
  %v1143 = vrot.slane %v1142, 4
  %v1144 = vmax.f32 %v1142, %v1143
  %v1145 = vrot.slane %v1144, 2
  %v1146 = vmax.f32 %v1144, %v1145
  %v1147 = vrot.slane %v1146, 1
  %v1148 = vmax.f32 %v1146, %v1147
  %v1149 = vsel %vm1058, %v1014, -inf
  %v1150 = vsel %vm1058, %v1015, -inf
  %v1151 = vmax.f32 %v1149, %v1150
  %v1152 = vrot.slane %v1151, 4
  %v1153 = vmax.f32 %v1151, %v1152
  %v1154 = vrot.slane %v1153, 2
  %v1155 = vmax.f32 %v1153, %v1154
  %v1156 = vrot.slane %v1155, 1
  %v1157 = vmax.f32 %v1155, %v1156
  %v1158 = vsel %vm1058, %v1016, -inf
  %v1159 = vsel %vm1058, %v1017, -inf
  %v1160 = vmax.f32 %v1158, %v1159
  %v1161 = vrot.slane %v1160, 4
  %v1162 = vmax.f32 %v1160, %v1161
  %v1163 = vrot.slane %v1162, 2
  %v1164 = vmax.f32 %v1162, %v1163
  %v1165 = vrot.slane %v1164, 1
  %v1166 = vmax.f32 %v1164, %v1165
  %v1167 = vsel %vm1058, %v1018, -inf
  %v1168 = vsel %vm1058, %v1019, -inf
  %v1169 = vmax.f32 %v1167, %v1168
  %v1170 = vrot.slane %v1169, 4
  %v1171 = vmax.f32 %v1169, %v1170
  %v1172 = vrot.slane %v1171, 2
  %v1173 = vmax.f32 %v1171, %v1172
  %v1174 = vrot.slane %v1173, 1
  %v1175 = vmax.f32 %v1173, %v1174
  %v1176 = vsel %vm1058, %v1020, -inf
  %v1177 = vsel %vm1058, %v1021, -inf
  %v1178 = vmax.f32 %v1176, %v1177
  %v1179 = vrot.slane %v1178, 4
  %v1180 = vmax.f32 %v1178, %v1179
  %v1181 = vrot.slane %v1180, 2
  %v1182 = vmax.f32 %v1180, %v1181
  %v1183 = vrot.slane %v1182, 1
  %v1184 = vmax.f32 %v1182, %v1183
  %v1185 = vsel %vm1058, %v1022, -inf
  %v1186 = vsel %vm1058, %v1023, -inf
  %v1187 = vmax.f32 %v1185, %v1186
  %v1188 = vrot.slane %v1187, 4
  %v1189 = vmax.f32 %v1187, %v1188
  %v1190 = vrot.slane %v1189, 2
  %v1191 = vmax.f32 %v1189, %v1190
  %v1192 = vrot.slane %v1191, 1
  %v1193 = vmax.f32 %v1191, %v1192
  %v1194 = vsel %vm1058, %v1024, -inf
  %v1195 = vsel %vm1058, %v1025, -inf
  %v1196 = vmax.f32 %v1194, %v1195
  %v1197 = vrot.slane %v1196, 4
  %v1198 = vmax.f32 %v1196, %v1197
  %v1199 = vrot.slane %v1198, 2
  %v1200 = vmax.f32 %v1198, %v1199
  %v1201 = vrot.slane %v1200, 1
  %v1202 = vmax.f32 %v1200, %v1201
  %v1203 = vsel %vm1058, %v1026, -inf
  %v1204 = vsel %vm1058, %v1027, -inf
  %v1205 = vmax.f32 %v1203, %v1204
  %v1206 = vrot.slane %v1205, 4
  %v1207 = vmax.f32 %v1205, %v1206
  %v1208 = vrot.slane %v1207, 2
  %v1209 = vmax.f32 %v1207, %v1208
  %v1210 = vrot.slane %v1209, 1
  %v1211 = vmax.f32 %v1209, %v1210
  %v1212 = vsel %vm1058, %v1028, -inf
  %v1213 = vsel %vm1058, %v1029, -inf
  %v1214 = vmax.f32 %v1212, %v1213
  %v1215 = vrot.slane %v1214, 4
  %v1216 = vmax.f32 %v1214, %v1215
  %v1217 = vrot.slane %v1216, 2
  %v1218 = vmax.f32 %v1216, %v1217
  %v1219 = vrot.slane %v1218, 1
  %v1220 = vmax.f32 %v1218, %v1219
  %v1221 = vsel %vm1058, %v1030, -inf
  %v1222 = vsel %vm1058, %v1031, -inf
  %v1223 = vmax.f32 %v1221, %v1222
  %v1224 = vrot.slane %v1223, 4
  %v1225 = vmax.f32 %v1223, %v1224
  %v1226 = vrot.slane %v1225, 2
  %v1227 = vmax.f32 %v1225, %v1226
  %v1228 = vrot.slane %v1227, 1
  %v1229 = vmax.f32 %v1227, %v1228
  %v1230 = vsel %vm1058, %v1032, -inf
  %v1231 = vsel %vm1058, %v1033, -inf
  %v1232 = vmax.f32 %v1230, %v1231
  %v1233 = vrot.slane %v1232, 4
  %v1234 = vmax.f32 %v1232, %v1233
  %v1235 = vrot.slane %v1234, 2
  %v1236 = vmax.f32 %v1234, %v1235
  %v1237 = vrot.slane %v1236, 1
  %v1238 = vmax.f32 %v1236, %v1237
  %v1239 = vsel %vm1058, %v1034, -inf
  %v1240 = vsel %vm1058, %v1035, -inf
  %v1241 = vmax.f32 %v1239, %v1240
  %v1242 = vrot.slane %v1241, 4
  %v1243 = vmax.f32 %v1241, %v1242
  %v1244 = vrot.slane %v1243, 2
  %v1245 = vmax.f32 %v1243, %v1244
  %v1246 = vrot.slane %v1245, 1
  %v1247 = vmax.f32 %v1245, %v1246
  %v1248 = vsel %vm1058, %v1036, -inf
  %v1249 = vsel %vm1058, %v1037, -inf
  %v1250 = vmax.f32 %v1248, %v1249
  %v1251 = vrot.slane %v1250, 4
  %v1252 = vmax.f32 %v1250, %v1251
  %v1253 = vrot.slane %v1252, 2
  %v1254 = vmax.f32 %v1252, %v1253
  %v1255 = vrot.slane %v1254, 1
  %v1256 = vmax.f32 %v1254, %v1255
  %v1257 = vsel %vm1058, %v1038, -inf
  %v1258 = vsel %vm1058, %v1039, -inf
  %v1259 = vmax.f32 %v1257, %v1258
  %v1260 = vrot.slane %v1259, 4
  %v1261 = vmax.f32 %v1259, %v1260
  %v1262 = vrot.slane %v1261, 2
  %v1263 = vmax.f32 %v1261, %v1262
  %v1264 = vrot.slane %v1263, 1
  %v1265 = vmax.f32 %v1263, %v1264
  %v1266 = vsel %vm1058, %v1040, -inf
  %v1267 = vsel %vm1058, %v1041, -inf
  %v1268 = vmax.f32 %v1266, %v1267
  %v1269 = vrot.slane %v1268, 4
  %v1270 = vmax.f32 %v1268, %v1269
  %v1271 = vrot.slane %v1270, 2
  %v1272 = vmax.f32 %v1270, %v1271
  %v1273 = vrot.slane %v1272, 1
  %v1274 = vmax.f32 %v1272, %v1273
  %v1275 = vsel %vm1058, %v1042, -inf
  %v1276 = vsel %vm1058, %v1043, -inf
  %v1277 = vmax.f32 %v1275, %v1276
  %v1278 = vrot.slane %v1277, 4
  %v1279 = vmax.f32 %v1277, %v1278
  %v1280 = vrot.slane %v1279, 2
  %v1281 = vmax.f32 %v1279, %v1280
  %v1282 = vrot.slane %v1281, 1
  %v1283 = vmax.f32 %v1281, %v1282
  %v1284 = vsel %vm1058, %v1044, -inf
  %v1285 = vsel %vm1058, %v1045, -inf
  %v1286 = vmax.f32 %v1284, %v1285
  %v1287 = vrot.slane %v1286, 4
  %v1288 = vmax.f32 %v1286, %v1287
  %v1289 = vrot.slane %v1288, 2
  %v1290 = vmax.f32 %v1288, %v1289
  %v1291 = vrot.slane %v1290, 1
  %v1292 = vmax.f32 %v1290, %v1291
  %v1293 = vsel %vm1058, %v1046, -inf
  %v1294 = vsel %vm1058, %v1047, -inf
  %v1295 = vmax.f32 %v1293, %v1294
  %v1296 = vrot.slane %v1295, 4
  %v1297 = vmax.f32 %v1295, %v1296
  %v1298 = vrot.slane %v1297, 2
  %v1299 = vmax.f32 %v1297, %v1298
  %v1300 = vrot.slane %v1299, 1
  %v1301 = vmax.f32 %v1299, %v1300
  %v1302 = vsel %vm1058, %v1048, -inf
  %v1303 = vsel %vm1058, %v1049, -inf
  %v1304 = vmax.f32 %v1302, %v1303
  %v1305 = vrot.slane %v1304, 4
  %v1306 = vmax.f32 %v1304, %v1305
  %v1307 = vrot.slane %v1306, 2
  %v1308 = vmax.f32 %v1306, %v1307
  %v1309 = vrot.slane %v1308, 1
  %v1310 = vmax.f32 %v1308, %v1309
  %v1311 = vsel %vm1058, %v1050, -inf
  %v1312 = vsel %vm1058, %v1051, -inf
  %v1313 = vmax.f32 %v1311, %v1312
  %v1314 = vrot.slane %v1313, 4
  %v1315 = vmax.f32 %v1313, %v1314
  %v1316 = vrot.slane %v1315, 2
  %v1317 = vmax.f32 %v1315, %v1316
  %v1318 = vrot.slane %v1317, 1
  %v1319 = vmax.f32 %v1317, %v1318
  %v1320 = vsel %vm1058, %v1052, -inf
  %v1321 = vsel %vm1058, %v1053, -inf
  %v1322 = vmax.f32 %v1320, %v1321
  %v1323 = vrot.slane %v1322, 4
  %v1324 = vmax.f32 %v1322, %v1323
  %v1325 = vrot.slane %v1324, 2
  %v1326 = vmax.f32 %v1324, %v1325
  %v1327 = vrot.slane %v1326, 1
  %v1328 = vmax.f32 %v1326, %v1327
  %v1329 = vsel %vm1058, %v1054, -inf
  %v1330 = vsel %vm1058, %v1055, -inf
  %v1331 = vmax.f32 %v1329, %v1330
  %v1332 = vrot.slane %v1331, 4
  %v1333 = vmax.f32 %v1331, %v1332
  %v1334 = vrot.slane %v1333, 2
  %v1335 = vmax.f32 %v1333, %v1334
  %v1336 = vrot.slane %v1335, 1
  %v1337 = vmax.f32 %v1335, %v1336
  %v1338 = vsel %vm1058, %v1056, -inf
  %v1339 = vsel %vm1058, %v1057, -inf
  %v1340 = vmax.f32 %v1338, %v1339
  %v1341 = vrot.slane %v1340, 4
  %v1342 = vmax.f32 %v1340, %v1341
  %v1343 = vrot.slane %v1342, 2
  %v1344 = vmax.f32 %v1342, %v1343
  %v1345 = vrot.slane %v1344, 1
  %v1346 = vmax.f32 %v1344, %v1345
  %v1347 = vsub.f32 %v994, %v1067
  %v1348 = vsub.f32 %v995, %v1067
  %v1349 = vsub.f32 %v996, %v1076
  %v1350 = vsub.f32 %v997, %v1076
  %v1351 = vsub.f32 %v998, %v1085
  %v1352 = vsub.f32 %v999, %v1085
  %v1353 = vsub.f32 %v1000, %v1094
  %v1354 = vsub.f32 %v1001, %v1094
  %v1355 = vsub.f32 %v1002, %v1103
  %v1356 = vsub.f32 %v1003, %v1103
  %v1357 = vsub.f32 %v1004, %v1112
  %v1358 = vsub.f32 %v1005, %v1112
  %v1359 = vsub.f32 %v1006, %v1121
  %v1360 = vsub.f32 %v1007, %v1121
  %v1361 = vsub.f32 %v1008, %v1130
  %v1362 = vsub.f32 %v1009, %v1130
  %v1363 = vsub.f32 %v1010, %v1139
  %v1364 = vsub.f32 %v1011, %v1139
  %v1365 = vsub.f32 %v1012, %v1148
  %v1366 = vsub.f32 %v1013, %v1148
  %v1367 = vsub.f32 %v1014, %v1157
  %v1368 = vsub.f32 %v1015, %v1157
  %v1369 = vsub.f32 %v1016, %v1166
  %v1370 = vsub.f32 %v1017, %v1166
  %v1371 = vsub.f32 %v1018, %v1175
  %v1372 = vsub.f32 %v1019, %v1175
  %v1373 = vsub.f32 %v1020, %v1184
  %v1374 = vsub.f32 %v1021, %v1184
  %v1375 = vsub.f32 %v1022, %v1193
  %v1376 = vsub.f32 %v1023, %v1193
  %v1377 = vsub.f32 %v1024, %v1202
  %v1378 = vsub.f32 %v1025, %v1202
  %v1379 = vsub.f32 %v1026, %v1211
  %v1380 = vsub.f32 %v1027, %v1211
  %v1381 = vsub.f32 %v1028, %v1220
  %v1382 = vsub.f32 %v1029, %v1220
  %v1383 = vsub.f32 %v1030, %v1229
  %v1384 = vsub.f32 %v1031, %v1229
  %v1385 = vsub.f32 %v1032, %v1238
  %v1386 = vsub.f32 %v1033, %v1238
  %v1387 = vsub.f32 %v1034, %v1247
  %v1388 = vsub.f32 %v1035, %v1247
  %v1389 = vsub.f32 %v1036, %v1256
  %v1390 = vsub.f32 %v1037, %v1256
  %v1391 = vsub.f32 %v1038, %v1265
  %v1392 = vsub.f32 %v1039, %v1265
  %v1393 = vsub.f32 %v1040, %v1274
  %v1394 = vsub.f32 %v1041, %v1274
  %v1395 = vsub.f32 %v1042, %v1283
  %v1396 = vsub.f32 %v1043, %v1283
  %v1397 = vsub.f32 %v1044, %v1292
  %v1398 = vsub.f32 %v1045, %v1292
  %v1399 = vsub.f32 %v1046, %v1301
  %v1400 = vsub.f32 %v1047, %v1301
  %v1401 = vsub.f32 %v1048, %v1310
  %v1402 = vsub.f32 %v1049, %v1310
  %v1403 = vsub.f32 %v1050, %v1319
  %v1404 = vsub.f32 %v1051, %v1319
  %v1405 = vsub.f32 %v1052, %v1328
  %v1406 = vsub.f32 %v1053, %v1328
  %v1407 = vsub.f32 %v1054, %v1337
  %v1408 = vsub.f32 %v1055, %v1337
  %v1409 = vsub.f32 %v1056, %v1346
  %v1410 = vsub.f32 %v1057, %v1346
  %v1411 = vmul.f32 %v1347, 1.442695
  %v1412 = vpow.pop %v1411
  %v1413 = vmul.f32 %v1348, 1.442695
  %v1414 = vpow.pop %v1413
  %v1415 = vmul.f32 %v1349, 1.442695
  %v1416 = vpow.pop %v1415
  %v1417 = vmul.f32 %v1350, 1.442695
  %v1418 = vpow.pop %v1417
  %v1419 = vmul.f32 %v1351, 1.442695
  %v1420 = vpow.pop %v1419
  %v1421 = vmul.f32 %v1352, 1.442695
  %v1422 = vpow.pop %v1421
  %v1423 = vmul.f32 %v1353, 1.442695
  %v1424 = vpow.pop %v1423
  %v1425 = vmul.f32 %v1354, 1.442695
  %v1426 = vpow.pop %v1425
  %v1427 = vmul.f32 %v1355, 1.442695
  %v1428 = vpow.pop %v1427
  %v1429 = vmul.f32 %v1356, 1.442695
  %v1430 = vpow.pop %v1429
  %v1431 = vmul.f32 %v1357, 1.442695
  %v1432 = vpow.pop %v1431
  %v1433 = vmul.f32 %v1358, 1.442695
  %v1434 = vpow.pop %v1433
  %v1435 = vmul.f32 %v1359, 1.442695
  %v1436 = vpow.pop %v1435
  %v1437 = vmul.f32 %v1360, 1.442695
  %v1438 = vpow.pop %v1437
  %v1439 = vmul.f32 %v1361, 1.442695
  %v1440 = vpow.pop %v1439
  %v1441 = vmul.f32 %v1362, 1.442695
  %v1442 = vpow.pop %v1441
  %v1443 = vmul.f32 %v1363, 1.442695
  %v1444 = vpow.pop %v1443
  %v1445 = vmul.f32 %v1364, 1.442695
  %v1446 = vpow.pop %v1445
  %v1447 = vmul.f32 %v1365, 1.442695
  %v1448 = vpow.pop %v1447
  %v1449 = vmul.f32 %v1366, 1.442695
  %v1450 = vpow.pop %v1449
  %v1451 = vmul.f32 %v1367, 1.442695
  %v1452 = vpow.pop %v1451
  %v1453 = vmul.f32 %v1368, 1.442695
  %v1454 = vpow.pop %v1453
  %v1455 = vmul.f32 %v1369, 1.442695
  %v1456 = vpow.pop %v1455
  %v1457 = vmul.f32 %v1370, 1.442695
  %v1458 = vpow.pop %v1457
  %v1459 = vmul.f32 %v1371, 1.442695
  %v1460 = vpow.pop %v1459
  %v1461 = vmul.f32 %v1372, 1.442695
  %v1462 = vpow.pop %v1461
  %v1463 = vmul.f32 %v1373, 1.442695
  %v1464 = vpow.pop %v1463
  %v1465 = vmul.f32 %v1374, 1.442695
  %v1466 = vpow.pop %v1465
  %v1467 = vmul.f32 %v1375, 1.442695
  %v1468 = vpow.pop %v1467
  %v1469 = vmul.f32 %v1376, 1.442695
  %v1470 = vpow.pop %v1469
  %v1471 = vmul.f32 %v1377, 1.442695
  %v1472 = vpow.pop %v1471
  %v1473 = vmul.f32 %v1378, 1.442695
  %v1474 = vpow.pop %v1473
  %v1475 = vmul.f32 %v1379, 1.442695
  %v1476 = vpow.pop %v1475
  %v1477 = vmul.f32 %v1380, 1.442695
  %v1478 = vpow.pop %v1477
  %v1479 = vmul.f32 %v1381, 1.442695
  %v1480 = vpow.pop %v1479
  %v1481 = vmul.f32 %v1382, 1.442695
  %v1482 = vpow.pop %v1481
  %v1483 = vmul.f32 %v1383, 1.442695
  %v1484 = vpow.pop %v1483
  %v1485 = vmul.f32 %v1384, 1.442695
  %v1486 = vpow.pop %v1485
  %v1487 = vmul.f32 %v1385, 1.442695
  %v1488 = vpow.pop %v1487
  %v1489 = vmul.f32 %v1386, 1.442695
  %v1490 = vpow.pop %v1489
  %v1491 = vmul.f32 %v1387, 1.442695
  %v1492 = vpow.pop %v1491
  %v1493 = vmul.f32 %v1388, 1.442695
  %v1494 = vpow.pop %v1493
  %v1495 = vmul.f32 %v1389, 1.442695
  %v1496 = vpow.pop %v1495
  %v1497 = vmul.f32 %v1390, 1.442695
  %v1498 = vpow.pop %v1497
  %v1499 = vmul.f32 %v1391, 1.442695
  %v1500 = vpow.pop %v1499
  %v1501 = vmul.f32 %v1392, 1.442695
  %v1502 = vpow.pop %v1501
  %v1503 = vmul.f32 %v1393, 1.442695
  %v1504 = vpow.pop %v1503
  %v1505 = vmul.f32 %v1394, 1.442695
  %v1506 = vpow.pop %v1505
  %v1507 = vmul.f32 %v1395, 1.442695
  %v1508 = vpow.pop %v1507
  %v1509 = vmul.f32 %v1396, 1.442695
  %v1510 = vpow.pop %v1509
  %v1511 = vmul.f32 %v1397, 1.442695
  %v1512 = vpow.pop %v1511
  %v1513 = vmul.f32 %v1398, 1.442695
  %v1514 = vpow.pop %v1513
  %v1515 = vmul.f32 %v1399, 1.442695
  %v1516 = vpow.pop %v1515
  %v1517 = vmul.f32 %v1400, 1.442695
  %v1518 = vpow.pop %v1517
  %v1519 = vmul.f32 %v1401, 1.442695
  %v1520 = vpow.pop %v1519
  %v1521 = vmul.f32 %v1402, 1.442695
  %v1522 = vpow.pop %v1521
  %v1523 = vmul.f32 %v1403, 1.442695
  %v1524 = vpow.pop %v1523
  %v1525 = vmul.f32 %v1404, 1.442695
  %v1526 = vpow.pop %v1525
  %v1527 = vmul.f32 %v1405, 1.442695
  %v1528 = vpow.pop %v1527
  %v1529 = vmul.f32 %v1406, 1.442695
  %v1530 = vpow.pop %v1529
  %v1531 = vmul.f32 %v1407, 1.442695
  %v1532 = vpow.pop %v1531
  %v1533 = vmul.f32 %v1408, 1.442695
  %v1534 = vpow.pop %v1533
  %v1535 = vmul.f32 %v1409, 1.442695
  %v1536 = vpow.pop %v1535
  %v1537 = vmul.f32 %v1410, 1.442695
  %v1538 = vpow.pop %v1537
  %v1539 = vsel %vm1058, %v1412, 0.0
  %v1540 = vsel %vm1058, %v1414, 0.0
  %v1541 = vadd.f32 %v1539, %v1540
  %v1542 = vrot.slane %v1541, 4
  %v1543 = vadd.f32 %v1541, %v1542
  %v1544 = vrot.slane %v1543, 2
  %v1545 = vadd.f32 %v1543, %v1544
  %v1546 = vrot.slane %v1545, 1
  %v1547 = vadd.f32 %v1545, %v1546
  %v1548 = vsel %vm1058, %v1416, 0.0
  %v1549 = vsel %vm1058, %v1418, 0.0
  %v1550 = vadd.f32 %v1548, %v1549
  %v1551 = vrot.slane %v1550, 4
  %v1552 = vadd.f32 %v1550, %v1551
  %v1553 = vrot.slane %v1552, 2
  %v1554 = vadd.f32 %v1552, %v1553
  %v1555 = vrot.slane %v1554, 1
  %v1556 = vadd.f32 %v1554, %v1555
  %v1557 = vsel %vm1058, %v1420, 0.0
  %v1558 = vsel %vm1058, %v1422, 0.0
  %v1559 = vadd.f32 %v1557, %v1558
  %v1560 = vrot.slane %v1559, 4
  %v1561 = vadd.f32 %v1559, %v1560
  %v1562 = vrot.slane %v1561, 2
  %v1563 = vadd.f32 %v1561, %v1562
  %v1564 = vrot.slane %v1563, 1
  %v1565 = vadd.f32 %v1563, %v1564
  %v1566 = vsel %vm1058, %v1424, 0.0
  %v1567 = vsel %vm1058, %v1426, 0.0
  %v1568 = vadd.f32 %v1566, %v1567
  %v1569 = vrot.slane %v1568, 4
  %v1570 = vadd.f32 %v1568, %v1569
  %v1571 = vrot.slane %v1570, 2
  %v1572 = vadd.f32 %v1570, %v1571
  %v1573 = vrot.slane %v1572, 1
  %v1574 = vadd.f32 %v1572, %v1573
  %v1575 = vsel %vm1058, %v1428, 0.0
  %v1576 = vsel %vm1058, %v1430, 0.0
  %v1577 = vadd.f32 %v1575, %v1576
  %v1578 = vrot.slane %v1577, 4
  %v1579 = vadd.f32 %v1577, %v1578
  %v1580 = vrot.slane %v1579, 2
  %v1581 = vadd.f32 %v1579, %v1580
  %v1582 = vrot.slane %v1581, 1
  %v1583 = vadd.f32 %v1581, %v1582
  %v1584 = vsel %vm1058, %v1432, 0.0
  %v1585 = vsel %vm1058, %v1434, 0.0
  %v1586 = vadd.f32 %v1584, %v1585
  %v1587 = vrot.slane %v1586, 4
  %v1588 = vadd.f32 %v1586, %v1587
  %v1589 = vrot.slane %v1588, 2
  %v1590 = vadd.f32 %v1588, %v1589
  %v1591 = vrot.slane %v1590, 1
  %v1592 = vadd.f32 %v1590, %v1591
  %v1593 = vsel %vm1058, %v1436, 0.0
  %v1594 = vsel %vm1058, %v1438, 0.0
  %v1595 = vadd.f32 %v1593, %v1594
  %v1596 = vrot.slane %v1595, 4
  %v1597 = vadd.f32 %v1595, %v1596
  %v1598 = vrot.slane %v1597, 2
  %v1599 = vadd.f32 %v1597, %v1598
  %v1600 = vrot.slane %v1599, 1
  %v1601 = vadd.f32 %v1599, %v1600
  %v1602 = vsel %vm1058, %v1440, 0.0
  %v1603 = vsel %vm1058, %v1442, 0.0
  %v1604 = vadd.f32 %v1602, %v1603
  %v1605 = vrot.slane %v1604, 4
  %v1606 = vadd.f32 %v1604, %v1605
  %v1607 = vrot.slane %v1606, 2
  %v1608 = vadd.f32 %v1606, %v1607
  %v1609 = vrot.slane %v1608, 1
  %v1610 = vadd.f32 %v1608, %v1609
  %v1611 = vsel %vm1058, %v1444, 0.0
  %v1612 = vsel %vm1058, %v1446, 0.0
  %v1613 = vadd.f32 %v1611, %v1612
  %v1614 = vrot.slane %v1613, 4
  %v1615 = vadd.f32 %v1613, %v1614
  %v1616 = vrot.slane %v1615, 2
  %v1617 = vadd.f32 %v1615, %v1616
  %v1618 = vrot.slane %v1617, 1
  %v1619 = vadd.f32 %v1617, %v1618
  %v1620 = vsel %vm1058, %v1448, 0.0
  %v1621 = vsel %vm1058, %v1450, 0.0
  %v1622 = vadd.f32 %v1620, %v1621
  %v1623 = vrot.slane %v1622, 4
  %v1624 = vadd.f32 %v1622, %v1623
  %v1625 = vrot.slane %v1624, 2
  %v1626 = vadd.f32 %v1624, %v1625
  %v1627 = vrot.slane %v1626, 1
  %v1628 = vadd.f32 %v1626, %v1627
  %v1629 = vsel %vm1058, %v1452, 0.0
  %v1630 = vsel %vm1058, %v1454, 0.0
  %v1631 = vadd.f32 %v1629, %v1630
  %v1632 = vrot.slane %v1631, 4
  %v1633 = vadd.f32 %v1631, %v1632
  %v1634 = vrot.slane %v1633, 2
  %v1635 = vadd.f32 %v1633, %v1634
  %v1636 = vrot.slane %v1635, 1
  %v1637 = vadd.f32 %v1635, %v1636
  %v1638 = vsel %vm1058, %v1456, 0.0
  %v1639 = vsel %vm1058, %v1458, 0.0
  %v1640 = vadd.f32 %v1638, %v1639
  %v1641 = vrot.slane %v1640, 4
  %v1642 = vadd.f32 %v1640, %v1641
  %v1643 = vrot.slane %v1642, 2
  %v1644 = vadd.f32 %v1642, %v1643
  %v1645 = vrot.slane %v1644, 1
  %v1646 = vadd.f32 %v1644, %v1645
  %v1647 = vsel %vm1058, %v1460, 0.0
  %v1648 = vsel %vm1058, %v1462, 0.0
  %v1649 = vadd.f32 %v1647, %v1648
  %v1650 = vrot.slane %v1649, 4
  %v1651 = vadd.f32 %v1649, %v1650
  %v1652 = vrot.slane %v1651, 2
  %v1653 = vadd.f32 %v1651, %v1652
  %v1654 = vrot.slane %v1653, 1
  %v1655 = vadd.f32 %v1653, %v1654
  %v1656 = vsel %vm1058, %v1464, 0.0
  %v1657 = vsel %vm1058, %v1466, 0.0
  %v1658 = vadd.f32 %v1656, %v1657
  %v1659 = vrot.slane %v1658, 4
  %v1660 = vadd.f32 %v1658, %v1659
  %v1661 = vrot.slane %v1660, 2
  %v1662 = vadd.f32 %v1660, %v1661
  %v1663 = vrot.slane %v1662, 1
  %v1664 = vadd.f32 %v1662, %v1663
  %v1665 = vsel %vm1058, %v1468, 0.0
  %v1666 = vsel %vm1058, %v1470, 0.0
  %v1667 = vadd.f32 %v1665, %v1666
  %v1668 = vrot.slane %v1667, 4
  %v1669 = vadd.f32 %v1667, %v1668
  %v1670 = vrot.slane %v1669, 2
  %v1671 = vadd.f32 %v1669, %v1670
  %v1672 = vrot.slane %v1671, 1
  %v1673 = vadd.f32 %v1671, %v1672
  %v1674 = vsel %vm1058, %v1472, 0.0
  %v1675 = vsel %vm1058, %v1474, 0.0
  %v1676 = vadd.f32 %v1674, %v1675
  %v1677 = vrot.slane %v1676, 4
  %v1678 = vadd.f32 %v1676, %v1677
  %v1679 = vrot.slane %v1678, 2
  %v1680 = vadd.f32 %v1678, %v1679
  %v1681 = vrot.slane %v1680, 1
  %v1682 = vadd.f32 %v1680, %v1681
  %v1683 = vsel %vm1058, %v1476, 0.0
  %v1684 = vsel %vm1058, %v1478, 0.0
  %v1685 = vadd.f32 %v1683, %v1684
  %v1686 = vrot.slane %v1685, 4
  %v1687 = vadd.f32 %v1685, %v1686
  %v1688 = vrot.slane %v1687, 2
  %v1689 = vadd.f32 %v1687, %v1688
  %v1690 = vrot.slane %v1689, 1
  %v1691 = vadd.f32 %v1689, %v1690
  %v1692 = vsel %vm1058, %v1480, 0.0
  %v1693 = vsel %vm1058, %v1482, 0.0
  %v1694 = vadd.f32 %v1692, %v1693
  %v1695 = vrot.slane %v1694, 4
  %v1696 = vadd.f32 %v1694, %v1695
  %v1697 = vrot.slane %v1696, 2
  %v1698 = vadd.f32 %v1696, %v1697
  %v1699 = vrot.slane %v1698, 1
  %v1700 = vadd.f32 %v1698, %v1699
  %v1701 = vsel %vm1058, %v1484, 0.0
  %v1702 = vsel %vm1058, %v1486, 0.0
  %v1703 = vadd.f32 %v1701, %v1702
  %v1704 = vrot.slane %v1703, 4
  %v1705 = vadd.f32 %v1703, %v1704
  %v1706 = vrot.slane %v1705, 2
  %v1707 = vadd.f32 %v1705, %v1706
  %v1708 = vrot.slane %v1707, 1
  %v1709 = vadd.f32 %v1707, %v1708
  %v1710 = vsel %vm1058, %v1488, 0.0
  %v1711 = vsel %vm1058, %v1490, 0.0
  %v1712 = vadd.f32 %v1710, %v1711
  %v1713 = vrot.slane %v1712, 4
  %v1714 = vadd.f32 %v1712, %v1713
  %v1715 = vrot.slane %v1714, 2
  %v1716 = vadd.f32 %v1714, %v1715
  %v1717 = vrot.slane %v1716, 1
  %v1718 = vadd.f32 %v1716, %v1717
  %v1719 = vsel %vm1058, %v1492, 0.0
  %v1720 = vsel %vm1058, %v1494, 0.0
  %v1721 = vadd.f32 %v1719, %v1720
  %v1722 = vrot.slane %v1721, 4
  %v1723 = vadd.f32 %v1721, %v1722
  %v1724 = vrot.slane %v1723, 2
  %v1725 = vadd.f32 %v1723, %v1724
  %v1726 = vrot.slane %v1725, 1
  %v1727 = vadd.f32 %v1725, %v1726
  %v1728 = vsel %vm1058, %v1496, 0.0
  %v1729 = vsel %vm1058, %v1498, 0.0
  %v1730 = vadd.f32 %v1728, %v1729
  %v1731 = vrot.slane %v1730, 4
  %v1732 = vadd.f32 %v1730, %v1731
  %v1733 = vrot.slane %v1732, 2
  %v1734 = vadd.f32 %v1732, %v1733
  %v1735 = vrot.slane %v1734, 1
  %v1736 = vadd.f32 %v1734, %v1735
  %v1737 = vsel %vm1058, %v1500, 0.0
  %v1738 = vsel %vm1058, %v1502, 0.0
  %v1739 = vadd.f32 %v1737, %v1738
  %v1740 = vrot.slane %v1739, 4
  %v1741 = vadd.f32 %v1739, %v1740
  %v1742 = vrot.slane %v1741, 2
  %v1743 = vadd.f32 %v1741, %v1742
  %v1744 = vrot.slane %v1743, 1
  %v1745 = vadd.f32 %v1743, %v1744
  %v1746 = vsel %vm1058, %v1504, 0.0
  %v1747 = vsel %vm1058, %v1506, 0.0
  %v1748 = vadd.f32 %v1746, %v1747
  %v1749 = vrot.slane %v1748, 4
  %v1750 = vadd.f32 %v1748, %v1749
  %v1751 = vrot.slane %v1750, 2
  %v1752 = vadd.f32 %v1750, %v1751
  %v1753 = vrot.slane %v1752, 1
  %v1754 = vadd.f32 %v1752, %v1753
  %v1755 = vsel %vm1058, %v1508, 0.0
  %v1756 = vsel %vm1058, %v1510, 0.0
  %v1757 = vadd.f32 %v1755, %v1756
  %v1758 = vrot.slane %v1757, 4
  %v1759 = vadd.f32 %v1757, %v1758
  %v1760 = vrot.slane %v1759, 2
  %v1761 = vadd.f32 %v1759, %v1760
  %v1762 = vrot.slane %v1761, 1
  %v1763 = vadd.f32 %v1761, %v1762
  %v1764 = vsel %vm1058, %v1512, 0.0
  %v1765 = vsel %vm1058, %v1514, 0.0
  %v1766 = vadd.f32 %v1764, %v1765
  %v1767 = vrot.slane %v1766, 4
  %v1768 = vadd.f32 %v1766, %v1767
  %v1769 = vrot.slane %v1768, 2
  %v1770 = vadd.f32 %v1768, %v1769
  %v1771 = vrot.slane %v1770, 1
  %v1772 = vadd.f32 %v1770, %v1771
  %v1773 = vsel %vm1058, %v1516, 0.0
  %v1774 = vsel %vm1058, %v1518, 0.0
  %v1775 = vadd.f32 %v1773, %v1774
  %v1776 = vrot.slane %v1775, 4
  %v1777 = vadd.f32 %v1775, %v1776
  %v1778 = vrot.slane %v1777, 2
  %v1779 = vadd.f32 %v1777, %v1778
  %v1780 = vrot.slane %v1779, 1
  %v1781 = vadd.f32 %v1779, %v1780
  %v1782 = vsel %vm1058, %v1520, 0.0
  %v1783 = vsel %vm1058, %v1522, 0.0
  %v1784 = vadd.f32 %v1782, %v1783
  %v1785 = vrot.slane %v1784, 4
  %v1786 = vadd.f32 %v1784, %v1785
  %v1787 = vrot.slane %v1786, 2
  %v1788 = vadd.f32 %v1786, %v1787
  %v1789 = vrot.slane %v1788, 1
  %v1790 = vadd.f32 %v1788, %v1789
  %v1791 = vsel %vm1058, %v1524, 0.0
  %v1792 = vsel %vm1058, %v1526, 0.0
  %v1793 = vadd.f32 %v1791, %v1792
  %v1794 = vrot.slane %v1793, 4
  %v1795 = vadd.f32 %v1793, %v1794
  %v1796 = vrot.slane %v1795, 2
  %v1797 = vadd.f32 %v1795, %v1796
  %v1798 = vrot.slane %v1797, 1
  %v1799 = vadd.f32 %v1797, %v1798
  %v1800 = vsel %vm1058, %v1528, 0.0
  %v1801 = vsel %vm1058, %v1530, 0.0
  %v1802 = vadd.f32 %v1800, %v1801
  %v1803 = vrot.slane %v1802, 4
  %v1804 = vadd.f32 %v1802, %v1803
  %v1805 = vrot.slane %v1804, 2
  %v1806 = vadd.f32 %v1804, %v1805
  %v1807 = vrot.slane %v1806, 1
  %v1808 = vadd.f32 %v1806, %v1807
  %v1809 = vsel %vm1058, %v1532, 0.0
  %v1810 = vsel %vm1058, %v1534, 0.0
  %v1811 = vadd.f32 %v1809, %v1810
  %v1812 = vrot.slane %v1811, 4
  %v1813 = vadd.f32 %v1811, %v1812
  %v1814 = vrot.slane %v1813, 2
  %v1815 = vadd.f32 %v1813, %v1814
  %v1816 = vrot.slane %v1815, 1
  %v1817 = vadd.f32 %v1815, %v1816
  %v1818 = vsel %vm1058, %v1536, 0.0
  %v1819 = vsel %vm1058, %v1538, 0.0
  %v1820 = vadd.f32 %v1818, %v1819
  %v1821 = vrot.slane %v1820, 4
  %v1822 = vadd.f32 %v1820, %v1821
  %v1823 = vrot.slane %v1822, 2
  %v1824 = vadd.f32 %v1822, %v1823
  %v1825 = vrot.slane %v1824, 1
  %v1826 = vadd.f32 %v1824, %v1825
  %v1827 = vlog2.pop %v1547
  %v1828 = vmul.f32 %v1827, 0.6931472
  %v1829 = vlog2.pop %v1556
  %v1830 = vmul.f32 %v1829, 0.6931472
  %v1831 = vlog2.pop %v1565
  %v1832 = vmul.f32 %v1831, 0.6931472
  %v1833 = vlog2.pop %v1574
  %v1834 = vmul.f32 %v1833, 0.6931472
  %v1835 = vlog2.pop %v1583
  %v1836 = vmul.f32 %v1835, 0.6931472
  %v1837 = vlog2.pop %v1592
  %v1838 = vmul.f32 %v1837, 0.6931472
  %v1839 = vlog2.pop %v1601
  %v1840 = vmul.f32 %v1839, 0.6931472
  %v1841 = vlog2.pop %v1610
  %v1842 = vmul.f32 %v1841, 0.6931472
  %v1843 = vlog2.pop %v1619
  %v1844 = vmul.f32 %v1843, 0.6931472
  %v1845 = vlog2.pop %v1628
  %v1846 = vmul.f32 %v1845, 0.6931472
  %v1847 = vlog2.pop %v1637
  %v1848 = vmul.f32 %v1847, 0.6931472
  %v1849 = vlog2.pop %v1646
  %v1850 = vmul.f32 %v1849, 0.6931472
  %v1851 = vlog2.pop %v1655
  %v1852 = vmul.f32 %v1851, 0.6931472
  %v1853 = vlog2.pop %v1664
  %v1854 = vmul.f32 %v1853, 0.6931472
  %v1855 = vlog2.pop %v1673
  %v1856 = vmul.f32 %v1855, 0.6931472
  %v1857 = vlog2.pop %v1682
  %v1858 = vmul.f32 %v1857, 0.6931472
  %v1859 = vlog2.pop %v1691
  %v1860 = vmul.f32 %v1859, 0.6931472
  %v1861 = vlog2.pop %v1700
  %v1862 = vmul.f32 %v1861, 0.6931472
  %v1863 = vlog2.pop %v1709
  %v1864 = vmul.f32 %v1863, 0.6931472
  %v1865 = vlog2.pop %v1718
  %v1866 = vmul.f32 %v1865, 0.6931472
  %v1867 = vlog2.pop %v1727
  %v1868 = vmul.f32 %v1867, 0.6931472
  %v1869 = vlog2.pop %v1736
  %v1870 = vmul.f32 %v1869, 0.6931472
  %v1871 = vlog2.pop %v1745
  %v1872 = vmul.f32 %v1871, 0.6931472
  %v1873 = vlog2.pop %v1754
  %v1874 = vmul.f32 %v1873, 0.6931472
  %v1875 = vlog2.pop %v1763
  %v1876 = vmul.f32 %v1875, 0.6931472
  %v1877 = vlog2.pop %v1772
  %v1878 = vmul.f32 %v1877, 0.6931472
  %v1879 = vlog2.pop %v1781
  %v1880 = vmul.f32 %v1879, 0.6931472
  %v1881 = vlog2.pop %v1790
  %v1882 = vmul.f32 %v1881, 0.6931472
  %v1883 = vlog2.pop %v1799
  %v1884 = vmul.f32 %v1883, 0.6931472
  %v1885 = vlog2.pop %v1808
  %v1886 = vmul.f32 %v1885, 0.6931472
  %v1887 = vlog2.pop %v1817
  %v1888 = vmul.f32 %v1887, 0.6931472
  %v1889 = vlog2.pop %v1826
  %v1890 = vmul.f32 %v1889, 0.6931472
  %v1891 = vadd.f32 %v1828, %v1067
  %v1892 = vadd.f32 %v1830, %v1076
  %v1893 = vadd.f32 %v1832, %v1085
  %v1894 = vadd.f32 %v1834, %v1094
  %v1895 = vadd.f32 %v1836, %v1103
  %v1896 = vadd.f32 %v1838, %v1112
  %v1897 = vadd.f32 %v1840, %v1121
  %v1898 = vadd.f32 %v1842, %v1130
  %v1899 = vadd.f32 %v1844, %v1139
  %v1900 = vadd.f32 %v1846, %v1148
  %v1901 = vadd.f32 %v1848, %v1157
  %v1902 = vadd.f32 %v1850, %v1166
  %v1903 = vadd.f32 %v1852, %v1175
  %v1904 = vadd.f32 %v1854, %v1184
  %v1905 = vadd.f32 %v1856, %v1193
  %v1906 = vadd.f32 %v1858, %v1202
  %v1907 = vadd.f32 %v1860, %v1211
  %v1908 = vadd.f32 %v1862, %v1220
  %v1909 = vadd.f32 %v1864, %v1229
  %v1910 = vadd.f32 %v1866, %v1238
  %v1911 = vadd.f32 %v1868, %v1247
  %v1912 = vadd.f32 %v1870, %v1256
  %v1913 = vadd.f32 %v1872, %v1265
  %v1914 = vadd.f32 %v1874, %v1274
  %v1915 = vadd.f32 %v1876, %v1283
  %v1916 = vadd.f32 %v1878, %v1292
  %v1917 = vadd.f32 %v1880, %v1301
  %v1918 = vadd.f32 %v1882, %v1310
  %v1919 = vadd.f32 %v1884, %v1319
  %v1920 = vadd.f32 %v1886, %v1328
  %v1921 = vadd.f32 %v1888, %v1337
  %v1922 = vadd.f32 %v1890, %v1346
  %v1923 = vsub.f32 %v994, %v1891
  %v1924 = vsub.f32 %v995, %v1891
  %v1925 = vsub.f32 %v996, %v1892
  %v1926 = vsub.f32 %v997, %v1892
  %v1927 = vsub.f32 %v998, %v1893
  %v1928 = vsub.f32 %v999, %v1893
  %v1929 = vsub.f32 %v1000, %v1894
  %v1930 = vsub.f32 %v1001, %v1894
  %v1931 = vsub.f32 %v1002, %v1895
  %v1932 = vsub.f32 %v1003, %v1895
  %v1933 = vsub.f32 %v1004, %v1896
  %v1934 = vsub.f32 %v1005, %v1896
  %v1935 = vsub.f32 %v1006, %v1897
  %v1936 = vsub.f32 %v1007, %v1897
  %v1937 = vsub.f32 %v1008, %v1898
  %v1938 = vsub.f32 %v1009, %v1898
  %v1939 = vsub.f32 %v1010, %v1899
  %v1940 = vsub.f32 %v1011, %v1899
  %v1941 = vsub.f32 %v1012, %v1900
  %v1942 = vsub.f32 %v1013, %v1900
  %v1943 = vsub.f32 %v1014, %v1901
  %v1944 = vsub.f32 %v1015, %v1901
  %v1945 = vsub.f32 %v1016, %v1902
  %v1946 = vsub.f32 %v1017, %v1902
  %v1947 = vsub.f32 %v1018, %v1903
  %v1948 = vsub.f32 %v1019, %v1903
  %v1949 = vsub.f32 %v1020, %v1904
  %v1950 = vsub.f32 %v1021, %v1904
  %v1951 = vsub.f32 %v1022, %v1905
  %v1952 = vsub.f32 %v1023, %v1905
  %v1953 = vsub.f32 %v1024, %v1906
  %v1954 = vsub.f32 %v1025, %v1906
  %v1955 = vsub.f32 %v1026, %v1907
  %v1956 = vsub.f32 %v1027, %v1907
  %v1957 = vsub.f32 %v1028, %v1908
  %v1958 = vsub.f32 %v1029, %v1908
  %v1959 = vsub.f32 %v1030, %v1909
  %v1960 = vsub.f32 %v1031, %v1909
  %v1961 = vsub.f32 %v1032, %v1910
  %v1962 = vsub.f32 %v1033, %v1910
  %v1963 = vsub.f32 %v1034, %v1911
  %v1964 = vsub.f32 %v1035, %v1911
  %v1965 = vsub.f32 %v1036, %v1912
  %v1966 = vsub.f32 %v1037, %v1912
  %v1967 = vsub.f32 %v1038, %v1913
  %v1968 = vsub.f32 %v1039, %v1913
  %v1969 = vsub.f32 %v1040, %v1914
  %v1970 = vsub.f32 %v1041, %v1914
  %v1971 = vsub.f32 %v1042, %v1915
  %v1972 = vsub.f32 %v1043, %v1915
  %v1973 = vsub.f32 %v1044, %v1916
  %v1974 = vsub.f32 %v1045, %v1916
  %v1975 = vsub.f32 %v1046, %v1917
  %v1976 = vsub.f32 %v1047, %v1917
  %v1977 = vsub.f32 %v1048, %v1918
  %v1978 = vsub.f32 %v1049, %v1918
  %v1979 = vsub.f32 %v1050, %v1919
  %v1980 = vsub.f32 %v1051, %v1919
  %v1981 = vsub.f32 %v1052, %v1920
  %v1982 = vsub.f32 %v1053, %v1920
  %v1983 = vsub.f32 %v1054, %v1921
  %v1984 = vsub.f32 %v1055, %v1921
  %v1985 = vsub.f32 %v1056, %v1922
  %v1986 = vsub.f32 %v1057, %v1922
  %1988 = vset.pattern.permute.xlu0 0
  %1989 = vperm.xlu0 %1988, %v1923
  %v1990 = vpop.permute.xlu0 %1989
  %1993 = vset.pattern.permute.xlu0 0
  %1994 = vperm.xlu0 %1993, %v1924
  %v1995 = vpop.permute.xlu0 %1994
  %1998 = vset.pattern.permute.xlu0 0
  %1999 = vperm.xlu0 %1998, %v1925
  %v2000 = vpop.permute.xlu0 %1999
  %2003 = vset.pattern.permute.xlu0 0
  %2004 = vperm.xlu0 %2003, %v1926
  %v2005 = vpop.permute.xlu0 %2004
  %2008 = vset.pattern.permute.xlu0 0
  %2009 = vperm.xlu0 %2008, %v1927
  %v2010 = vpop.permute.xlu0 %2009
  %2013 = vset.pattern.permute.xlu0 0
  %2014 = vperm.xlu0 %2013, %v1928
  %v2015 = vpop.permute.xlu0 %2014
  %2018 = vset.pattern.permute.xlu0 0
  %2019 = vperm.xlu0 %2018, %v1929
  %v2020 = vpop.permute.xlu0 %2019
  %2023 = vset.pattern.permute.xlu0 0
  %2024 = vperm.xlu0 %2023, %v1930
  %v2025 = vpop.permute.xlu0 %2024
  %2028 = vset.pattern.permute.xlu0 0
  %2029 = vperm.xlu0 %2028, %v1931
  %v2030 = vpop.permute.xlu0 %2029
  %2033 = vset.pattern.permute.xlu0 0
  %2034 = vperm.xlu0 %2033, %v1932
  %v2035 = vpop.permute.xlu0 %2034
  %2038 = vset.pattern.permute.xlu0 0
  %2039 = vperm.xlu0 %2038, %v1933
  %v2040 = vpop.permute.xlu0 %2039
  %2043 = vset.pattern.permute.xlu0 0
  %2044 = vperm.xlu0 %2043, %v1934
  %v2045 = vpop.permute.xlu0 %2044
  %2048 = vset.pattern.permute.xlu0 0
  %2049 = vperm.xlu0 %2048, %v1935
  %v2050 = vpop.permute.xlu0 %2049
  %2053 = vset.pattern.permute.xlu0 0
  %2054 = vperm.xlu0 %2053, %v1936
  %v2055 = vpop.permute.xlu0 %2054
  %2058 = vset.pattern.permute.xlu0 0
  %2059 = vperm.xlu0 %2058, %v1937
  %v2060 = vpop.permute.xlu0 %2059
  %2063 = vset.pattern.permute.xlu0 0
  %2064 = vperm.xlu0 %2063, %v1938
  %v2065 = vpop.permute.xlu0 %2064
  %2068 = vset.pattern.permute.xlu0 0
  %2069 = vperm.xlu0 %2068, %v1939
  %v2070 = vpop.permute.xlu0 %2069
  %2073 = vset.pattern.permute.xlu0 0
  %2074 = vperm.xlu0 %2073, %v1940
  %v2075 = vpop.permute.xlu0 %2074
  %2078 = vset.pattern.permute.xlu0 0
  %2079 = vperm.xlu0 %2078, %v1941
  %v2080 = vpop.permute.xlu0 %2079
  %2083 = vset.pattern.permute.xlu0 0
  %2084 = vperm.xlu0 %2083, %v1942
  %v2085 = vpop.permute.xlu0 %2084
  %2088 = vset.pattern.permute.xlu0 0
  %2089 = vperm.xlu0 %2088, %v1943
  %v2090 = vpop.permute.xlu0 %2089
  %2093 = vset.pattern.permute.xlu0 0
  %2094 = vperm.xlu0 %2093, %v1944
  %v2095 = vpop.permute.xlu0 %2094
  %2098 = vset.pattern.permute.xlu0 0
  %2099 = vperm.xlu0 %2098, %v1945
  %v2100 = vpop.permute.xlu0 %2099
  %2103 = vset.pattern.permute.xlu0 0
  %2104 = vperm.xlu0 %2103, %v1946
  %v2105 = vpop.permute.xlu0 %2104
  %2108 = vset.pattern.permute.xlu0 0
  %2109 = vperm.xlu0 %2108, %v1947
  %v2110 = vpop.permute.xlu0 %2109
  %2113 = vset.pattern.permute.xlu0 0
  %2114 = vperm.xlu0 %2113, %v1948
  %v2115 = vpop.permute.xlu0 %2114
  %2118 = vset.pattern.permute.xlu0 0
  %2119 = vperm.xlu0 %2118, %v1949
  %v2120 = vpop.permute.xlu0 %2119
  %2123 = vset.pattern.permute.xlu0 0
  %2124 = vperm.xlu0 %2123, %v1950
  %v2125 = vpop.permute.xlu0 %2124
  %2128 = vset.pattern.permute.xlu0 0
  %2129 = vperm.xlu0 %2128, %v1951
  %v2130 = vpop.permute.xlu0 %2129
  %2133 = vset.pattern.permute.xlu0 0
  %2134 = vperm.xlu0 %2133, %v1952
  %v2135 = vpop.permute.xlu0 %2134
  %2138 = vset.pattern.permute.xlu0 0
  %2139 = vperm.xlu0 %2138, %v1953
  %v2140 = vpop.permute.xlu0 %2139
  %2143 = vset.pattern.permute.xlu0 0
  %2144 = vperm.xlu0 %2143, %v1954
  %v2145 = vpop.permute.xlu0 %2144
  %2148 = vset.pattern.permute.xlu0 0
  %2149 = vperm.xlu0 %2148, %v1955
  %v2150 = vpop.permute.xlu0 %2149
  %2153 = vset.pattern.permute.xlu0 0
  %2154 = vperm.xlu0 %2153, %v1956
  %v2155 = vpop.permute.xlu0 %2154
  %2158 = vset.pattern.permute.xlu0 0
  %2159 = vperm.xlu0 %2158, %v1957
  %v2160 = vpop.permute.xlu0 %2159
  %2163 = vset.pattern.permute.xlu0 0
  %2164 = vperm.xlu0 %2163, %v1958
  %v2165 = vpop.permute.xlu0 %2164
  %2168 = vset.pattern.permute.xlu0 0
  %2169 = vperm.xlu0 %2168, %v1959
  %v2170 = vpop.permute.xlu0 %2169
  %2173 = vset.pattern.permute.xlu0 0
  %2174 = vperm.xlu0 %2173, %v1960
  %v2175 = vpop.permute.xlu0 %2174
  %2178 = vset.pattern.permute.xlu0 0
  %2179 = vperm.xlu0 %2178, %v1961
  %v2180 = vpop.permute.xlu0 %2179
  %2183 = vset.pattern.permute.xlu0 0
  %2184 = vperm.xlu0 %2183, %v1962
  %v2185 = vpop.permute.xlu0 %2184
  %2188 = vset.pattern.permute.xlu0 0
  %2189 = vperm.xlu0 %2188, %v1963
  %v2190 = vpop.permute.xlu0 %2189
  %2193 = vset.pattern.permute.xlu0 0
  %2194 = vperm.xlu0 %2193, %v1964
  %v2195 = vpop.permute.xlu0 %2194
  %2198 = vset.pattern.permute.xlu0 0
  %2199 = vperm.xlu0 %2198, %v1965
  %v2200 = vpop.permute.xlu0 %2199
  %2203 = vset.pattern.permute.xlu0 0
  %2204 = vperm.xlu0 %2203, %v1966
  %v2205 = vpop.permute.xlu0 %2204
  %2208 = vset.pattern.permute.xlu0 0
  %2209 = vperm.xlu0 %2208, %v1967
  %v2210 = vpop.permute.xlu0 %2209
  %2213 = vset.pattern.permute.xlu0 0
  %2214 = vperm.xlu0 %2213, %v1968
  %v2215 = vpop.permute.xlu0 %2214
  %2218 = vset.pattern.permute.xlu0 0
  %2219 = vperm.xlu0 %2218, %v1969
  %v2220 = vpop.permute.xlu0 %2219
  %2223 = vset.pattern.permute.xlu0 0
  %2224 = vperm.xlu0 %2223, %v1970
  %v2225 = vpop.permute.xlu0 %2224
  %2228 = vset.pattern.permute.xlu0 0
  %2229 = vperm.xlu0 %2228, %v1971
  %v2230 = vpop.permute.xlu0 %2229
  %2233 = vset.pattern.permute.xlu0 0
  %2234 = vperm.xlu0 %2233, %v1972
  %v2235 = vpop.permute.xlu0 %2234
  %2238 = vset.pattern.permute.xlu0 0
  %2239 = vperm.xlu0 %2238, %v1973
  %v2240 = vpop.permute.xlu0 %2239
  %2243 = vset.pattern.permute.xlu0 0
  %2244 = vperm.xlu0 %2243, %v1974
  %v2245 = vpop.permute.xlu0 %2244
  %2248 = vset.pattern.permute.xlu0 0
  %2249 = vperm.xlu0 %2248, %v1975
  %v2250 = vpop.permute.xlu0 %2249
  %2253 = vset.pattern.permute.xlu0 0
  %2254 = vperm.xlu0 %2253, %v1976
  %v2255 = vpop.permute.xlu0 %2254
  %2258 = vset.pattern.permute.xlu0 0
  %2259 = vperm.xlu0 %2258, %v1977
  %v2260 = vpop.permute.xlu0 %2259
  %2263 = vset.pattern.permute.xlu0 0
  %2264 = vperm.xlu0 %2263, %v1978
  %v2265 = vpop.permute.xlu0 %2264
  %2268 = vset.pattern.permute.xlu0 0
  %2269 = vperm.xlu0 %2268, %v1979
  %v2270 = vpop.permute.xlu0 %2269
  %2273 = vset.pattern.permute.xlu0 0
  %2274 = vperm.xlu0 %2273, %v1980
  %v2275 = vpop.permute.xlu0 %2274
  %2278 = vset.pattern.permute.xlu0 0
  %2279 = vperm.xlu0 %2278, %v1981
  %v2280 = vpop.permute.xlu0 %2279
  %2283 = vset.pattern.permute.xlu0 0
  %2284 = vperm.xlu0 %2283, %v1982
  %v2285 = vpop.permute.xlu0 %2284
  %2288 = vset.pattern.permute.xlu0 0
  %2289 = vperm.xlu0 %2288, %v1983
  %v2290 = vpop.permute.xlu0 %2289
  %2293 = vset.pattern.permute.xlu0 0
  %2294 = vperm.xlu0 %2293, %v1984
  %v2295 = vpop.permute.xlu0 %2294
  %2298 = vset.pattern.permute.xlu0 0
  %2299 = vperm.xlu0 %2298, %v1985
  %v2300 = vpop.permute.xlu0 %2299
  %2303 = vset.pattern.permute.xlu0 0
  %2304 = vperm.xlu0 %2303, %v1986
  %v2305 = vpop.permute.xlu0 %2304
  %v2307 = vmul.f32 %v43, %v1990
  %v2308 = vmul.f32 %v44, %v1995
  %v2309 = vmul.f32 %v45, %v2000
  %v2310 = vmul.f32 %v46, %v2005
  %v2311 = vmul.f32 %v47, %v2010
  %v2312 = vmul.f32 %v48, %v2015
  %v2313 = vmul.f32 %v49, %v2020
  %v2314 = vmul.f32 %v50, %v2025
  %v2315 = vmul.f32 %v51, %v2030
  %v2316 = vmul.f32 %v52, %v2035
  %v2317 = vmul.f32 %v53, %v2040
  %v2318 = vmul.f32 %v54, %v2045
  %v2319 = vmul.f32 %v55, %v2050
  %v2320 = vmul.f32 %v56, %v2055
  %v2321 = vmul.f32 %v57, %v2060
  %v2322 = vmul.f32 %v58, %v2065
  %v2323 = vmul.f32 %v59, %v2070
  %v2324 = vmul.f32 %v60, %v2075
  %v2325 = vmul.f32 %v61, %v2080
  %v2326 = vmul.f32 %v62, %v2085
  %v2327 = vmul.f32 %v63, %v2090
  %v2328 = vmul.f32 %v64, %v2095
  %v2329 = vmul.f32 %v65, %v2100
  %v2330 = vmul.f32 %v66, %v2105
  %v2331 = vmul.f32 %v67, %v2110
  %v2332 = vmul.f32 %v68, %v2115
  %v2333 = vmul.f32 %v69, %v2120
  %v2334 = vmul.f32 %v70, %v2125
  %v2335 = vmul.f32 %v71, %v2130
  %v2336 = vmul.f32 %v72, %v2135
  %v2337 = vmul.f32 %v73, %v2140
  %v2338 = vmul.f32 %v74, %v2145
  %v2339 = vmul.f32 %v75, %v2150
  %v2340 = vmul.f32 %v76, %v2155
  %v2341 = vmul.f32 %v77, %v2160
  %v2342 = vmul.f32 %v78, %v2165
  %v2343 = vmul.f32 %v79, %v2170
  %v2344 = vmul.f32 %v80, %v2175
  %v2345 = vmul.f32 %v81, %v2180
  %v2346 = vmul.f32 %v82, %v2185
  %v2347 = vmul.f32 %v83, %v2190
  %v2348 = vmul.f32 %v84, %v2195
  %v2349 = vmul.f32 %v85, %v2200
  %v2350 = vmul.f32 %v86, %v2205
  %v2351 = vmul.f32 %v87, %v2210
  %v2352 = vmul.f32 %v88, %v2215
  %v2353 = vmul.f32 %v89, %v2220
  %v2354 = vmul.f32 %v90, %v2225
  %v2355 = vmul.f32 %v91, %v2230
  %v2356 = vmul.f32 %v92, %v2235
  %v2357 = vmul.f32 %v93, %v2240
  %v2358 = vmul.f32 %v94, %v2245
  %v2359 = vmul.f32 %v95, %v2250
  %v2360 = vmul.f32 %v96, %v2255
  %v2361 = vmul.f32 %v97, %v2260
  %v2362 = vmul.f32 %v98, %v2265
  %v2363 = vmul.f32 %v99, %v2270
  %v2364 = vmul.f32 %v100, %v2275
  %v2365 = vmul.f32 %v101, %v2280
  %v2366 = vmul.f32 %v102, %v2285
  %v2367 = vmul.f32 %v103, %v2290
  %v2368 = vmul.f32 %v104, %v2295
  %v2369 = vmul.f32 %v105, %v2300
  %v2370 = vmul.f32 %v106, %v2305
  %v2371 = vsel %vm119, %v2307, 0.0
  %v2372 = vsel %vm119, %v2308, 0.0
  %v2373 = vadd.f32 %v2371, %v2372
  %v2374 = vrot.slane %v2373, 4
  %v2375 = vadd.f32 %v2373, %v2374
  %v2376 = vrot.slane %v2375, 2
  %v2377 = vadd.f32 %v2375, %v2376
  %v2378 = vrot.slane %v2377, 1
  %v2379 = vadd.f32 %v2377, %v2378
  %v2380 = vsel %vm119, %v2309, 0.0
  %v2381 = vsel %vm119, %v2310, 0.0
  %v2382 = vadd.f32 %v2380, %v2381
  %v2383 = vrot.slane %v2382, 4
  %v2384 = vadd.f32 %v2382, %v2383
  %v2385 = vrot.slane %v2384, 2
  %v2386 = vadd.f32 %v2384, %v2385
  %v2387 = vrot.slane %v2386, 1
  %v2388 = vadd.f32 %v2386, %v2387
  %v2389 = vsel %vm119, %v2311, 0.0
  %v2390 = vsel %vm119, %v2312, 0.0
  %v2391 = vadd.f32 %v2389, %v2390
  %v2392 = vrot.slane %v2391, 4
  %v2393 = vadd.f32 %v2391, %v2392
  %v2394 = vrot.slane %v2393, 2
  %v2395 = vadd.f32 %v2393, %v2394
  %v2396 = vrot.slane %v2395, 1
  %v2397 = vadd.f32 %v2395, %v2396
  %v2398 = vsel %vm119, %v2313, 0.0
  %v2399 = vsel %vm119, %v2314, 0.0
  %v2400 = vadd.f32 %v2398, %v2399
  %v2401 = vrot.slane %v2400, 4
  %v2402 = vadd.f32 %v2400, %v2401
  %v2403 = vrot.slane %v2402, 2
  %v2404 = vadd.f32 %v2402, %v2403
  %v2405 = vrot.slane %v2404, 1
  %v2406 = vadd.f32 %v2404, %v2405
  %v2407 = vsel %vm119, %v2315, 0.0
  %v2408 = vsel %vm119, %v2316, 0.0
  %v2409 = vadd.f32 %v2407, %v2408
  %v2410 = vrot.slane %v2409, 4
  %v2411 = vadd.f32 %v2409, %v2410
  %v2412 = vrot.slane %v2411, 2
  %v2413 = vadd.f32 %v2411, %v2412
  %v2414 = vrot.slane %v2413, 1
  %v2415 = vadd.f32 %v2413, %v2414
  %v2416 = vsel %vm119, %v2317, 0.0
  %v2417 = vsel %vm119, %v2318, 0.0
  %v2418 = vadd.f32 %v2416, %v2417
  %v2419 = vrot.slane %v2418, 4
  %v2420 = vadd.f32 %v2418, %v2419
  %v2421 = vrot.slane %v2420, 2
  %v2422 = vadd.f32 %v2420, %v2421
  %v2423 = vrot.slane %v2422, 1
  %v2424 = vadd.f32 %v2422, %v2423
  %v2425 = vsel %vm119, %v2319, 0.0
  %v2426 = vsel %vm119, %v2320, 0.0
  %v2427 = vadd.f32 %v2425, %v2426
  %v2428 = vrot.slane %v2427, 4
  %v2429 = vadd.f32 %v2427, %v2428
  %v2430 = vrot.slane %v2429, 2
  %v2431 = vadd.f32 %v2429, %v2430
  %v2432 = vrot.slane %v2431, 1
  %v2433 = vadd.f32 %v2431, %v2432
  %v2434 = vsel %vm119, %v2321, 0.0
  %v2435 = vsel %vm119, %v2322, 0.0
  %v2436 = vadd.f32 %v2434, %v2435
  %v2437 = vrot.slane %v2436, 4
  %v2438 = vadd.f32 %v2436, %v2437
  %v2439 = vrot.slane %v2438, 2
  %v2440 = vadd.f32 %v2438, %v2439
  %v2441 = vrot.slane %v2440, 1
  %v2442 = vadd.f32 %v2440, %v2441
  %v2443 = vsel %vm119, %v2323, 0.0
  %v2444 = vsel %vm119, %v2324, 0.0
  %v2445 = vadd.f32 %v2443, %v2444
  %v2446 = vrot.slane %v2445, 4
  %v2447 = vadd.f32 %v2445, %v2446
  %v2448 = vrot.slane %v2447, 2
  %v2449 = vadd.f32 %v2447, %v2448
  %v2450 = vrot.slane %v2449, 1
  %v2451 = vadd.f32 %v2449, %v2450
  %v2452 = vsel %vm119, %v2325, 0.0
  %v2453 = vsel %vm119, %v2326, 0.0
  %v2454 = vadd.f32 %v2452, %v2453
  %v2455 = vrot.slane %v2454, 4
  %v2456 = vadd.f32 %v2454, %v2455
  %v2457 = vrot.slane %v2456, 2
  %v2458 = vadd.f32 %v2456, %v2457
  %v2459 = vrot.slane %v2458, 1
  %v2460 = vadd.f32 %v2458, %v2459
  %v2461 = vsel %vm119, %v2327, 0.0
  %v2462 = vsel %vm119, %v2328, 0.0
  %v2463 = vadd.f32 %v2461, %v2462
  %v2464 = vrot.slane %v2463, 4
  %v2465 = vadd.f32 %v2463, %v2464
  %v2466 = vrot.slane %v2465, 2
  %v2467 = vadd.f32 %v2465, %v2466
  %v2468 = vrot.slane %v2467, 1
  %v2469 = vadd.f32 %v2467, %v2468
  %v2470 = vsel %vm119, %v2329, 0.0
  %v2471 = vsel %vm119, %v2330, 0.0
  %v2472 = vadd.f32 %v2470, %v2471
  %v2473 = vrot.slane %v2472, 4
  %v2474 = vadd.f32 %v2472, %v2473
  %v2475 = vrot.slane %v2474, 2
  %v2476 = vadd.f32 %v2474, %v2475
  %v2477 = vrot.slane %v2476, 1
  %v2478 = vadd.f32 %v2476, %v2477
  %v2479 = vsel %vm119, %v2331, 0.0
  %v2480 = vsel %vm119, %v2332, 0.0
  %v2481 = vadd.f32 %v2479, %v2480
  %v2482 = vrot.slane %v2481, 4
  %v2483 = vadd.f32 %v2481, %v2482
  %v2484 = vrot.slane %v2483, 2
  %v2485 = vadd.f32 %v2483, %v2484
  %v2486 = vrot.slane %v2485, 1
  %v2487 = vadd.f32 %v2485, %v2486
  %v2488 = vsel %vm119, %v2333, 0.0
  %v2489 = vsel %vm119, %v2334, 0.0
  %v2490 = vadd.f32 %v2488, %v2489
  %v2491 = vrot.slane %v2490, 4
  %v2492 = vadd.f32 %v2490, %v2491
  %v2493 = vrot.slane %v2492, 2
  %v2494 = vadd.f32 %v2492, %v2493
  %v2495 = vrot.slane %v2494, 1
  %v2496 = vadd.f32 %v2494, %v2495
  %v2497 = vsel %vm119, %v2335, 0.0
  %v2498 = vsel %vm119, %v2336, 0.0
  %v2499 = vadd.f32 %v2497, %v2498
  %v2500 = vrot.slane %v2499, 4
  %v2501 = vadd.f32 %v2499, %v2500
  %v2502 = vrot.slane %v2501, 2
  %v2503 = vadd.f32 %v2501, %v2502
  %v2504 = vrot.slane %v2503, 1
  %v2505 = vadd.f32 %v2503, %v2504
  %v2506 = vsel %vm119, %v2337, 0.0
  %v2507 = vsel %vm119, %v2338, 0.0
  %v2508 = vadd.f32 %v2506, %v2507
  %v2509 = vrot.slane %v2508, 4
  %v2510 = vadd.f32 %v2508, %v2509
  %v2511 = vrot.slane %v2510, 2
  %v2512 = vadd.f32 %v2510, %v2511
  %v2513 = vrot.slane %v2512, 1
  %v2514 = vadd.f32 %v2512, %v2513
  %v2515 = vsel %vm119, %v2339, 0.0
  %v2516 = vsel %vm119, %v2340, 0.0
  %v2517 = vadd.f32 %v2515, %v2516
  %v2518 = vrot.slane %v2517, 4
  %v2519 = vadd.f32 %v2517, %v2518
  %v2520 = vrot.slane %v2519, 2
  %v2521 = vadd.f32 %v2519, %v2520
  %v2522 = vrot.slane %v2521, 1
  %v2523 = vadd.f32 %v2521, %v2522
  %v2524 = vsel %vm119, %v2341, 0.0
  %v2525 = vsel %vm119, %v2342, 0.0
  %v2526 = vadd.f32 %v2524, %v2525
  %v2527 = vrot.slane %v2526, 4
  %v2528 = vadd.f32 %v2526, %v2527
  %v2529 = vrot.slane %v2528, 2
  %v2530 = vadd.f32 %v2528, %v2529
  %v2531 = vrot.slane %v2530, 1
  %v2532 = vadd.f32 %v2530, %v2531
  %v2533 = vsel %vm119, %v2343, 0.0
  %v2534 = vsel %vm119, %v2344, 0.0
  %v2535 = vadd.f32 %v2533, %v2534
  %v2536 = vrot.slane %v2535, 4
  %v2537 = vadd.f32 %v2535, %v2536
  %v2538 = vrot.slane %v2537, 2
  %v2539 = vadd.f32 %v2537, %v2538
  %v2540 = vrot.slane %v2539, 1
  %v2541 = vadd.f32 %v2539, %v2540
  %v2542 = vsel %vm119, %v2345, 0.0
  %v2543 = vsel %vm119, %v2346, 0.0
  %v2544 = vadd.f32 %v2542, %v2543
  %v2545 = vrot.slane %v2544, 4
  %v2546 = vadd.f32 %v2544, %v2545
  %v2547 = vrot.slane %v2546, 2
  %v2548 = vadd.f32 %v2546, %v2547
  %v2549 = vrot.slane %v2548, 1
  %v2550 = vadd.f32 %v2548, %v2549
  %v2551 = vsel %vm119, %v2347, 0.0
  %v2552 = vsel %vm119, %v2348, 0.0
  %v2553 = vadd.f32 %v2551, %v2552
  %v2554 = vrot.slane %v2553, 4
  %v2555 = vadd.f32 %v2553, %v2554
  %v2556 = vrot.slane %v2555, 2
  %v2557 = vadd.f32 %v2555, %v2556
  %v2558 = vrot.slane %v2557, 1
  %v2559 = vadd.f32 %v2557, %v2558
  %v2560 = vsel %vm119, %v2349, 0.0
  %v2561 = vsel %vm119, %v2350, 0.0
  %v2562 = vadd.f32 %v2560, %v2561
  %v2563 = vrot.slane %v2562, 4
  %v2564 = vadd.f32 %v2562, %v2563
  %v2565 = vrot.slane %v2564, 2
  %v2566 = vadd.f32 %v2564, %v2565
  %v2567 = vrot.slane %v2566, 1
  %v2568 = vadd.f32 %v2566, %v2567
  %v2569 = vsel %vm119, %v2351, 0.0
  %v2570 = vsel %vm119, %v2352, 0.0
  %v2571 = vadd.f32 %v2569, %v2570
  %v2572 = vrot.slane %v2571, 4
  %v2573 = vadd.f32 %v2571, %v2572
  %v2574 = vrot.slane %v2573, 2
  %v2575 = vadd.f32 %v2573, %v2574
  %v2576 = vrot.slane %v2575, 1
  %v2577 = vadd.f32 %v2575, %v2576
  %v2578 = vsel %vm119, %v2353, 0.0
  %v2579 = vsel %vm119, %v2354, 0.0
  %v2580 = vadd.f32 %v2578, %v2579
  %v2581 = vrot.slane %v2580, 4
  %v2582 = vadd.f32 %v2580, %v2581
  %v2583 = vrot.slane %v2582, 2
  %v2584 = vadd.f32 %v2582, %v2583
  %v2585 = vrot.slane %v2584, 1
  %v2586 = vadd.f32 %v2584, %v2585
  %v2587 = vsel %vm119, %v2355, 0.0
  %v2588 = vsel %vm119, %v2356, 0.0
  %v2589 = vadd.f32 %v2587, %v2588
  %v2590 = vrot.slane %v2589, 4
  %v2591 = vadd.f32 %v2589, %v2590
  %v2592 = vrot.slane %v2591, 2
  %v2593 = vadd.f32 %v2591, %v2592
  %v2594 = vrot.slane %v2593, 1
  %v2595 = vadd.f32 %v2593, %v2594
  %v2596 = vsel %vm119, %v2357, 0.0
  %v2597 = vsel %vm119, %v2358, 0.0
  %v2598 = vadd.f32 %v2596, %v2597
  %v2599 = vrot.slane %v2598, 4
  %v2600 = vadd.f32 %v2598, %v2599
  %v2601 = vrot.slane %v2600, 2
  %v2602 = vadd.f32 %v2600, %v2601
  %v2603 = vrot.slane %v2602, 1
  %v2604 = vadd.f32 %v2602, %v2603
  %v2605 = vsel %vm119, %v2359, 0.0
  %v2606 = vsel %vm119, %v2360, 0.0
  %v2607 = vadd.f32 %v2605, %v2606
  %v2608 = vrot.slane %v2607, 4
  %v2609 = vadd.f32 %v2607, %v2608
  %v2610 = vrot.slane %v2609, 2
  %v2611 = vadd.f32 %v2609, %v2610
  %v2612 = vrot.slane %v2611, 1
  %v2613 = vadd.f32 %v2611, %v2612
  %v2614 = vsel %vm119, %v2361, 0.0
  %v2615 = vsel %vm119, %v2362, 0.0
  %v2616 = vadd.f32 %v2614, %v2615
  %v2617 = vrot.slane %v2616, 4
  %v2618 = vadd.f32 %v2616, %v2617
  %v2619 = vrot.slane %v2618, 2
  %v2620 = vadd.f32 %v2618, %v2619
  %v2621 = vrot.slane %v2620, 1
  %v2622 = vadd.f32 %v2620, %v2621
  %v2623 = vsel %vm119, %v2363, 0.0
  %v2624 = vsel %vm119, %v2364, 0.0
  %v2625 = vadd.f32 %v2623, %v2624
  %v2626 = vrot.slane %v2625, 4
  %v2627 = vadd.f32 %v2625, %v2626
  %v2628 = vrot.slane %v2627, 2
  %v2629 = vadd.f32 %v2627, %v2628
  %v2630 = vrot.slane %v2629, 1
  %v2631 = vadd.f32 %v2629, %v2630
  %v2632 = vsel %vm119, %v2365, 0.0
  %v2633 = vsel %vm119, %v2366, 0.0
  %v2634 = vadd.f32 %v2632, %v2633
  %v2635 = vrot.slane %v2634, 4
  %v2636 = vadd.f32 %v2634, %v2635
  %v2637 = vrot.slane %v2636, 2
  %v2638 = vadd.f32 %v2636, %v2637
  %v2639 = vrot.slane %v2638, 1
  %v2640 = vadd.f32 %v2638, %v2639
  %v2641 = vsel %vm119, %v2367, 0.0
  %v2642 = vsel %vm119, %v2368, 0.0
  %v2643 = vadd.f32 %v2641, %v2642
  %v2644 = vrot.slane %v2643, 4
  %v2645 = vadd.f32 %v2643, %v2644
  %v2646 = vrot.slane %v2645, 2
  %v2647 = vadd.f32 %v2645, %v2646
  %v2648 = vrot.slane %v2647, 1
  %v2649 = vadd.f32 %v2647, %v2648
  %v2650 = vsel %vm119, %v2369, 0.0
  %v2651 = vsel %vm119, %v2370, 0.0
  %v2652 = vadd.f32 %v2650, %v2651
  %v2653 = vrot.slane %v2652, 4
  %v2654 = vadd.f32 %v2652, %v2653
  %v2655 = vrot.slane %v2654, 2
  %v2656 = vadd.f32 %v2654, %v2655
  %v2657 = vrot.slane %v2656, 1
  %v2658 = vadd.f32 %v2656, %v2657
  %v2659 = vtanh.pop %v2379
  %v2660 = vtanh.pop %v2388
  %v2661 = vtanh.pop %v2397
  %v2662 = vtanh.pop %v2406
  %v2663 = vtanh.pop %v2415
  %v2664 = vtanh.pop %v2424
  %v2665 = vtanh.pop %v2433
  %v2666 = vtanh.pop %v2442
  %v2667 = vtanh.pop %v2451
  %v2668 = vtanh.pop %v2460
  %v2669 = vtanh.pop %v2469
  %v2670 = vtanh.pop %v2478
  %v2671 = vtanh.pop %v2487
  %v2672 = vtanh.pop %v2496
  %v2673 = vtanh.pop %v2505
  %v2674 = vtanh.pop %v2514
  %v2675 = vtanh.pop %v2523
  %v2676 = vtanh.pop %v2532
  %v2677 = vtanh.pop %v2541
  %v2678 = vtanh.pop %v2550
  %v2679 = vtanh.pop %v2559
  %v2680 = vtanh.pop %v2568
  %v2681 = vtanh.pop %v2577
  %v2682 = vtanh.pop %v2586
  %v2683 = vtanh.pop %v2595
  %v2684 = vtanh.pop %v2604
  %v2685 = vtanh.pop %v2613
  %v2686 = vtanh.pop %v2622
  %v2687 = vtanh.pop %v2631
  %v2688 = vtanh.pop %v2640
  %v2689 = vtanh.pop %v2649
  %v2690 = vtanh.pop %v2658
  %v2691 = vld [vmem:[%s8] sm:$0xff]
  %v2692 = vld [vmem:[%s8 + $0x8] sm:$0xff]
  %v2693 = vld [vmem:[%s8 + $0x10] sm:$0xff]
  %v2694 = vld [vmem:[%s8 + $0x18] sm:$0xff]
  %v2695 = vld [vmem:[%s9] sm:$0x1]
  %v2697 = vperm.slane %v2695, 0
  %vm2731 = vcmask 1041409
  %v2732 = vsel %vm2731, %v2660, %v2659
  %vm2733 = vcmask 1042434
  %v2734 = vsel %vm2733, %v2661, %v2732
  %vm2735 = vcmask 1043459
  %v2736 = vsel %vm2735, %v2662, %v2734
  %vm2737 = vcmask 1044484
  %v2738 = vsel %vm2737, %v2663, %v2736
  %vm2739 = vcmask 1045509
  %v2740 = vsel %vm2739, %v2664, %v2738
  %vm2741 = vcmask 1046534
  %v2742 = vsel %vm2741, %v2665, %v2740
  %vm2743 = vcmask 1047559
  %v2744 = vsel %vm2743, %v2666, %v2742
  %v2745 = vsel %vm2731, %v2668, %v2667
  %v2746 = vsel %vm2733, %v2669, %v2745
  %v2747 = vsel %vm2735, %v2670, %v2746
  %v2748 = vsel %vm2737, %v2671, %v2747
  %v2749 = vsel %vm2739, %v2672, %v2748
  %v2750 = vsel %vm2741, %v2673, %v2749
  %v2751 = vsel %vm2743, %v2674, %v2750
  %v2752 = vsel %vm2731, %v2676, %v2675
  %v2753 = vsel %vm2733, %v2677, %v2752
  %v2754 = vsel %vm2735, %v2678, %v2753
  %v2755 = vsel %vm2737, %v2679, %v2754
  %v2756 = vsel %vm2739, %v2680, %v2755
  %v2757 = vsel %vm2741, %v2681, %v2756
  %v2758 = vsel %vm2743, %v2682, %v2757
  %v2759 = vsel %vm2731, %v2684, %v2683
  %v2760 = vsel %vm2733, %v2685, %v2759
  %v2761 = vsel %vm2735, %v2686, %v2760
  %v2762 = vsel %vm2737, %v2687, %v2761
  %v2763 = vsel %vm2739, %v2688, %v2762
  %v2764 = vsel %vm2741, %v2689, %v2763
  %v2765 = vsel %vm2743, %v2690, %v2764
  %v2766 = vsel %vm119, %v2744, 0
  %v2768 = vsel %vm119, %v2751, 0
  %v2770 = vsel %vm119, %v2758, 0
  %v2772 = vsel %vm119, %v2765, 0
  %2774 = vmatpush.msra.mxu0 0.0
  %2775 = vmatpush.msra.mxu0 0.0
  %2776 = vmatpush.msra.mxu0 0.0
  %2777 = vmatpush.msra.mxu0 0.0
  %2778 = vmatpush.msra.mxu0 0.0
  %2779 = vmatpush.msra.mxu0 0.0
  %2780 = vmatpush.msra.mxu0 0.0
  %2781 = vmatpush.msra.mxu0 0.0
  %2782 = vmatpush.msra.mxu0 0.0
  %2783 = vmatpush.msra.mxu0 0.0
  %2784 = vmatpush.msra.mxu0 0.0
  %2785 = vmatpush.msra.mxu0 0.0
  %2786 = vmatpush.msra.mxu0 %v2694
  %2787 = vmatpush.msra.mxu0 %v2693
  %2788 = vmatpush.msra.mxu0 %v2692
  %2789 = vmatpush.msra.mxu0 %v2691
  %2790 = vmatmul.f32.gmra.mxu0 %v2766
  %v2791 = vpop.f32.mrf.mxu0
  %v2792 = vadd.f32 %v2697, %v2791
  %2793 = vmatmul.f32.gmra.mxu0 %v2768
  %v2794 = vpop.f32.mrf.mxu0
  %v2795 = vadd.f32 %v2697, %v2794
  %2796 = vmatmul.f32.gmra.mxu0 %v2770
  %v2797 = vpop.f32.mrf.mxu0
  %v2798 = vadd.f32 %v2697, %v2797
  %2799 = vmatmul.f32.gmra.mxu0 %v2772
  %v2800 = vpop.f32.mrf.mxu0
  %v2801 = vadd.f32 %v2697, %v2800
  %2802 = vdwg.mxu0
  %v2803 = vmax.f32 %v2792, 0.0
  %v2804 = vmax.f32 %v2795, 0.0
  %v2805 = vmax.f32 %v2798, 0.0
  %v2806 = vmax.f32 %v2801, 0.0
  %v2807 = vld [vmem:[%s10] sm:$0xff]
  %v2808 = vld [vmem:[%s10 + $0x8] sm:$0xff]
  %v2809 = vld [vmem:[%s10 + $0x10] sm:$0xff]
  %v2810 = vld [vmem:[%s10 + $0x18] sm:$0xff]
  %v2811 = vld [vmem:[%s10 + $0x20] sm:$0xff]
  %v2812 = vld [vmem:[%s10 + $0x28] sm:$0xff]
  %v2813 = vld [vmem:[%s10 + $0x30] sm:$0xff]
  %v2814 = vld [vmem:[%s10 + $0x38] sm:$0xff]
  %v2815 = vld [vmem:[%s10 + $0x40] sm:$0xff]
  %v2816 = vld [vmem:[%s10 + $0x48] sm:$0xff]
  %v2817 = vld [vmem:[%s10 + $0x50] sm:$0xff]
  %v2818 = vld [vmem:[%s10 + $0x58] sm:$0xff]
  %v2819 = vld [vmem:[%s10 + $0x60] sm:$0xff]
  %v2820 = vld [vmem:[%s10 + $0x68] sm:$0xff]
  %v2821 = vld [vmem:[%s10 + $0x70] sm:$0xff]
  %v2822 = vld [vmem:[%s10 + $0x78] sm:$0xff]
  %v2823 = vld [vmem:[%s11] sm:$0x1]
  %v2825 = vperm.slane %v2823, 0
  %2827 = vmatpush.msra.mxu0 %v2822
  %2828 = vmatpush.msra.mxu0 %v2821
  %2829 = vmatpush.msra.mxu0 %v2820
  %2830 = vmatpush.msra.mxu0 %v2819
  %2831 = vmatpush.msra.mxu0 %v2818
  %2832 = vmatpush.msra.mxu0 %v2817
  %2833 = vmatpush.msra.mxu0 %v2816
  %2834 = vmatpush.msra.mxu0 %v2815
  %2835 = vmatpush.msra.mxu0 %v2814
  %2836 = vmatpush.msra.mxu0 %v2813
  %2837 = vmatpush.msra.mxu0 %v2812
  %2838 = vmatpush.msra.mxu0 %v2811
  %2839 = vmatpush.msra.mxu0 %v2810
  %2840 = vmatpush.msra.mxu0 %v2809
  %2841 = vmatpush.msra.mxu0 %v2808
  %2842 = vmatpush.msra.mxu0 %v2807
  %2843 = vmatmul.f32.gmra.mxu0 %v2803
  %v2844 = vpop.f32.mrf.mxu0
  %v2845 = vadd.f32 %v2825, %v2844
  %2846 = vmatmul.f32.gmra.mxu0 %v2804
  %v2847 = vpop.f32.mrf.mxu0
  %v2848 = vadd.f32 %v2825, %v2847
  %2849 = vmatmul.f32.gmra.mxu0 %v2805
  %v2850 = vpop.f32.mrf.mxu0
  %v2851 = vadd.f32 %v2825, %v2850
  %2852 = vmatmul.f32.gmra.mxu0 %v2806
  %v2853 = vpop.f32.mrf.mxu0
  %v2854 = vadd.f32 %v2825, %v2853
  %2855 = vdwg.mxu0
  %2856 = vmax.xlane.f32.xlu0 %v2845
  %v2857 = vpop.xlane.xlu0 %2856
  %2858 = vmax.xlane.f32.xlu0 %v2848
  %v2859 = vpop.xlane.xlu0 %2858
  %2860 = vmax.xlane.f32.xlu0 %v2851
  %v2861 = vpop.xlane.xlu0 %2860
  %2862 = vmax.xlane.f32.xlu0 %v2854
  %v2863 = vpop.xlane.xlu0 %2862
  %v2864 = vsub.f32 %v2845, %v2857
  %v2865 = vsub.f32 %v2848, %v2859
  %v2866 = vsub.f32 %v2851, %v2861
  %v2867 = vsub.f32 %v2854, %v2863
  %v2868 = vmul.f32 %v2864, 1.442695
  %v2869 = vpow.pop %v2868
  %v2870 = vmul.f32 %v2865, 1.442695
  %v2871 = vpow.pop %v2870
  %v2872 = vmul.f32 %v2866, 1.442695
  %v2873 = vpow.pop %v2872
  %v2874 = vmul.f32 %v2867, 1.442695
  %v2875 = vpow.pop %v2874
  %2876 = vadd.xlane.f32.xlu0 %v2869
  %v2877 = vpop.xlane.xlu0 %2876
  %2878 = vadd.xlane.f32.xlu0 %v2871
  %v2879 = vpop.xlane.xlu0 %2878
  %2880 = vadd.xlane.f32.xlu0 %v2873
  %v2881 = vpop.xlane.xlu0 %2880
  %2882 = vadd.xlane.f32.xlu0 %v2875
  %v2883 = vpop.xlane.xlu0 %2882
  %v2884 = vlog2.pop %v2877
  %v2885 = vmul.f32 %v2884, 0.6931472
  %v2886 = vlog2.pop %v2879
  %v2887 = vmul.f32 %v2886, 0.6931472
  %v2888 = vlog2.pop %v2881
  %v2889 = vmul.f32 %v2888, 0.6931472
  %v2890 = vlog2.pop %v2883
  %v2891 = vmul.f32 %v2890, 0.6931472
  %v2892 = vadd.f32 %v2885, %v2857
  %v2893 = vadd.f32 %v2887, %v2859
  %v2894 = vadd.f32 %v2889, %v2861
  %v2895 = vadd.f32 %v2891, %v2863
  %v2896 = vsub.f32 %v2845, %v2892
  %v2897 = vsub.f32 %v2848, %v2893
  %v2898 = vsub.f32 %v2851, %v2894
  %v2899 = vsub.f32 %v2854, %v2895
  %2900 = vst [vmem:[%s12] sm:$0xff] %v2896
  %2901 = vst [vmem:[%s12 + $0x8] sm:$0xff] %v2897
  %2902 = vst [vmem:[%s12 + $0x10] sm:$0xff] %v2898
  %2903 = vst [vmem:[%s12 + $0x18] sm:$0xff] %v2899
  // Predicated region
  $region50: #{intent_forward.1} parent=0 // pred_check
    _
  $region51: #{intent_forward.1} parent=0 // pred_check_branch
    %2905 = sbr.rel (0) target = $region53
  $region52: #{intent_forward.1} parent=0 // pred_region
    _
  $region53: #{intent_forward.1} parent=0 // pred_fallthru
    _
  // Predicated region
  $region54: #{intent_forward.1} parent=0 // pred_check
    _
  $region55: #{intent_forward.1} parent=0 // pred_check_branch
    %2907 = sbr.rel (0) target = $region57
  $region56: #{intent_forward.1} parent=0 // pred_region
    _
  $region57: #{intent_forward.1} parent=0 // pred_fallthru
    _

</llo_original>
